<compile_context>
chip_gen: v5e
topology: v5e:2x2
jax: 0.10.0
libtpu: 0.0.40
codegen_flags: <defaults>
</compile_context>

<pallas_src>
import functools

import jax
import jax.numpy as jnp
import numpy as np
from jax import lax
from jax.experimental import pallas as pl
from jax.experimental.pallas import tpu as pltpu

MIN_NORM = 1e-15


# ----- kappa-stereographic math (host-side constants + pure-JAX reference) ---------
def _tan_k(x, k):
    # tan_k: tan for k>0 (spherical), tanh for k<0 (hyperbolic), identity for k==0.
    sqrt_abs_k = jnp.sqrt(jnp.maximum(jnp.abs(k), MIN_NORM))
    sx = x * sqrt_abs_k
    pos = (jnp.sin(sx) / jnp.cos(sx)) / sqrt_abs_k          # tan(sx)/sqrt(|k|)
    neg = jnp.tanh(jnp.clip(sx, -15.0, 15.0)) / sqrt_abs_k  # tanh(sx)/sqrt(|k|)
    return jnp.where(k > 0, pos, jnp.where(k < 0, neg, x))


def _expmap0(u, k):
    un = jnp.maximum(jnp.sqrt(jnp.sum(u * u, axis=-1, keepdims=True)), MIN_NORM)
    return _tan_k(un, k) * (u / un)


def _mobius_add(x, y, k):
    x2 = jnp.sum(x * x, axis=-1, keepdims=True)
    y2 = jnp.sum(y * y, axis=-1, keepdims=True)
    xy = jnp.sum(x * y, axis=-1, keepdims=True)
    num = (1.0 - 2.0 * k * xy - k * y2) * x + (1.0 + k * x2) * y
    den = 1.0 - 2.0 * k * xy + (k * k) * x2 * y2
    return num / jnp.maximum(den, MIN_NORM)


def _expmap(x, u, k):
    un = jnp.maximum(jnp.sqrt(jnp.sum(u * u, axis=-1, keepdims=True)), MIN_NORM)
    lam = 2.0 / jnp.maximum(1.0 + k * jnp.sum(x * x, axis=-1, keepdims=True), MIN_NORM)
    second = _tan_k(lam * un * 0.5, k) * (u / un)
    return _mobius_add(x, second, k)


# ----- Pallas kernel ---------------------------------------------------------------
def _meta_exp_kernel(consts_ref, p_ref, x_ref, o_ref, *, component_num):
    """Lane-dense layout: pixels on the lane axis, component slabs sublane-aligned.

    consts_ref : SMEM (P, 7) scalar-prefetched per-component constants
                 [k, sqrt(|k|), 1/sqrt(|k|), lambda_p/2, 1 + k*|p|^2, k^2*|p|^2, 2k]
    p_ref      : VMEM (P, cc, 1)   base points p_i = expmap0(location_i, k_i) (f32)
    x_ref      : VMEM (1, P, cc, TM) pixel tile (channels on sublanes, pixels on lanes)
    o_ref      : VMEM (1, P, cc, TM)
    """

    def _recip(v):
        # EUP approximate reciprocal + one Newton step (VPU) ~ full f32 accuracy.
        r = pl.reciprocal(v, approx=True)
        return r * (2.0 - v * r)

    for i in range(component_num):                      # small & static
        k = consts_ref[i, 0]
        sqrt_abs = consts_ref[i, 1]
        inv_sqrt_abs = consts_ref[i, 2]
        half_lam = consts_ref[i, 3]                     # lambda_p / 2
        c1 = consts_ref[i, 4]                           # 1 + k*|p|^2
        k2p2 = consts_ref[i, 5]                         # k^2 * |p|^2
        two_k = consts_ref[i, 6]                        # 2k

        x_i = x_ref[0, i].astype(jnp.float32)           # (cc, TM), aligned slab
        p_i = p_ref[i]                                  # (cc, 1), broadcasts over lanes

        u2 = jnp.sum(x_i * x_i, axis=0, keepdims=True)               # (1, TM)
        inv_un = lax.rsqrt(jnp.maximum(u2, MIN_NORM * MIN_NORM))     # 1/|u|
        un = u2 * inv_un                                             # |u|
        arg = half_lam * un                                          # lambda*|u|/2

        # tan_k with a single transcendental path per component (scalar branch on k),
        # no EUP divides: tan = sin * recip(cos); 1/sqrt(|k|) folded in from SMEM.
        def _pos(v):
            sx = v * sqrt_abs
            return jnp.sin(sx) * _recip(jnp.cos(sx)) * inv_sqrt_abs

        def _nonpos(v):
            sx = jnp.clip(v * sqrt_abs, -15.0, 15.0)
            return jnp.where(k < 0, jnp.tanh(sx) * inv_sqrt_abs, v)  # k==0 -> identity

        t = lax.cond(k > 0, _pos, _nonpos, arg)                      # (1, TM)

        s = t * inv_un                                               # tan_k(.)/|u|
        y = x_i * s                                                  # second = tan_k * u/|u|
        px = jnp.sum(p_i * x_i, axis=0, keepdims=True)               # (1, TM)
        py = px * s                                                  # <p, y>
        y2 = u2 * (s * s)                                            # |y|^2

        coef_p = 1.0 - two_k * py - k * y2                           # (1, TM)
        num = coef_p * p_i + c1 * y                                  # (cc, TM)
        inv_den = _recip(jnp.maximum(1.0 - two_k * py + k2p2 * y2, MIN_NORM))
        o_ref[0, i] = (num * inv_den).astype(o_ref.dtype)            # full unmasked slab


# ----- wrapper ---------------------------------------------------------------------
def _round_up(a, b):
    return ((a + b - 1) // b) * b


def meta_exp_layer(x, curvature, location, *, component_num, target_step_bytes=2 << 20):
    """x: (N, C, H, W) (NCHW, like the PyTorch module); curvature: (component_num,);
    location: (component_num, C // component_num). Returns (N, C, H, W) in x.dtype."""
    N, C, H, W = x.shape
    P = component_num
    cc = C // P
    assert cc * P == C

    io_dtype = x.dtype                       # keep HBM I/O in the caller's dtype
    k = curvature.astype(jnp.float32)
    location = location.astype(jnp.float32)

    # --- hoisted per-component constants (tiny, plain JAX, grid-invariant) ---
    p = _expmap0(location, k[:, None])                           # (P, cc) base points
    p2 = jnp.sum(p * p, axis=-1)                                 # (P,)
    half_lam = 1.0 / jnp.maximum(1.0 + k * p2, MIN_NORM)         # lambda_p / 2
    sqrt_abs_k = jnp.sqrt(jnp.maximum(jnp.abs(k), MIN_NORM))
    consts = jnp.stack(
        [k, sqrt_abs_k, 1.0 / sqrt_abs_k, half_lam,
         1.0 + k * p2, (k * k) * p2, 2.0 * k],
        axis=-1,
    ).astype(jnp.float32)                                        # (P, 7) -> SMEM
    p3 = p.reshape(P, cc, 1).astype(jnp.float32)                 # (P, cc, 1) -> VMEM

    # --- lane-dense tiling: NCHW is already channel-major, no HBM transpose/pad ---
    HW = H * W
    x4 = x.reshape(N, P, cc, HW)                                 # free reshape

    itemsize = jnp.dtype(io_dtype).itemsize
    # generation-aware VMEM budget (v7x has 64 MiB physical VMEM; v5e/v6e 128 MiB)
    try:
        vmem_cap = int(getattr(pltpu.get_tpu_info(), "vmem_capacity_bytes", 64 << 20))
    except Exception:
        vmem_cap = 64 << 20
    if vmem_cap >= (100 << 20):            # v5e / v6e
        vmem_limit, buf_budget = 64 << 20, 40 << 20
    else:                                   # v7x (or unknown): stay conservative
        vmem_limit, buf_budget = 48 << 20, 28 << 20

    sub = 8 if itemsize >= 4 else (16 if itemsize == 2 else 32)
    cc_pad = _round_up(cc, sub)            # VMEM sublane padding per component slab
    # tile big enough that each grid step moves >= target_step_bytes of HBM traffic...
    tm_traffic = _round_up(max(128, target_step_bytes // max(1, 2 * C * itemsize)), 128)
    # ...but small enough that double-buffered in+out tiles fit the VMEM budget
    tm_vmem = max(128, (buf_budget // max(1, 4 * P * cc_pad * itemsize)) // 128 * 128)

    if HW <= 128:
        tm = HW                             # single full-extent block on the pixel axis
    else:
        tm = max(128, min(tm_traffic, tm_vmem, _round_up(HW, 128)))
        # keep both v7x TensorCores busy: >= 2 blocks along a parallel grid axis
        if N == 1 and pl.cdiv(HW, tm) < 2:
            tm = max(128, _round_up(pl.cdiv(HW, 2), 128))

    grid = (N, pl.cdiv(HW, tm))            # ragged last block; OOB writes are dropped

    kernel = functools.partial(_meta_exp_kernel, component_num=P)
    grid_spec = pltpu.PrefetchScalarGridSpec(
        num_scalar_prefetch=1,                                    # consts -> SMEM
        grid=grid,
        in_specs=[
            pl.BlockSpec((P, cc, 1), lambda n, m, consts: (0, 0, 0)),        # base points
            pl.BlockSpec((1, P, cc, tm), lambda n, m, consts: (n, 0, 0, m)),  # x pixel tile
        ],
        out_specs=pl.BlockSpec((1, P, cc, tm), lambda n, m, consts: (n, 0, 0, m)),
    )
    out = pl.pallas_call(
        kernel,
        out_shape=jax.ShapeDtypeStruct((N, P, cc, HW), io_dtype),
        grid_spec=grid_spec,
        compiler_params=pltpu.CompilerParams(
            dimension_semantics=("parallel", "parallel"),
            vmem_limit_bytes=vmem_limit,
        ),
    )(consts, p3, x4)

    return out.reshape(N, C, H, W)


# ----- pure-JAX reference (mirrors the PyTorch forward exactly) ---------------------
def meta_exp_layer_ref(x, curvature, location, component_num):
    N, C, H, W = x.shape
    cc = C // component_num
    outs = []
    for i in range(component_num):
        k = curvature[i]
        x_i = x[:, i * cc:(i + 1) * cc]                                 # (N, cc, H, W)
        x_i = jnp.transpose(x_i, (0, 3, 2, 1)).reshape(-1, cc)          # transpose(1,3).view
        p_i = _expmap0(location[i][None, :], k)
        y_i = _expmap(p_i, x_i, k)
        y_i = jnp.transpose(y_i.reshape(N, W, H, cc), (0, 3, 2, 1))
        outs.append(y_i)
    return jnp.concatenate(outs, axis=1)


if __name__ == "__main__":
    key = jax.random.PRNGKey(0)
    kx, kl = jax.random.split(key)

    N, C, H, W = 2, 16, 16, 16
    component_num = 4
    cc = C // component_num

    x = jax.random.normal(kx, (N, C, H, W), dtype=jnp.float32) * 0.1
    # PyTorch __init__ uses torch.zeros for `location`; small deterministic nonzero
    # values are used here so the full expmap0/expmap/mobius_add path is exercised.
    location = jax.random.normal(kl, (component_num, cc), dtype=jnp.float32) * 0.05
    # mixed curvatures: hyperbolic (<0), spherical (>0) and flat (==0)
    curvature = jnp.array([-1.0, 0.5, 0.0, -0.5], dtype=jnp.float32)

    out = meta_exp_layer(x, curvature, location, component_num=component_num)
    out = jax.block_until_ready(out)

    ref = meta_exp_layer_ref(x, curvature, location, component_num)
    assert out.shape == (N, C, H, W)
    np.testing.assert_allclose(np.asarray(out), np.asarray(ref), rtol=1e-3, atol=1e-4)
    print("KERNEL_OK")
</pallas_src>

<mosaic_0001>
module attributes {stable_mosaic.version = 11 : i64} {
  func.func @_meta_exp_kernel(%arg0: i32, %arg1: i32, %arg2: memref<4x7xf32, #tpu.memory_space<smem>>, %arg3: memref<4x4x1xf32, #tpu.memory_space<vmem>>, %arg4: memref<1x4x4x256xf32, #tpu.memory_space<vmem>>, %arg5: memref<1x4x4x256xf32, #tpu.memory_space<vmem>>) attributes {dimension_semantics = [#tpu.dimension_semantics<parallel>, #tpu.dimension_semantics<parallel>], iteration_bounds = array<i64: 2, 1>, scalar_prefetch = 1 : i64, scratch_operands = 0 : i64, tpu.core_type = #tpu.core_type<tc>, window_params = [{pipeline_mode = #tpu.pipeline_mode<synchronous>, transform_indices = @transform_0, window_bounds = array<i64: 4, 4, 1>}, {transform_indices = @transform_1, window_bounds = array<i64: 1, 4, 4, 256>}, {transform_indices = @transform_2, window_bounds = array<i64: 1, 4, 4, 256>}]} {
    %c0 = arith.constant 0 : index
    %c0_0 = arith.constant 0 : index
    %0 = memref.load %arg2[%c0, %c0_0] : memref<4x7xf32, #tpu.memory_space<smem>>
    %c0_1 = arith.constant 0 : index
    %c1 = arith.constant 1 : index
    %1 = memref.load %arg2[%c0_1, %c1] : memref<4x7xf32, #tpu.memory_space<smem>>
    %c0_2 = arith.constant 0 : index
    %c2 = arith.constant 2 : index
    %2 = memref.load %arg2[%c0_2, %c2] : memref<4x7xf32, #tpu.memory_space<smem>>
    %c0_3 = arith.constant 0 : index
    %c3 = arith.constant 3 : index
    %3 = memref.load %arg2[%c0_3, %c3] : memref<4x7xf32, #tpu.memory_space<smem>>
    %c0_4 = arith.constant 0 : index
    %c4 = arith.constant 4 : index
    %4 = memref.load %arg2[%c0_4, %c4] : memref<4x7xf32, #tpu.memory_space<smem>>
    %c0_5 = arith.constant 0 : index
    %c5 = arith.constant 5 : index
    %5 = memref.load %arg2[%c0_5, %c5] : memref<4x7xf32, #tpu.memory_space<smem>>
    %c0_6 = arith.constant 0 : index
    %c6 = arith.constant 6 : index
    %6 = memref.load %arg2[%c0_6, %c6] : memref<4x7xf32, #tpu.memory_space<smem>>
    %c0_7 = arith.constant 0 : index
    %c0_8 = arith.constant 0 : index
    %c0_9 = arith.constant 0 : index
    %c0_10 = arith.constant 0 : index
    %7 = vector.load %arg4[%c0_7, %c0_8, %c0_9, %c0_10] : memref<1x4x4x256xf32, #tpu.memory_space<vmem>>, vector<1x1x4x256xf32>
    %8 = vector.shape_cast %7 : vector<1x1x4x256xf32> to vector<4x256xf32>
    %c0_11 = arith.constant 0 : index
    %c0_12 = arith.constant 0 : index
    %c0_13 = arith.constant 0 : index
    %9 = vector.load %arg3[%c0_11, %c0_12, %c0_13] : memref<4x4x1xf32, #tpu.memory_space<vmem>>, vector<1x4x1xf32>
    %10 = vector.shape_cast %9 : vector<1x4x1xf32> to vector<4x1xf32>
    %11 = arith.mulf %8, %8 : vector<4x256xf32>
    %cst = arith.constant dense<0.000000e+00> : vector<256xf32>
    %12 = vector.multi_reduction <add>, %11, %cst [0] : vector<4x256xf32> to vector<256xf32>
    %13 = vector.shape_cast %12 : vector<256xf32> to vector<1x256xf32>
    %cst_14 = arith.constant 1.000000e-30 : f32
    %14 = vector.broadcast %cst_14 : f32 to vector<1x256xf32>
    %15 = arith.maximumf %13, %14 : vector<1x256xf32>
    %16 = math.rsqrt %15 : vector<1x256xf32>
    %17 = arith.mulf %13, %16 : vector<1x256xf32>
    %18 = vector.broadcast %3 : f32 to vector<1x256xf32>
    %19 = arith.mulf %18, %17 : vector<1x256xf32>
    %cst_15 = arith.constant 0.000000e+00 : f32
    %20 = arith.cmpf ogt, %0, %cst_15 : f32
    %21 = arith.extui %20 : i1 to i32
    %c0_i32 = arith.constant 0 : i32
    %22 = arith.cmpi ne, %21, %c0_i32 : i32
    %23 = scf.if %22 -> (vector<1x256xf32>) {
      %264 = vector.broadcast %1 : f32 to vector<1x256xf32>
      %265 = arith.mulf %19, %264 : vector<1x256xf32>
      %266 = math.sin %265 : vector<1x256xf32>
      %267 = math.cos %265 : vector<1x256xf32>
      %268 = tpu.reciprocal %267 {approx = true} : vector<1x256xf32> -> vector<1x256xf32>
      %269 = arith.mulf %267, %268 : vector<1x256xf32>
      %cst_127 = arith.constant 2.000000e+00 : f32
      %270 = vector.broadcast %cst_127 : f32 to vector<1x256xf32>
      %271 = arith.subf %270, %269 : vector<1x256xf32>
      %272 = arith.mulf %268, %271 : vector<1x256xf32>
      %273 = arith.mulf %266, %272 : vector<1x256xf32>
      %274 = vector.broadcast %2 : f32 to vector<1x256xf32>
      %275 = arith.mulf %273, %274 : vector<1x256xf32>
      scf.yield %275 : vector<1x256xf32>
    } else {
      %264 = vector.broadcast %1 : f32 to vector<1x256xf32>
      %265 = arith.mulf %19, %264 : vector<1x256xf32>
      %cst_127 = arith.constant -1.500000e+01 : f32
      %cst_128 = arith.constant 1.500000e+01 : f32
      %266 = vector.broadcast %cst_127 : f32 to vector<1x256xf32>
      %267 = arith.maximumf %266, %265 : vector<1x256xf32>
      %268 = vector.broadcast %cst_128 : f32 to vector<1x256xf32>
      %269 = arith.minimumf %268, %267 : vector<1x256xf32>
      %cst_129 = arith.constant 0.000000e+00 : f32
      %270 = arith.cmpf olt, %0, %cst_129 : f32
      %271 = math.tanh %269 : vector<1x256xf32>
      %272 = vector.broadcast %2 : f32 to vector<1x256xf32>
      %273 = arith.mulf %271, %272 : vector<1x256xf32>
      %274 = arith.select %270, %273, %19 : vector<1x256xf32>
      scf.yield %274 : vector<1x256xf32>
    }
    %24 = arith.mulf %23, %16 : vector<1x256xf32>
    %25 = vector.broadcast %24 : vector<1x256xf32> to vector<4x256xf32>
    %26 = arith.mulf %8, %25 : vector<4x256xf32>
    %27 = vector.broadcast %10 : vector<4x1xf32> to vector<4x256xf32>
    %28 = arith.mulf %27, %8 : vector<4x256xf32>
    %cst_16 = arith.constant dense<0.000000e+00> : vector<256xf32>
    %29 = vector.multi_reduction <add>, %28, %cst_16 [0] : vector<4x256xf32> to vector<256xf32>
    %30 = vector.shape_cast %29 : vector<256xf32> to vector<1x256xf32>
    %31 = arith.mulf %30, %24 : vector<1x256xf32>
    %32 = arith.mulf %24, %24 : vector<1x256xf32>
    %33 = arith.mulf %13, %32 : vector<1x256xf32>
    %34 = vector.broadcast %6 : f32 to vector<1x256xf32>
    %35 = arith.mulf %34, %31 : vector<1x256xf32>
    %cst_17 = arith.constant 1.000000e+00 : f32
    %36 = vector.broadcast %cst_17 : f32 to vector<1x256xf32>
    %37 = arith.subf %36, %35 : vector<1x256xf32>
    %38 = vector.broadcast %0 : f32 to vector<1x256xf32>
    %39 = arith.mulf %38, %33 : vector<1x256xf32>
    %40 = arith.subf %37, %39 : vector<1x256xf32>
    %41 = vector.broadcast %40 : vector<1x256xf32> to vector<4x256xf32>
    %42 = vector.broadcast %10 : vector<4x1xf32> to vector<4x256xf32>
    %43 = arith.mulf %41, %42 : vector<4x256xf32>
    %44 = vector.broadcast %4 : f32 to vector<4x256xf32>
    %45 = arith.mulf %44, %26 : vector<4x256xf32>
    %46 = arith.addf %43, %45 : vector<4x256xf32>
    %47 = vector.broadcast %6 : f32 to vector<1x256xf32>
    %48 = arith.mulf %47, %31 : vector<1x256xf32>
    %cst_18 = arith.constant 1.000000e+00 : f32
    %49 = vector.broadcast %cst_18 : f32 to vector<1x256xf32>
    %50 = arith.subf %49, %48 : vector<1x256xf32>
    %51 = vector.broadcast %5 : f32 to vector<1x256xf32>
    %52 = arith.mulf %51, %33 : vector<1x256xf32>
    %53 = arith.addf %50, %52 : vector<1x256xf32>
    %cst_19 = arith.constant 1.000000e-15 : f32
    %54 = vector.broadcast %cst_19 : f32 to vector<1x256xf32>
    %55 = arith.maximumf %53, %54 : vector<1x256xf32>
    %56 = tpu.reciprocal %55 {approx = true} : vector<1x256xf32> -> vector<1x256xf32>
    %57 = arith.mulf %55, %56 : vector<1x256xf32>
    %cst_20 = arith.constant 2.000000e+00 : f32
    %58 = vector.broadcast %cst_20 : f32 to vector<1x256xf32>
    %59 = arith.subf %58, %57 : vector<1x256xf32>
    %60 = arith.mulf %56, %59 : vector<1x256xf32>
    %61 = vector.broadcast %60 : vector<1x256xf32> to vector<4x256xf32>
    %62 = arith.mulf %46, %61 : vector<4x256xf32>
    %c0_21 = arith.constant 0 : index
    %c0_22 = arith.constant 0 : index
    %c0_23 = arith.constant 0 : index
    %c0_24 = arith.constant 0 : index
    %63 = vector.load %arg5[%c0_21, %c0_22, %c0_23, %c0_24] : memref<1x4x4x256xf32, #tpu.memory_space<vmem>>, vector<1x1x4x256xf32>
    %64 = vector.shape_cast %63 : vector<1x1x4x256xf32> to vector<4x256xf32>
    %65 = vector.shape_cast %62 : vector<4x256xf32> to vector<1x1x4x256xf32>
    tpu.vector_store %arg5[%c0_21, %c0_22, %c0_23, %c0_24], %65 {strides = array<i32>} : memref<1x4x4x256xf32, #tpu.memory_space<vmem>>, vector<1x1x4x256xf32>,
    %c1_25 = arith.constant 1 : index
    %c0_26 = arith.constant 0 : index
    %66 = memref.load %arg2[%c1_25, %c0_26] : memref<4x7xf32, #tpu.memory_space<smem>>
    %c1_27 = arith.constant 1 : index
    %c1_28 = arith.constant 1 : index
    %67 = memref.load %arg2[%c1_27, %c1_28] : memref<4x7xf32, #tpu.memory_space<smem>>
    %c1_29 = arith.constant 1 : index
    %c2_30 = arith.constant 2 : index
    %68 = memref.load %arg2[%c1_29, %c2_30] : memref<4x7xf32, #tpu.memory_space<smem>>
    %c1_31 = arith.constant 1 : index
    %c3_32 = arith.constant 3 : index
    %69 = memref.load %arg2[%c1_31, %c3_32] : memref<4x7xf32, #tpu.memory_space<smem>>
    %c1_33 = arith.constant 1 : index
    %c4_34 = arith.constant 4 : index
    %70 = memref.load %arg2[%c1_33, %c4_34] : memref<4x7xf32, #tpu.memory_space<smem>>
    %c1_35 = arith.constant 1 : index
    %c5_36 = arith.constant 5 : index
    %71 = memref.load %arg2[%c1_35, %c5_36] : memref<4x7xf32, #tpu.memory_space<smem>>
    %c1_37 = arith.constant 1 : index
    %c6_38 = arith.constant 6 : index
    %72 = memref.load %arg2[%c1_37, %c6_38] : memref<4x7xf32, #tpu.memory_space<smem>>
    %c0_39 = arith.constant 0 : index
    %c1_40 = arith.constant 1 : index
    %c0_41 = arith.constant 0 : index
    %c0_42 = arith.constant 0 : index
    %73 = vector.load %arg4[%c0_39, %c1_40, %c0_41, %c0_42] : memref<1x4x4x256xf32, #tpu.memory_space<vmem>>, vector<1x1x4x256xf32>
    %74 = vector.shape_cast %73 : vector<1x1x4x256xf32> to vector<4x256xf32>
    %c1_43 = arith.constant 1 : index
    %c0_44 = arith.constant 0 : index
    %c0_45 = arith.constant 0 : index
    %75 = vector.load %arg3[%c1_43, %c0_44, %c0_45] : memref<4x4x1xf32, #tpu.memory_space<vmem>>, vector<1x4x1xf32>
    %76 = vector.shape_cast %75 : vector<1x4x1xf32> to vector<4x1xf32>
    %77 = arith.mulf %74, %74 : vector<4x256xf32>
    %cst_46 = arith.constant dense<0.000000e+00> : vector<256xf32>
    %78 = vector.multi_reduction <add>, %77, %cst_46 [0] : vector<4x256xf32> to vector<256xf32>
    %79 = vector.shape_cast %78 : vector<256xf32> to vector<1x256xf32>
    %cst_47 = arith.constant 1.000000e-30 : f32
    %80 = vector.broadcast %cst_47 : f32 to vector<1x256xf32>
    %81 = arith.maximumf %79, %80 : vector<1x256xf32>
    %82 = math.rsqrt %81 : vector<1x256xf32>
    %83 = arith.mulf %79, %82 : vector<1x256xf32>
    %84 = vector.broadcast %69 : f32 to vector<1x256xf32>
    %85 = arith.mulf %84, %83 : vector<1x256xf32>
    %cst_48 = arith.constant 0.000000e+00 : f32
    %86 = arith.cmpf ogt, %66, %cst_48 : f32
    %87 = arith.extui %86 : i1 to i32
    %c0_i32_49 = arith.constant 0 : i32
    %88 = arith.cmpi ne, %87, %c0_i32_49 : i32
    %89 = scf.if %88 -> (vector<1x256xf32>) {
      %264 = vector.broadcast %67 : f32 to vector<1x256xf32>
      %265 = arith.mulf %85, %264 : vector<1x256xf32>
      %266 = math.sin %265 : vector<1x256xf32>
      %267 = math.cos %265 : vector<1x256xf32>
      %268 = tpu.reciprocal %267 {approx = true} : vector<1x256xf32> -> vector<1x256xf32>
      %269 = arith.mulf %267, %268 : vector<1x256xf32>
      %cst_127 = arith.constant 2.000000e+00 : f32
      %270 = vector.broadcast %cst_127 : f32 to vector<1x256xf32>
      %271 = arith.subf %270, %269 : vector<1x256xf32>
      %272 = arith.mulf %268, %271 : vector<1x256xf32>
      %273 = arith.mulf %266, %272 : vector<1x256xf32>
      %274 = vector.broadcast %68 : f32 to vector<1x256xf32>
      %275 = arith.mulf %273, %274 : vector<1x256xf32>
      scf.yield %275 : vector<1x256xf32>
    } else {
      %264 = vector.broadcast %67 : f32 to vector<1x256xf32>
      %265 = arith.mulf %85, %264 : vector<1x256xf32>
      %cst_127 = arith.constant -1.500000e+01 : f32
      %cst_128 = arith.constant 1.500000e+01 : f32
      %266 = vector.broadcast %cst_127 : f32 to vector<1x256xf32>
      %267 = arith.maximumf %266, %265 : vector<1x256xf32>
      %268 = vector.broadcast %cst_128 : f32 to vector<1x256xf32>
      %269 = arith.minimumf %268, %267 : vector<1x256xf32>
      %cst_129 = arith.constant 0.000000e+00 : f32
      %270 = arith.cmpf olt, %66, %cst_129 : f32
      %271 = math.tanh %269 : vector<1x256xf32>
      %272 = vector.broadcast %68 : f32 to vector<1x256xf32>
      %273 = arith.mulf %271, %272 : vector<1x256xf32>
      %274 = arith.select %270, %273, %85 : vector<1x256xf32>
      scf.yield %274 : vector<1x256xf32>
    }
    %90 = arith.mulf %89, %82 : vector<1x256xf32>
    %91 = vector.broadcast %90 : vector<1x256xf32> to vector<4x256xf32>
    %92 = arith.mulf %74, %91 : vector<4x256xf32>
    %93 = vector.broadcast %76 : vector<4x1xf32> to vector<4x256xf32>
    %94 = arith.mulf %93, %74 : vector<4x256xf32>
    %cst_50 = arith.constant dense<0.000000e+00> : vector<256xf32>
    %95 = vector.multi_reduction <add>, %94, %cst_50 [0] : vector<4x256xf32> to vector<256xf32>
    %96 = vector.shape_cast %95 : vector<256xf32> to vector<1x256xf32>
    %97 = arith.mulf %96, %90 : vector<1x256xf32>
    %98 = arith.mulf %90, %90 : vector<1x256xf32>
    %99 = arith.mulf %79, %98 : vector<1x256xf32>
    %100 = vector.broadcast %72 : f32 to vector<1x256xf32>
    %101 = arith.mulf %100, %97 : vector<1x256xf32>
    %cst_51 = arith.constant 1.000000e+00 : f32
    %102 = vector.broadcast %cst_51 : f32 to vector<1x256xf32>
    %103 = arith.subf %102, %101 : vector<1x256xf32>
    %104 = vector.broadcast %66 : f32 to vector<1x256xf32>
    %105 = arith.mulf %104, %99 : vector<1x256xf32>
    %106 = arith.subf %103, %105 : vector<1x256xf32>
    %107 = vector.broadcast %106 : vector<1x256xf32> to vector<4x256xf32>
    %108 = vector.broadcast %76 : vector<4x1xf32> to vector<4x256xf32>
    %109 = arith.mulf %107, %108 : vector<4x256xf32>
    %110 = vector.broadcast %70 : f32 to vector<4x256xf32>
    %111 = arith.mulf %110, %92 : vector<4x256xf32>
    %112 = arith.addf %109, %111 : vector<4x256xf32>
    %113 = vector.broadcast %72 : f32 to vector<1x256xf32>
    %114 = arith.mulf %113, %97 : vector<1x256xf32>
    %cst_52 = arith.constant 1.000000e+00 : f32
    %115 = vector.broadcast %cst_52 : f32 to vector<1x256xf32>
    %116 = arith.subf %115, %114 : vector<1x256xf32>
    %117 = vector.broadcast %71 : f32 to vector<1x256xf32>
    %118 = arith.mulf %117, %99 : vector<1x256xf32>
    %119 = arith.addf %116, %118 : vector<1x256xf32>
    %cst_53 = arith.constant 1.000000e-15 : f32
    %120 = vector.broadcast %cst_53 : f32 to vector<1x256xf32>
    %121 = arith.maximumf %119, %120 : vector<1x256xf32>
    %122 = tpu.reciprocal %121 {approx = true} : vector<1x256xf32> -> vector<1x256xf32>
    %123 = arith.mulf %121, %122 : vector<1x256xf32>
    %cst_54 = arith.constant 2.000000e+00 : f32
    %124 = vector.broadcast %cst_54 : f32 to vector<1x256xf32>
    %125 = arith.subf %124, %123 : vector<1x256xf32>
    %126 = arith.mulf %122, %125 : vector<1x256xf32>
    %127 = vector.broadcast %126 : vector<1x256xf32> to vector<4x256xf32>
    %128 = arith.mulf %112, %127 : vector<4x256xf32>
    %c0_55 = arith.constant 0 : index
    %c1_56 = arith.constant 1 : index
    %c0_57 = arith.constant 0 : index
    %c0_58 = arith.constant 0 : index
    %129 = vector.load %arg5[%c0_55, %c1_56, %c0_57, %c0_58] : memref<1x4x4x256xf32, #tpu.memory_space<vmem>>, vector<1x1x4x256xf32>
    %130 = vector.shape_cast %129 : vector<1x1x4x256xf32> to vector<4x256xf32>
    %131 = vector.shape_cast %128 : vector<4x256xf32> to vector<1x1x4x256xf32>
    tpu.vector_store %arg5[%c0_55, %c1_56, %c0_57, %c0_58], %131 {strides = array<i32>} : memref<1x4x4x256xf32, #tpu.memory_space<vmem>>, vector<1x1x4x256xf32>,
    %c2_59 = arith.constant 2 : index
    %c0_60 = arith.constant 0 : index
    %132 = memref.load %arg2[%c2_59, %c0_60] : memref<4x7xf32, #tpu.memory_space<smem>>
    %c2_61 = arith.constant 2 : index
    %c1_62 = arith.constant 1 : index
    %133 = memref.load %arg2[%c2_61, %c1_62] : memref<4x7xf32, #tpu.memory_space<smem>>
    %c2_63 = arith.constant 2 : index
    %c2_64 = arith.constant 2 : index
    %134 = memref.load %arg2[%c2_63, %c2_64] : memref<4x7xf32, #tpu.memory_space<smem>>
    %c2_65 = arith.constant 2 : index
    %c3_66 = arith.constant 3 : index
    %135 = memref.load %arg2[%c2_65, %c3_66] : memref<4x7xf32, #tpu.memory_space<smem>>
    %c2_67 = arith.constant 2 : index
    %c4_68 = arith.constant 4 : index
    %136 = memref.load %arg2[%c2_67, %c4_68] : memref<4x7xf32, #tpu.memory_space<smem>>
    %c2_69 = arith.constant 2 : index
    %c5_70 = arith.constant 5 : index
    %137 = memref.load %arg2[%c2_69, %c5_70] : memref<4x7xf32, #tpu.memory_space<smem>>
    %c2_71 = arith.constant 2 : index
    %c6_72 = arith.constant 6 : index
    %138 = memref.load %arg2[%c2_71, %c6_72] : memref<4x7xf32, #tpu.memory_space<smem>>
    %c0_73 = arith.constant 0 : index
    %c2_74 = arith.constant 2 : index
    %c0_75 = arith.constant 0 : index
    %c0_76 = arith.constant 0 : index
    %139 = vector.load %arg4[%c0_73, %c2_74, %c0_75, %c0_76] : memref<1x4x4x256xf32, #tpu.memory_space<vmem>>, vector<1x1x4x256xf32>
    %140 = vector.shape_cast %139 : vector<1x1x4x256xf32> to vector<4x256xf32>
    %c2_77 = arith.constant 2 : index
    %c0_78 = arith.constant 0 : index
    %c0_79 = arith.constant 0 : index
    %141 = vector.load %arg3[%c2_77, %c0_78, %c0_79] : memref<4x4x1xf32, #tpu.memory_space<vmem>>, vector<1x4x1xf32>
    %142 = vector.shape_cast %141 : vector<1x4x1xf32> to vector<4x1xf32>
    %143 = arith.mulf %140, %140 : vector<4x256xf32>
    %cst_80 = arith.constant dense<0.000000e+00> : vector<256xf32>
    %144 = vector.multi_reduction <add>, %143, %cst_80 [0] : vector<4x256xf32> to vector<256xf32>
    %145 = vector.shape_cast %144 : vector<256xf32> to vector<1x256xf32>
    %cst_81 = arith.constant 1.000000e-30 : f32
    %146 = vector.broadcast %cst_81 : f32 to vector<1x256xf32>
    %147 = arith.maximumf %145, %146 : vector<1x256xf32>
    %148 = math.rsqrt %147 : vector<1x256xf32>
    %149 = arith.mulf %145, %148 : vector<1x256xf32>
    %150 = vector.broadcast %135 : f32 to vector<1x256xf32>
    %151 = arith.mulf %150, %149 : vector<1x256xf32>
    %cst_82 = arith.constant 0.000000e+00 : f32
    %152 = arith.cmpf ogt, %132, %cst_82 : f32
    %153 = arith.extui %152 : i1 to i32
    %c0_i32_83 = arith.constant 0 : i32
    %154 = arith.cmpi ne, %153, %c0_i32_83 : i32
    %155 = scf.if %154 -> (vector<1x256xf32>) {
      %264 = vector.broadcast %133 : f32 to vector<1x256xf32>
      %265 = arith.mulf %151, %264 : vector<1x256xf32>
      %266 = math.sin %265 : vector<1x256xf32>
      %267 = math.cos %265 : vector<1x256xf32>
      %268 = tpu.reciprocal %267 {approx = true} : vector<1x256xf32> -> vector<1x256xf32>
      %269 = arith.mulf %267, %268 : vector<1x256xf32>
      %cst_127 = arith.constant 2.000000e+00 : f32
      %270 = vector.broadcast %cst_127 : f32 to vector<1x256xf32>
      %271 = arith.subf %270, %269 : vector<1x256xf32>
      %272 = arith.mulf %268, %271 : vector<1x256xf32>
      %273 = arith.mulf %266, %272 : vector<1x256xf32>
      %274 = vector.broadcast %134 : f32 to vector<1x256xf32>
      %275 = arith.mulf %273, %274 : vector<1x256xf32>
      scf.yield %275 : vector<1x256xf32>
    } else {
      %264 = vector.broadcast %133 : f32 to vector<1x256xf32>
      %265 = arith.mulf %151, %264 : vector<1x256xf32>
      %cst_127 = arith.constant -1.500000e+01 : f32
      %cst_128 = arith.constant 1.500000e+01 : f32
      %266 = vector.broadcast %cst_127 : f32 to vector<1x256xf32>
      %267 = arith.maximumf %266, %265 : vector<1x256xf32>
      %268 = vector.broadcast %cst_128 : f32 to vector<1x256xf32>
      %269 = arith.minimumf %268, %267 : vector<1x256xf32>
      %cst_129 = arith.constant 0.000000e+00 : f32
      %270 = arith.cmpf olt, %132, %cst_129 : f32
      %271 = math.tanh %269 : vector<1x256xf32>
      %272 = vector.broadcast %134 : f32 to vector<1x256xf32>
      %273 = arith.mulf %271, %272 : vector<1x256xf32>
      %274 = arith.select %270, %273, %151 : vector<1x256xf32>
      scf.yield %274 : vector<1x256xf32>
    }
    %156 = arith.mulf %155, %148 : vector<1x256xf32>
    %157 = vector.broadcast %156 : vector<1x256xf32> to vector<4x256xf32>
    %158 = arith.mulf %140, %157 : vector<4x256xf32>
    %159 = vector.broadcast %142 : vector<4x1xf32> to vector<4x256xf32>
    %160 = arith.mulf %159, %140 : vector<4x256xf32>
    %cst_84 = arith.constant dense<0.000000e+00> : vector<256xf32>
    %161 = vector.multi_reduction <add>, %160, %cst_84 [0] : vector<4x256xf32> to vector<256xf32>
    %162 = vector.shape_cast %161 : vector<256xf32> to vector<1x256xf32>
    %163 = arith.mulf %162, %156 : vector<1x256xf32>
    %164 = arith.mulf %156, %156 : vector<1x256xf32>
    %165 = arith.mulf %145, %164 : vector<1x256xf32>
    %166 = vector.broadcast %138 : f32 to vector<1x256xf32>
    %167 = arith.mulf %166, %163 : vector<1x256xf32>
    %cst_85 = arith.constant 1.000000e+00 : f32
    %168 = vector.broadcast %cst_85 : f32 to vector<1x256xf32>
    %169 = arith.subf %168, %167 : vector<1x256xf32>
    %170 = vector.broadcast %132 : f32 to vector<1x256xf32>
    %171 = arith.mulf %170, %165 : vector<1x256xf32>
    %172 = arith.subf %169, %171 : vector<1x256xf32>
    %173 = vector.broadcast %172 : vector<1x256xf32> to vector<4x256xf32>
    %174 = vector.broadcast %142 : vector<4x1xf32> to vector<4x256xf32>
    %175 = arith.mulf %173, %174 : vector<4x256xf32>
    %176 = vector.broadcast %136 : f32 to vector<4x256xf32>
    %177 = arith.mulf %176, %158 : vector<4x256xf32>
    %178 = arith.addf %175, %177 : vector<4x256xf32>
    %179 = vector.broadcast %138 : f32 to vector<1x256xf32>
    %180 = arith.mulf %179, %163 : vector<1x256xf32>
    %cst_86 = arith.constant 1.000000e+00 : f32
    %181 = vector.broadcast %cst_86 : f32 to vector<1x256xf32>
    %182 = arith.subf %181, %180 : vector<1x256xf32>
    %183 = vector.broadcast %137 : f32 to vector<1x256xf32>
    %184 = arith.mulf %183, %165 : vector<1x256xf32>
    %185 = arith.addf %182, %184 : vector<1x256xf32>
    %cst_87 = arith.constant 1.000000e-15 : f32
    %186 = vector.broadcast %cst_87 : f32 to vector<1x256xf32>
    %187 = arith.maximumf %185, %186 : vector<1x256xf32>
    %188 = tpu.reciprocal %187 {approx = true} : vector<1x256xf32> -> vector<1x256xf32>
    %189 = arith.mulf %187, %188 : vector<1x256xf32>
    %cst_88 = arith.constant 2.000000e+00 : f32
    %190 = vector.broadcast %cst_88 : f32 to vector<1x256xf32>
    %191 = arith.subf %190, %189 : vector<1x256xf32>
    %192 = arith.mulf %188, %191 : vector<1x256xf32>
    %193 = vector.broadcast %192 : vector<1x256xf32> to vector<4x256xf32>
    %194 = arith.mulf %178, %193 : vector<4x256xf32>
    %c0_89 = arith.constant 0 : index
    %c2_90 = arith.constant 2 : index
    %c0_91 = arith.constant 0 : index
    %c0_92 = arith.constant 0 : index
    %195 = vector.load %arg5[%c0_89, %c2_90, %c0_91, %c0_92] : memref<1x4x4x256xf32, #tpu.memory_space<vmem>>, vector<1x1x4x256xf32>
    %196 = vector.shape_cast %195 : vector<1x1x4x256xf32> to vector<4x256xf32>
    %197 = vector.shape_cast %194 : vector<4x256xf32> to vector<1x1x4x256xf32>
    tpu.vector_store %arg5[%c0_89, %c2_90, %c0_91, %c0_92], %197 {strides = array<i32>} : memref<1x4x4x256xf32, #tpu.memory_space<vmem>>, vector<1x1x4x256xf32>,
    %c3_93 = arith.constant 3 : index
    %c0_94 = arith.constant 0 : index
    %198 = memref.load %arg2[%c3_93, %c0_94] : memref<4x7xf32, #tpu.memory_space<smem>>
    %c3_95 = arith.constant 3 : index
    %c1_96 = arith.constant 1 : index
    %199 = memref.load %arg2[%c3_95, %c1_96] : memref<4x7xf32, #tpu.memory_space<smem>>
    %c3_97 = arith.constant 3 : index
    %c2_98 = arith.constant 2 : index
    %200 = memref.load %arg2[%c3_97, %c2_98] : memref<4x7xf32, #tpu.memory_space<smem>>
    %c3_99 = arith.constant 3 : index
    %c3_100 = arith.constant 3 : index
    %201 = memref.load %arg2[%c3_99, %c3_100] : memref<4x7xf32, #tpu.memory_space<smem>>
    %c3_101 = arith.constant 3 : index
    %c4_102 = arith.constant 4 : index
    %202 = memref.load %arg2[%c3_101, %c4_102] : memref<4x7xf32, #tpu.memory_space<smem>>
    %c3_103 = arith.constant 3 : index
    %c5_104 = arith.constant 5 : index
    %203 = memref.load %arg2[%c3_103, %c5_104] : memref<4x7xf32, #tpu.memory_space<smem>>
    %c3_105 = arith.constant 3 : index
    %c6_106 = arith.constant 6 : index
    %204 = memref.load %arg2[%c3_105, %c6_106] : memref<4x7xf32, #tpu.memory_space<smem>>
    %c0_107 = arith.constant 0 : index
    %c3_108 = arith.constant 3 : index
    %c0_109 = arith.constant 0 : index
    %c0_110 = arith.constant 0 : index
    %205 = vector.load %arg4[%c0_107, %c3_108, %c0_109, %c0_110] : memref<1x4x4x256xf32, #tpu.memory_space<vmem>>, vector<1x1x4x256xf32>
    %206 = vector.shape_cast %205 : vector<1x1x4x256xf32> to vector<4x256xf32>
    %c3_111 = arith.constant 3 : index
    %c0_112 = arith.constant 0 : index
    %c0_113 = arith.constant 0 : index
    %207 = vector.load %arg3[%c3_111, %c0_112, %c0_113] : memref<4x4x1xf32, #tpu.memory_space<vmem>>, vector<1x4x1xf32>
    %208 = vector.shape_cast %207 : vector<1x4x1xf32> to vector<4x1xf32>
    %209 = arith.mulf %206, %206 : vector<4x256xf32>
    %cst_114 = arith.constant dense<0.000000e+00> : vector<256xf32>
    %210 = vector.multi_reduction <add>, %209, %cst_114 [0] : vector<4x256xf32> to vector<256xf32>
    %211 = vector.shape_cast %210 : vector<256xf32> to vector<1x256xf32>
    %cst_115 = arith.constant 1.000000e-30 : f32
    %212 = vector.broadcast %cst_115 : f32 to vector<1x256xf32>
    %213 = arith.maximumf %211, %212 : vector<1x256xf32>
    %214 = math.rsqrt %213 : vector<1x256xf32>
    %215 = arith.mulf %211, %214 : vector<1x256xf32>
    %216 = vector.broadcast %201 : f32 to vector<1x256xf32>
    %217 = arith.mulf %216, %215 : vector<1x256xf32>
    %cst_116 = arith.constant 0.000000e+00 : f32
    %218 = arith.cmpf ogt, %198, %cst_116 : f32
    %219 = arith.extui %218 : i1 to i32
    %c0_i32_117 = arith.constant 0 : i32
    %220 = arith.cmpi ne, %219, %c0_i32_117 : i32
    %221 = scf.if %220 -> (vector<1x256xf32>) {
      %264 = vector.broadcast %199 : f32 to vector<1x256xf32>
      %265 = arith.mulf %217, %264 : vector<1x256xf32>
      %266 = math.sin %265 : vector<1x256xf32>
      %267 = math.cos %265 : vector<1x256xf32>
      %268 = tpu.reciprocal %267 {approx = true} : vector<1x256xf32> -> vector<1x256xf32>
      %269 = arith.mulf %267, %268 : vector<1x256xf32>
      %cst_127 = arith.constant 2.000000e+00 : f32
      %270 = vector.broadcast %cst_127 : f32 to vector<1x256xf32>
      %271 = arith.subf %270, %269 : vector<1x256xf32>
      %272 = arith.mulf %268, %271 : vector<1x256xf32>
      %273 = arith.mulf %266, %272 : vector<1x256xf32>
      %274 = vector.broadcast %200 : f32 to vector<1x256xf32>
      %275 = arith.mulf %273, %274 : vector<1x256xf32>
      scf.yield %275 : vector<1x256xf32>
    } else {
      %264 = vector.broadcast %199 : f32 to vector<1x256xf32>
      %265 = arith.mulf %217, %264 : vector<1x256xf32>
      %cst_127 = arith.constant -1.500000e+01 : f32
      %cst_128 = arith.constant 1.500000e+01 : f32
      %266 = vector.broadcast %cst_127 : f32 to vector<1x256xf32>
      %267 = arith.maximumf %266, %265 : vector<1x256xf32>
      %268 = vector.broadcast %cst_128 : f32 to vector<1x256xf32>
      %269 = arith.minimumf %268, %267 : vector<1x256xf32>
      %cst_129 = arith.constant 0.000000e+00 : f32
      %270 = arith.cmpf olt, %198, %cst_129 : f32
      %271 = math.tanh %269 : vector<1x256xf32>
      %272 = vector.broadcast %200 : f32 to vector<1x256xf32>
      %273 = arith.mulf %271, %272 : vector<1x256xf32>
      %274 = arith.select %270, %273, %217 : vector<1x256xf32>
      scf.yield %274 : vector<1x256xf32>
    }
    %222 = arith.mulf %221, %214 : vector<1x256xf32>
    %223 = vector.broadcast %222 : vector<1x256xf32> to vector<4x256xf32>
    %224 = arith.mulf %206, %223 : vector<4x256xf32>
    %225 = vector.broadcast %208 : vector<4x1xf32> to vector<4x256xf32>
    %226 = arith.mulf %225, %206 : vector<4x256xf32>
    %cst_118 = arith.constant dense<0.000000e+00> : vector<256xf32>
    %227 = vector.multi_reduction <add>, %226, %cst_118 [0] : vector<4x256xf32> to vector<256xf32>
    %228 = vector.shape_cast %227 : vector<256xf32> to vector<1x256xf32>
    %229 = arith.mulf %228, %222 : vector<1x256xf32>
    %230 = arith.mulf %222, %222 : vector<1x256xf32>
    %231 = arith.mulf %211, %230 : vector<1x256xf32>
    %232 = vector.broadcast %204 : f32 to vector<1x256xf32>
    %233 = arith.mulf %232, %229 : vector<1x256xf32>
    %cst_119 = arith.constant 1.000000e+00 : f32
    %234 = vector.broadcast %cst_119 : f32 to vector<1x256xf32>
    %235 = arith.subf %234, %233 : vector<1x256xf32>
    %236 = vector.broadcast %198 : f32 to vector<1x256xf32>
    %237 = arith.mulf %236, %231 : vector<1x256xf32>
    %238 = arith.subf %235, %237 : vector<1x256xf32>
    %239 = vector.broadcast %238 : vector<1x256xf32> to vector<4x256xf32>
    %240 = vector.broadcast %208 : vector<4x1xf32> to vector<4x256xf32>
    %241 = arith.mulf %239, %240 : vector<4x256xf32>
    %242 = vector.broadcast %202 : f32 to vector<4x256xf32>
    %243 = arith.mulf %242, %224 : vector<4x256xf32>
    %244 = arith.addf %241, %243 : vector<4x256xf32>
    %245 = vector.broadcast %204 : f32 to vector<1x256xf32>
    %246 = arith.mulf %245, %229 : vector<1x256xf32>
    %cst_120 = arith.constant 1.000000e+00 : f32
    %247 = vector.broadcast %cst_120 : f32 to vector<1x256xf32>
    %248 = arith.subf %247, %246 : vector<1x256xf32>
    %249 = vector.broadcast %203 : f32 to vector<1x256xf32>
    %250 = arith.mulf %249, %231 : vector<1x256xf32>
    %251 = arith.addf %248, %250 : vector<1x256xf32>
    %cst_121 = arith.constant 1.000000e-15 : f32
    %252 = vector.broadcast %cst_121 : f32 to vector<1x256xf32>
    %253 = arith.maximumf %251, %252 : vector<1x256xf32>
    %254 = tpu.reciprocal %253 {approx = true} : vector<1x256xf32> -> vector<1x256xf32>
    %255 = arith.mulf %253, %254 : vector<1x256xf32>
    %cst_122 = arith.constant 2.000000e+00 : f32
    %256 = vector.broadcast %cst_122 : f32 to vector<1x256xf32>
    %257 = arith.subf %256, %255 : vector<1x256xf32>
    %258 = arith.mulf %254, %257 : vector<1x256xf32>
    %259 = vector.broadcast %258 : vector<1x256xf32> to vector<4x256xf32>
    %260 = arith.mulf %244, %259 : vector<4x256xf32>
    %c0_123 = arith.constant 0 : index
    %c3_124 = arith.constant 3 : index
    %c0_125 = arith.constant 0 : index
    %c0_126 = arith.constant 0 : index
    %261 = vector.load %arg5[%c0_123, %c3_124, %c0_125, %c0_126] : memref<1x4x4x256xf32, #tpu.memory_space<vmem>>, vector<1x1x4x256xf32>
    %262 = vector.shape_cast %261 : vector<1x1x4x256xf32> to vector<4x256xf32>
    %263 = vector.shape_cast %260 : vector<4x256xf32> to vector<1x1x4x256xf32>
    tpu.vector_store %arg5[%c0_123, %c3_124, %c0_125, %c0_126], %263 {strides = array<i32>} : memref<1x4x4x256xf32, #tpu.memory_space<vmem>>, vector<1x1x4x256xf32>,
    return
  }
  func.func @transform_0(%arg0: i32, %arg1: i32, %arg2: memref<4x7xf32, #tpu.memory_space<smem>>) -> (i32, i32, i32) {
    %c0_i32 = arith.constant 0 : i32
    %c0_i32_0 = arith.constant 0 : i32
    %c0_i32_1 = arith.constant 0 : i32
    %c0_i32_2 = arith.constant 0 : i32
    return %c0_i32, %c0_i32_0, %c0_i32_1 : i32, i32, i32
  }
  func.func @transform_1(%arg0: i32, %arg1: i32, %arg2: memref<4x7xf32, #tpu.memory_space<smem>>) -> (i32, i32, i32, i32) {
    %c0_i32 = arith.constant 0 : i32
    %c0_i32_0 = arith.constant 0 : i32
    %c0_i32_1 = arith.constant 0 : i32
    return %arg0, %c0_i32, %c0_i32_0, %arg1 : i32, i32, i32, i32
  }
  func.func @transform_2(%arg0: i32, %arg1: i32, %arg2: memref<4x7xf32, #tpu.memory_space<smem>>) -> (i32, i32, i32, i32) {
    %c0_i32 = arith.constant 0 : i32
    %c0_i32_0 = arith.constant 0 : i32
    %c0_i32_1 = arith.constant 0 : i32
    return %arg0, %c0_i32, %c0_i32_0, %arg1 : i32, i32, i32, i32
  }
}

</mosaic_0001>

<llo_original>
// kernel: tpu_custom_call.1
$region0: #{tpu_custom_call.1}
  #allocation0 [shape = 'u32[]', space=smem, size = 0x4, offset = 0x4, fixed_abs, tag = 'smem constant byte address 0x4 - core index']
  #allocation1 [shape = 'u32[72,128]{1,0:T(1,128)}', space=vmem, size = 0x9000, scoped, tag = 'internal scratch']
  #allocation2 [shape = 's32[1]{0}', space=sflag, size = 0x4, scoped, tag = 'scoped memory for tpu_custom_call.1']
  #allocation3 [shape = 'u8[2048]{0}', space=smem, size = 0x800, scoped, tag = 'prefetched SMEM operand 0']
  %s0 = inlined_call_operand.vmem [shape: f32[4,7], index: 0, kind: input, shape index: {}]
  %s1 = inlined_call_operand.vmem [shape: f32[4,4,1], index: 1, kind: input, shape index: {}]
  %s2 = inlined_call_operand.hbm [shape: f32[2,4,4,256], index: 2, kind: input, shape index: {}]
  %s3 = inlined_call_operand.hbm [shape: f32[2,4,4,256], index: 3, kind: output, shape index: {}]
  %s4 = sld [smem:[#allocation0]]
  $region77: #{tpu_custom_call.1} parent=0
    _
  %s6 = ssub.s32 1, %s4
  %s7 = scalar_select 0, %s6, %s4
  %s9 = sshll.u32 %s0, 4
  %s10 = int_to_ptr.vmem [resolvable:$true] %s9
  %12 = dma.vmem_to_smem %s10, 64, [#allocation3], [#allocation2]
  %14 = dma.done [#allocation2], 64
  %15 = sfence
  $region1: #{tpu_custom_call.1} parent=0
    #allocation4 [shape = 'u8[32768]{0}', space=vmem, size = 0x8000, scoped, tag = 'input window, operand 2']
    #allocation5 [shape = 's32[2]{0}', space=sflag, size = 0x8, scoped, tag = 'scoped memory for tpu_custom_call.1']
    #allocation6 [shape = 's32[2]{0}', space=sflag, size = 0x8, scoped, tag = 'scoped memory for tpu_custom_call.1']
    #allocation7 [shape = 'u8[32768]{0}', space=vmem, size = 0x8000, scoped, tag = 'output window, operand 0']
    %16 = vsyncpa [#allocation5], 0
    %s17 = scalar_lea.sflag [#allocation5], 1
    %18 = vsyncpa %s17, 0
    %19 = vsyncpa [#allocation6], 0
    %s20 = scalar_lea.sflag [#allocation6], 1
    %21 = vsyncpa %s20, 0
    loop: start=0, step=1, limit=4
    $region2: #{tpu_custom_call.1} parent=1 // loop_pre_header
      _
    $region3: #{tpu_custom_call.1} parent=1 // loop_header
      %s23 = sphi 0, %s27
      %p24 = scmp.ge.s32.totalorder %s23, 4
      %s30 = sphi 0, %s42
      %s31 = sphi 0, %s38
      %s32 = sphi 0, %s30
      %s33 = sphi 0, %s31
      %s34 = sphi 0, %s32
      %s35 = sphi 0, %s33
      %s43 = sphi 0, %s43
      %s45 = sphi 0, %s43
      %s46 = sphi 0, %s45
      %s60 = sphi 0, %s46
      %s68 = sphi 0, %s70
      %s71 = sphi 0, %s68
      %s72 = sphi 0, %s71
      %s88 = sphi 0, %s72
      %s96 = sphi 0, %s98
      %s99 = sphi 0, %s96
      %s100 = sphi 0, %s99
      %s116 = sphi 0, %s100
    $region4: #{tpu_custom_call.1} parent=1 // loop_header_branch
      %26 = sbr.rel (%p24) target = $region8
    $region5: #{tpu_custom_call.1} parent=1 // loop_body
      %s28 = ssub.s32 %s23, 1
      %s29 = ssub.s32 %s23, 2
      %s36 = sadd.s32 1, %s31
      %p37 = scmp.ge.s32.totalorder %s36, 1
      %s38 = scalar_select %p37, 0, %s36
      %s39 = sadd.s32 1, %s30
      %s40 = scalar_select %p37, %s39, %s30
      %p41 = scmp.ge.s32.totalorder %s40, 2
      %s42 = scalar_select %p41, 0, %s40
      %s44 = sadd.s32 %s43, 1
      %p47 = scmp.eq.s32.totalorder %s23, 1
      %p48 = scmp.ne.s32.totalorder %s43, %s45
      %p49 = scmp.eq.s32.totalorder %s23, 0
      %p50 = por %p48, %p49
      %p51 = scmp.ne.s32.totalorder %s43, %s45
      %p52 = scmp.eq.s32.totalorder %s28, 1
      %p53 = por %p51, %p52
      %p54 = scmp.ne.s32.totalorder %s45, %s46
      %p55 = scmp.eq.s32.totalorder %s28, 0
      %p56 = por %p54, %p55
      %p57 = scmp.ne.s32.totalorder %s45, %s46
      %p58 = scmp.eq.s32.totalorder %s29, 1
      %p59 = por %p57, %p58
      %p61 = scmp.ne.s32.totalorder %s46, %s60
      %p62 = scmp.eq.s32.totalorder %s29, 0
      %p63 = por %p61, %p62
      %s64 = ssub.s32 %s30, %s42
      %s65 = ssub.s32 %s31, %s38
      %s66 = sor.u32 %s64, %s65
      %p67 = scmp.eq.s32.totalorder %s66, 0
      %s69 = sadd.s32 %s68, 1
      %s70 = scalar_select %p67, %s68, %s69
      %p73 = pneg %p67
      %p74 = scmp.eq.s32.totalorder %s23, 1
      %p75 = por %p73, %p74
      %p76 = scmp.ne.s32.totalorder %s68, %s71
      %p77 = scmp.eq.s32.totalorder %s23, 0
      %p78 = por %p76, %p77
      %p79 = scmp.ne.s32.totalorder %s68, %s71
      %p80 = scmp.eq.s32.totalorder %s28, 1
      %p81 = por %p79, %p80
      %p82 = scmp.ne.s32.totalorder %s71, %s72
      %p83 = scmp.eq.s32.totalorder %s28, 0
      %p84 = por %p82, %p83
      %p85 = scmp.ne.s32.totalorder %s71, %s72
      %p86 = scmp.eq.s32.totalorder %s29, 1
      %p87 = por %p85, %p86
      %p89 = scmp.ne.s32.totalorder %s72, %s88
      %p90 = scmp.eq.s32.totalorder %s29, 0
      %p91 = por %p89, %p90
      %s92 = ssub.s32 %s30, %s42
      %s93 = ssub.s32 %s31, %s38
      %s94 = sor.u32 %s92, %s93
      %p95 = scmp.eq.s32.totalorder %s94, 0
      %s97 = sadd.s32 %s96, 1
      %s98 = scalar_select %p95, %s96, %s97
      %p101 = pneg %p95
      %p102 = scmp.eq.s32.totalorder %s23, 1
      %p103 = por %p101, %p102
      %p104 = scmp.ne.s32.totalorder %s96, %s99
      %p105 = scmp.eq.s32.totalorder %s23, 0
      %p106 = por %p104, %p105
      %p107 = scmp.ne.s32.totalorder %s96, %s99
      %p108 = scmp.eq.s32.totalorder %s28, 1
      %p109 = por %p107, %p108
      %p110 = scmp.ne.s32.totalorder %s99, %s100
      %p111 = scmp.eq.s32.totalorder %s28, 0
      %p112 = por %p110, %p111
      %p113 = scmp.ne.s32.totalorder %s99, %s100
      %p114 = scmp.eq.s32.totalorder %s29, 1
      %p115 = por %p113, %p114
      %p117 = scmp.ne.s32.totalorder %s100, %s116
      %p118 = scmp.eq.s32.totalorder %s29, 0
      %p119 = por %p117, %p118
      %p120 = scmp.le.s32.totalorder 1, %s23
      %p121 = scmp.lt.s32.totalorder %s23, 3
      %p122 = pnand %p120, %p121
      %p123 = pneg %p122
      // Predicated region
      $region9: #{tpu_custom_call.1} parent=5 // pred_check
        _
      $region10: #{tpu_custom_call.1} parent=5 // pred_check_branch
        %125 = sbr.rel (%p122) target = $region12
      $region11: #{tpu_custom_call.1} parent=5 // pred_region
        %s126 = ssub.s32 %s23, 1
        // Predicated region
        $region13: #{tpu_custom_call.1} parent=11 // pred_check
          %p127 = pneg %p56
        $region14: #{tpu_custom_call.1} parent=11 // pred_check_branch
          %129 = sbr.rel (%p127) target = $region16
        $region15: #{tpu_custom_call.1} parent=11 // pred_region
          _
        $region16: #{tpu_custom_call.1} parent=11 // pred_fallthru
          _
      $region12: #{tpu_custom_call.1} parent=5 // pred_fallthru
        _
      %p130 = scmp.lt.s32.totalorder %s23, 2
      // Predicated region
      $region17: #{tpu_custom_call.1} parent=5 // pred_check
        %p131 = pneg %p130
      $region18: #{tpu_custom_call.1} parent=5 // pred_check_branch
        %133 = sbr.rel (%p131) target = $region20
      $region19: #{tpu_custom_call.1} parent=5 // pred_region
        // Predicated region
        $region21: #{tpu_custom_call.1} parent=19 // pred_check
          %p134 = pneg %p78
        $region22: #{tpu_custom_call.1} parent=19 // pred_check_branch
          %136 = sbr.rel (%p134) target = $region24
        $region23: #{tpu_custom_call.1} parent=19 // pred_region
          %s137 = sand.u32 %s68, 1
          %s138 = scalar_lea.sflag [#allocation5], %s137
          %s139 = sand.u32 %s68, 1
          %s140 = smul.addr %s139, 32
          %s141 = scalar_lea.vmem [#allocation4], %s140
          %s142 = smul.u32 2, %s31
          %144 = vsyncadd %s138, 0
          %s145 = smul.addr %s30, 8
          %s146 = sadd.s32 %s142, %s145
          %s147 = smul.addr %s146, 4
          %s148 = scalar_lea.hbm %s2, %s147
          %s149 = sshll.u32 %s148, 4
          %s150 = int_to_ptr.hbm [resolvable:$true] %s149
          %s151 = sshll.u32 %s141, 4
          %s152 = int_to_ptr.vmem [resolvable:$true] %s151
          %157 = dma.hbm_to_vmem [thread:$0]  %s150, 512, %s152, %s138, 128, 128, 8
        $region24: #{tpu_custom_call.1} parent=19 // pred_fallthru
          _
      $region20: #{tpu_custom_call.1} parent=5 // pred_fallthru
        _
      %p158 = scmp.le.s32.totalorder 1, %s23
      %p159 = scmp.lt.s32.totalorder %s23, 3
      %p160 = pnand %p158, %p159
      %p161 = pneg %p160
      // Predicated region
      $region25: #{tpu_custom_call.1} parent=5 // pred_check
        _
      $region26: #{tpu_custom_call.1} parent=5 // pred_check_branch
        %163 = sbr.rel (%p160) target = $region28
      $region27: #{tpu_custom_call.1} parent=5 // pred_region
        %s164 = ssub.s32 %s23, 1
        %s165 = sand.u32 %s71, 1
        %s166 = scalar_lea.sflag [#allocation5], %s165
        %s167 = sand.u32 %s71, 1
        %s168 = smul.addr %s167, 32
        %s169 = scalar_lea.vmem [#allocation4], %s168
        // Predicated region
        $region29: #{tpu_custom_call.1} parent=27 // pred_check
          %p170 = pneg %p84
        $region30: #{tpu_custom_call.1} parent=27 // pred_check_branch
          %172 = sbr.rel (%p170) target = $region32
        $region31: #{tpu_custom_call.1} parent=27 // pred_region
          %174 = dma.done %s166, 512
        $region32: #{tpu_custom_call.1} parent=27 // pred_fallthru
          _
        %p175 = pneg %p56
        %p176 = pneg %p53
        %s177 = sand.u32 %s71, 1
        %s178 = scalar_lea.sflag [#allocation5], %s177
        %s179 = sand.u32 %s71, 1
        %s180 = smul.addr %s179, 32
        %s181 = scalar_lea.vmem [#allocation4], %s180
        %p182 = pneg %p84
        %p183 = pneg %p81
        %p184 = pneg %p112
        %p185 = pneg %p109
        %s186 = sand.u32 %s99, 1
        %s187 = scalar_lea.sflag [#allocation6], %s186
        %s188 = sand.u32 %s99, 1
        %s189 = smul.addr %s188, 32
        %s190 = scalar_lea.vmem [#allocation7], %s189
        %s191 = smul.u32 2, %s33
        %s192 = smul.u32 2, %s33
        %s193 = sld [smem:[#allocation3]]
        %s194 = sld [smem:[#allocation3 + $0x1]]
        %s195 = sld [smem:[#allocation3 + $0x2]]
        %s196 = sld [smem:[#allocation3 + $0x3]]
        %s197 = sld [smem:[#allocation3 + $0x4]]
        %s198 = sld [smem:[#allocation3 + $0x5]]
        %s199 = sld [smem:[#allocation3 + $0x6]]
        %v200 = vld [vmem:[%s169] sm:$0xff]
        %v201 = vld [vmem:[%s1] sm:$0xf]
        %v202 = vmul.f32 %v200, %v200
        %204 = vst [vmem:[#allocation1] ss:$2 sm:$0xff] %v202
        %v205 = vld.sshfl [vmem:[#allocation1] sm:$0xff pattern:$0x75316420]
        %v206 = vld.sshfl [vmem:[#allocation1 + $0x8] sm:$0xff pattern:$0x75316420]
        %vm209 = vcmask 1043456
        %v210 = vsel %vm209, %v205, 0.0
        %v211 = vrot.slane %v210, 4
        %v212 = vadd.f32 %v210, %v211
        %v213 = vrot.slane %v212, 2
        %v214 = vadd.f32 %v212, %v213
        %v215 = vrot.slane %v214, 1
        %v216 = vadd.f32 %v214, %v215
        %v217 = vsel %vm209, %v206, 0.0
        %v218 = vrot.slane %v217, 4
        %v219 = vadd.f32 %v217, %v218
        %v220 = vrot.slane %v219, 2
        %v221 = vadd.f32 %v219, %v220
        %v222 = vrot.slane %v221, 1
        %v223 = vadd.f32 %v221, %v222
        %v224 = vmax.f32 %v216, 1e-30
        %v225 = vmax.f32 %v223, 1e-30
        %v226 = vrsqrt.pop %v224
        %v227 = vmul.f32 %v226, %v224
        %v228 = vmul.f32 %v227, %v226
        %v229 = vmul.f32 0.5, %v228
        %v230 = vsub.f32 1.5, %v229
        %v231 = vmul.f32 %v226, %v230
        %vm232 = vweird.f32 %v224
        %vm233 = vweird.f32 %v226
        %vm234 = vmor %vm232, %vm233
        %v235 = vsel %vm234, %v226, %v231
        %v236 = vrsqrt.pop %v225
        %v237 = vmul.f32 %v236, %v225
        %v238 = vmul.f32 %v237, %v236
        %v239 = vmul.f32 0.5, %v238
        %v240 = vsub.f32 1.5, %v239
        %v241 = vmul.f32 %v236, %v240
        %vm242 = vweird.f32 %v225
        %vm243 = vweird.f32 %v236
        %vm244 = vmor %vm242, %vm243
        %v245 = vsel %vm244, %v236, %v241
        %v246 = vmul.f32 %v216, %v235
        %v247 = vmul.f32 %v223, %v245
        %v248 = vstv %s196
        %v249 = vmul.f32 %v248, %v246
        %v250 = vmul.f32 %v248, %v247
        %p251 = scmp.gt.f32.partialorder %s193, 0.0
        // Predicated region
        $region33: #{tpu_custom_call.1} parent=27 // pred_check
          %p252 = pneg %p251
        $region34: #{tpu_custom_call.1} parent=27 // pred_check_branch
          %254 = sbr.rel (%p252) target = $region36
        $region35: #{tpu_custom_call.1} parent=27 // pred_region
          %v255 = vstv %s194
          %v256 = vmul.f32 %v249, %v255
          %v257 = vmul.f32 %v250, %v255
          %v258 = vand.u32 2147483647, %v256
          %vm259 = vcmp.le.f32.partialorder %v258, 0.7853982
          %vm260 = vcmp.lt.s32.totalorder %v256, 0
          %v261 = vand.u32 %v256, 2139095040
          %v262 = vshrl.u32 %v261, 23
          %v263 = vsub.s32 %v262, 127
          %v264 = vand.u32 2147483647, %v256
          %v265 = vand.u32 %v264, 8388607
          %v266 = vor.u32 %v265, 8388608
          %v267 = vsub.s32 0, %v266
          %v268 = vadd.s32 %v263, 1
          %vm269 = vcmp.gt.s32.totalorder %v268, 0
          %v270 = vsel %vm269, %v268, 0
          %v271 = vshrl.u32 %v270, 5
          %v272 = vand.u32 %v270, 31
          %v273 = vsub.s32 32, %v272
          %v274 = vshrl.u32 683565275, %v273
          %v275 = vshll.u32 683565275, %v272
          %v276 = vshrl.u32 2475754826, %v273
          %v277 = vor.u32 %v275, %v276
          %v278 = vshll.u32 2475754826, %v272
          %v279 = vshrl.u32 2131351028, %v273
          %v280 = vor.u32 %v278, %v279
          %v281 = vshll.u32 2131351028, %v272
          %v282 = vshrl.u32 2102212464, %v273
          %v283 = vor.u32 %v281, %v282
          %v284 = vshll.u32 2102212464, %v272
          %v285 = vshrl.u32 920167782, %v273
          %v286 = vor.u32 %v284, %v285
          %v287 = vshll.u32 920167782, %v272
          %v288 = vshrl.u32 1326507024, %v273
          %v289 = vor.u32 %v287, %v288
          %vm290 = vcmp.lt.s32.totalorder %v271, 1
          %vm291 = vcmp.lt.s32.totalorder %v271, 2
          %vm292 = vcmp.lt.s32.totalorder %v271, 3
          %vm293 = vcmp.lt.s32.totalorder %v271, 4
          %v294 = vsel %vm290, %v274, %v277
          %v295 = vsel %vm293, %v283, 2102212464
          %v296 = vsel %vm292, %v280, %v295
          %v297 = vsel %vm291, %v294, %v296
          %v298 = vsel %vm290, %v277, %v280
          %v299 = vsel %vm293, %v286, 920167782
          %v300 = vsel %vm292, %v283, %v299
          %v301 = vsel %vm291, %v298, %v300
          %v302 = vsel %vm290, %v280, %v283
          %v303 = vsel %vm293, %v289, 1326507024
          %v304 = vsel %vm292, %v286, %v303
          %v305 = vsel %vm291, %v302, %v304
          %v306 = vshll.u32 %v266, 8
          %v307 = vand.u32 %v306, 65535
          %v308 = vshrl.u32 %v306, 16
          %v309 = vand.u32 %v305, 65535
          %v310 = vshrl.u32 %v305, 16
          %v311 = vmul.u32 %v307, %v309
          %v312 = vmul.u32 %v307, %v310
          %v313 = vmul.u32 %v308, %v309
          %v314 = vmul.u32 %v308, %v310
          %v315 = vshll.u32 %v312, 16
          %v316 = vshrl.u32 %v312, 16
          %v317 = vshll.u32 %v313, 16
          %v318 = vshrl.u32 %v313, 16
          %vm319 = vc.u32 %v311, %v315
          %v320 = vsel %vm319, 1, 0
          %v321 = vadd.s32 %v311, %v315
          %v322 = vadd.s32 %v314, %v320
          %vm323 = vc.u32 %v321, %v317
          %v324 = vsel %vm323, 1, 0
          %v325 = vadd.s32 %v321, %v317
          %v326 = vadd.s32 %v322, %v324
          %v327 = vadd.s32 %v326, %v316
          %v328 = vadd.s32 %v327, %v318
          %v329 = vand.u32 %v306, 65535
          %v330 = vshrl.u32 %v306, 16
          %v331 = vand.u32 %v301, 65535
          %v332 = vshrl.u32 %v301, 16
          %v333 = vmul.u32 %v329, %v331
          %v334 = vmul.u32 %v329, %v332
          %v335 = vmul.u32 %v330, %v331
          %v336 = vmul.u32 %v330, %v332
          %v337 = vshll.u32 %v334, 16
          %v338 = vshrl.u32 %v334, 16
          %v339 = vshll.u32 %v335, 16
          %v340 = vshrl.u32 %v335, 16
          %vm341 = vc.u32 %v333, %v337
          %v342 = vsel %vm341, 1, 0
          %v343 = vadd.s32 %v333, %v337
          %v344 = vadd.s32 %v336, %v342
          %vm345 = vc.u32 %v343, %v339
          %v346 = vsel %vm345, 1, 0
          %v347 = vadd.s32 %v343, %v339
          %v348 = vadd.s32 %v344, %v346
          %v349 = vadd.s32 %v348, %v338
          %v350 = vadd.s32 %v349, %v340
          %v351 = vmul.u32 %v306, %v297
          %v352 = vadd.s32 %v328, %v347
          %vm353 = vc.u32 %v328, %v347
          %v354 = vadd.s32 %v350, 1
          %v355 = vsel %vm353, %v354, %v350
          %v356 = vadd.s32 %v351, %v355
          %v357 = vadd.s32 %v356, 536870912
          %v358 = vshrl.u32 %v357, 30
          %v359 = vshll.u32 %v358, 30
          %v360 = vsub.s32 %v356, %v359
          %vm361 = vcmp.lt.s32.totalorder %v360, 0
          %v362 = vsub.s32 0, %v360
          %v363 = vsel %vm361, %v362, %v360
          %v364 = vclz %v363
          %v365 = vsub.s32 %v364, 2
          %vm366 = vcmp.gt.s32.totalorder 0, %v365
          %v367 = vsel %vm366, 0, %v365
          %v368 = vsub.s32 32, %v367
          %v369 = vshll.u32 %v360, %v367
          %v370 = vshrl.u32 %v352, %v368
          %v371 = vor.u32 %v369, %v370
          %v372 = vsub.s32 4294967266, %v367
          %v373 = vadd.s32 %v372, 127
          %v374 = vshll.u32 %v373, 23
          %v375 = vor.u32 4788187, %v374
          %v376 = vand.u32 2147483647, %v375
          %v378 = vcvt.s32.f32 %v371
          %v379 = vmul.f32 %v378, %v376
          %v380 = vxor.u32 %v379, 2147483648
          %v381 = vsel %vm260, %v380, %v379
          %v382 = vsub.s32 4, %v358
          %v383 = vsel %vm260, %v382, %v358
          %v384 = vsel %vm259, %v256, %v381
          %v385 = vsel %vm259, 0, %v383
          %v386 = vmul.f32 %v384, %v384
          %v387 = vmul.f32 %v386, -0.001358992
          %v388 = vadd.f32 %v387, 0.041655596
          %v389 = vmul.f32 %v386, %v388
          %v390 = vadd.f32 %v389, -0.4999988
          %v391 = vmul.f32 %v386, %v390
          %v392 = vadd.f32 1.0, %v391
          %v393 = vmul.f32 %v384, %v384
          %v394 = vmul.f32 %v393, -0.00019511016
          %v395 = vadd.f32 %v394, 0.008332121
          %v396 = vmul.f32 %v393, %v395
          %v397 = vadd.f32 %v396, -0.16666654
          %v398 = vmul.f32 %v393, %v397
          %v399 = vadd.f32 %v398, 1.0
          %v400 = vmul.f32 %v399, %v384
          %vm401 = vweird.f32 %v256
          %v402 = vadd.s32 %v385, 3
          %v403 = vand.u32 %v402, 3
          %vm404 = vcmp.lt.s32.totalorder %v403, 2
          %vm405 = vcmp.eq.s32.totalorder %v403, 0
          %v406 = vxor.u32 %v400, 2147483648
          %v407 = vsel %vm405, %v392, %v406
          %vm408 = vcmp.eq.s32.totalorder %v403, 2
          %v409 = vxor.u32 %v392, 2147483648
          %v410 = vsel %vm408, %v409, %v400
          %v411 = vsel %vm404, %v407, %v410
          %v412 = vsel %vm401, nan, %v411
          %v413 = vand.u32 2147483647, %v257
          %vm414 = vcmp.le.f32.partialorder %v413, 0.7853982
          %vm415 = vcmp.lt.s32.totalorder %v257, 0
          %v416 = vand.u32 %v257, 2139095040
          %v417 = vshrl.u32 %v416, 23
          %v418 = vsub.s32 %v417, 127
          %v419 = vand.u32 2147483647, %v257
          %v420 = vand.u32 %v419, 8388607
          %v421 = vor.u32 %v420, 8388608
          %v422 = vsub.s32 0, %v421
          %v423 = vadd.s32 %v418, 1
          %vm424 = vcmp.gt.s32.totalorder %v423, 0
          %v425 = vsel %vm424, %v423, 0
          %v426 = vshrl.u32 %v425, 5
          %v427 = vand.u32 %v425, 31
          %v428 = vsub.s32 32, %v427
          %v429 = vshrl.u32 683565275, %v428
          %v430 = vshll.u32 683565275, %v427
          %v431 = vshrl.u32 2475754826, %v428
          %v432 = vor.u32 %v430, %v431
          %v433 = vshll.u32 2475754826, %v427
          %v434 = vshrl.u32 2131351028, %v428
          %v435 = vor.u32 %v433, %v434
          %v436 = vshll.u32 2131351028, %v427
          %v437 = vshrl.u32 2102212464, %v428
          %v438 = vor.u32 %v436, %v437
          %v439 = vshll.u32 2102212464, %v427
          %v440 = vshrl.u32 920167782, %v428
          %v441 = vor.u32 %v439, %v440
          %v442 = vshll.u32 920167782, %v427
          %v443 = vshrl.u32 1326507024, %v428
          %v444 = vor.u32 %v442, %v443
          %vm445 = vcmp.lt.s32.totalorder %v426, 1
          %vm446 = vcmp.lt.s32.totalorder %v426, 2
          %vm447 = vcmp.lt.s32.totalorder %v426, 3
          %vm448 = vcmp.lt.s32.totalorder %v426, 4
          %v449 = vsel %vm445, %v429, %v432
          %v450 = vsel %vm448, %v438, 2102212464
          %v451 = vsel %vm447, %v435, %v450
          %v452 = vsel %vm446, %v449, %v451
          %v453 = vsel %vm445, %v432, %v435
          %v454 = vsel %vm448, %v441, 920167782
          %v455 = vsel %vm447, %v438, %v454
          %v456 = vsel %vm446, %v453, %v455
          %v457 = vsel %vm445, %v435, %v438
          %v458 = vsel %vm448, %v444, 1326507024
          %v459 = vsel %vm447, %v441, %v458
          %v460 = vsel %vm446, %v457, %v459
          %v461 = vshll.u32 %v421, 8
          %v462 = vand.u32 %v461, 65535
          %v463 = vshrl.u32 %v461, 16
          %v464 = vand.u32 %v460, 65535
          %v465 = vshrl.u32 %v460, 16
          %v466 = vmul.u32 %v462, %v464
          %v467 = vmul.u32 %v462, %v465
          %v468 = vmul.u32 %v463, %v464
          %v469 = vmul.u32 %v463, %v465
          %v470 = vshll.u32 %v467, 16
          %v471 = vshrl.u32 %v467, 16
          %v472 = vshll.u32 %v468, 16
          %v473 = vshrl.u32 %v468, 16
          %vm474 = vc.u32 %v466, %v470
          %v475 = vsel %vm474, 1, 0
          %v476 = vadd.s32 %v466, %v470
          %v477 = vadd.s32 %v469, %v475
          %vm478 = vc.u32 %v476, %v472
          %v479 = vsel %vm478, 1, 0
          %v480 = vadd.s32 %v476, %v472
          %v481 = vadd.s32 %v477, %v479
          %v482 = vadd.s32 %v481, %v471
          %v483 = vadd.s32 %v482, %v473
          %v484 = vand.u32 %v461, 65535
          %v485 = vshrl.u32 %v461, 16
          %v486 = vand.u32 %v456, 65535
          %v487 = vshrl.u32 %v456, 16
          %v488 = vmul.u32 %v484, %v486
          %v489 = vmul.u32 %v484, %v487
          %v490 = vmul.u32 %v485, %v486
          %v491 = vmul.u32 %v485, %v487
          %v492 = vshll.u32 %v489, 16
          %v493 = vshrl.u32 %v489, 16
          %v494 = vshll.u32 %v490, 16
          %v495 = vshrl.u32 %v490, 16
          %vm496 = vc.u32 %v488, %v492
          %v497 = vsel %vm496, 1, 0
          %v498 = vadd.s32 %v488, %v492
          %v499 = vadd.s32 %v491, %v497
          %vm500 = vc.u32 %v498, %v494
          %v501 = vsel %vm500, 1, 0
          %v502 = vadd.s32 %v498, %v494
          %v503 = vadd.s32 %v499, %v501
          %v504 = vadd.s32 %v503, %v493
          %v505 = vadd.s32 %v504, %v495
          %v506 = vmul.u32 %v461, %v452
          %v507 = vadd.s32 %v483, %v502
          %vm508 = vc.u32 %v483, %v502
          %v509 = vadd.s32 %v505, 1
          %v510 = vsel %vm508, %v509, %v505
          %v511 = vadd.s32 %v506, %v510
          %v512 = vadd.s32 %v511, 536870912
          %v513 = vshrl.u32 %v512, 30
          %v514 = vshll.u32 %v513, 30
          %v515 = vsub.s32 %v511, %v514
          %vm516 = vcmp.lt.s32.totalorder %v515, 0
          %v517 = vsub.s32 0, %v515
          %v518 = vsel %vm516, %v517, %v515
          %v519 = vclz %v518
          %v520 = vsub.s32 %v519, 2
          %vm521 = vcmp.gt.s32.totalorder 0, %v520
          %v522 = vsel %vm521, 0, %v520
          %v523 = vsub.s32 32, %v522
          %v524 = vshll.u32 %v515, %v522
          %v525 = vshrl.u32 %v507, %v523
          %v526 = vor.u32 %v524, %v525
          %v527 = vsub.s32 4294967266, %v522
          %v528 = vadd.s32 %v527, 127
          %v529 = vshll.u32 %v528, 23
          %v530 = vor.u32 4788187, %v529
          %v531 = vand.u32 2147483647, %v530
          %v533 = vcvt.s32.f32 %v526
          %v534 = vmul.f32 %v533, %v531
          %v535 = vxor.u32 %v534, 2147483648
          %v536 = vsel %vm415, %v535, %v534
          %v537 = vsub.s32 4, %v513
          %v538 = vsel %vm415, %v537, %v513
          %v539 = vsel %vm414, %v257, %v536
          %v540 = vsel %vm414, 0, %v538
          %v541 = vmul.f32 %v539, %v539
          %v542 = vmul.f32 %v541, -0.001358992
          %v543 = vadd.f32 %v542, 0.041655596
          %v544 = vmul.f32 %v541, %v543
          %v545 = vadd.f32 %v544, -0.4999988
          %v546 = vmul.f32 %v541, %v545
          %v547 = vadd.f32 1.0, %v546
          %v548 = vmul.f32 %v539, %v539
          %v549 = vmul.f32 %v548, -0.00019511016
          %v550 = vadd.f32 %v549, 0.008332121
          %v551 = vmul.f32 %v548, %v550
          %v552 = vadd.f32 %v551, -0.16666654
          %v553 = vmul.f32 %v548, %v552
          %v554 = vadd.f32 %v553, 1.0
          %v555 = vmul.f32 %v554, %v539
          %vm556 = vweird.f32 %v257
          %v557 = vadd.s32 %v540, 3
          %v558 = vand.u32 %v557, 3
          %vm559 = vcmp.lt.s32.totalorder %v558, 2
          %vm560 = vcmp.eq.s32.totalorder %v558, 0
          %v561 = vxor.u32 %v555, 2147483648
          %v562 = vsel %vm560, %v547, %v561
          %vm563 = vcmp.eq.s32.totalorder %v558, 2
          %v564 = vxor.u32 %v547, 2147483648
          %v565 = vsel %vm563, %v564, %v555
          %v566 = vsel %vm559, %v562, %v565
          %v567 = vsel %vm556, nan, %v566
          %v568 = vand.u32 2147483647, %v256
          %vm569 = vcmp.le.f32.partialorder %v568, 0.7853982
          %vm570 = vcmp.lt.s32.totalorder %v256, 0
          %v571 = vand.u32 %v256, 2139095040
          %v572 = vshrl.u32 %v571, 23
          %v573 = vsub.s32 %v572, 127
          %v574 = vand.u32 2147483647, %v256
          %v575 = vand.u32 %v574, 8388607
          %v576 = vor.u32 %v575, 8388608
          %v577 = vsub.s32 0, %v576
          %v578 = vadd.s32 %v573, 1
          %vm579 = vcmp.gt.s32.totalorder %v578, 0
          %v580 = vsel %vm579, %v578, 0
          %v581 = vshrl.u32 %v580, 5
          %v582 = vand.u32 %v580, 31
          %v583 = vsub.s32 32, %v582
          %v584 = vshrl.u32 683565275, %v583
          %v585 = vshll.u32 683565275, %v582
          %v586 = vshrl.u32 2475754826, %v583
          %v587 = vor.u32 %v585, %v586
          %v588 = vshll.u32 2475754826, %v582
          %v589 = vshrl.u32 2131351028, %v583
          %v590 = vor.u32 %v588, %v589
          %v591 = vshll.u32 2131351028, %v582
          %v592 = vshrl.u32 2102212464, %v583
          %v593 = vor.u32 %v591, %v592
          %v594 = vshll.u32 2102212464, %v582
          %v595 = vshrl.u32 920167782, %v583
          %v596 = vor.u32 %v594, %v595
          %v597 = vshll.u32 920167782, %v582
          %v598 = vshrl.u32 1326507024, %v583
          %v599 = vor.u32 %v597, %v598
          %vm600 = vcmp.lt.s32.totalorder %v581, 1
          %vm601 = vcmp.lt.s32.totalorder %v581, 2
          %vm602 = vcmp.lt.s32.totalorder %v581, 3
          %vm603 = vcmp.lt.s32.totalorder %v581, 4
          %v604 = vsel %vm600, %v584, %v587
          %v605 = vsel %vm603, %v593, 2102212464
          %v606 = vsel %vm602, %v590, %v605
          %v607 = vsel %vm601, %v604, %v606
          %v608 = vsel %vm600, %v587, %v590
          %v609 = vsel %vm603, %v596, 920167782
          %v610 = vsel %vm602, %v593, %v609
          %v611 = vsel %vm601, %v608, %v610
          %v612 = vsel %vm600, %v590, %v593
          %v613 = vsel %vm603, %v599, 1326507024
          %v614 = vsel %vm602, %v596, %v613
          %v615 = vsel %vm601, %v612, %v614
          %v616 = vshll.u32 %v576, 8
          %v617 = vand.u32 %v616, 65535
          %v618 = vshrl.u32 %v616, 16
          %v619 = vand.u32 %v615, 65535
          %v620 = vshrl.u32 %v615, 16
          %v621 = vmul.u32 %v617, %v619
          %v622 = vmul.u32 %v617, %v620
          %v623 = vmul.u32 %v618, %v619
          %v624 = vmul.u32 %v618, %v620
          %v625 = vshll.u32 %v622, 16
          %v626 = vshrl.u32 %v622, 16
          %v627 = vshll.u32 %v623, 16
          %v628 = vshrl.u32 %v623, 16
          %vm629 = vc.u32 %v621, %v625
          %v630 = vsel %vm629, 1, 0
          %v631 = vadd.s32 %v621, %v625
          %v632 = vadd.s32 %v624, %v630
          %vm633 = vc.u32 %v631, %v627
          %v634 = vsel %vm633, 1, 0
          %v635 = vadd.s32 %v631, %v627
          %v636 = vadd.s32 %v632, %v634
          %v637 = vadd.s32 %v636, %v626
          %v638 = vadd.s32 %v637, %v628
          %v639 = vand.u32 %v616, 65535
          %v640 = vshrl.u32 %v616, 16
          %v641 = vand.u32 %v611, 65535
          %v642 = vshrl.u32 %v611, 16
          %v643 = vmul.u32 %v639, %v641
          %v644 = vmul.u32 %v639, %v642
          %v645 = vmul.u32 %v640, %v641
          %v646 = vmul.u32 %v640, %v642
          %v647 = vshll.u32 %v644, 16
          %v648 = vshrl.u32 %v644, 16
          %v649 = vshll.u32 %v645, 16
          %v650 = vshrl.u32 %v645, 16
          %vm651 = vc.u32 %v643, %v647
          %v652 = vsel %vm651, 1, 0
          %v653 = vadd.s32 %v643, %v647
          %v654 = vadd.s32 %v646, %v652
          %vm655 = vc.u32 %v653, %v649
          %v656 = vsel %vm655, 1, 0
          %v657 = vadd.s32 %v653, %v649
          %v658 = vadd.s32 %v654, %v656
          %v659 = vadd.s32 %v658, %v648
          %v660 = vadd.s32 %v659, %v650
          %v661 = vmul.u32 %v616, %v607
          %v662 = vadd.s32 %v638, %v657
          %vm663 = vc.u32 %v638, %v657
          %v664 = vadd.s32 %v660, 1
          %v665 = vsel %vm663, %v664, %v660
          %v666 = vadd.s32 %v661, %v665
          %v667 = vadd.s32 %v666, 536870912
          %v668 = vshrl.u32 %v667, 30
          %v669 = vshll.u32 %v668, 30
          %v670 = vsub.s32 %v666, %v669
          %vm671 = vcmp.lt.s32.totalorder %v670, 0
          %v672 = vsub.s32 0, %v670
          %v673 = vsel %vm671, %v672, %v670
          %v674 = vclz %v673
          %v675 = vsub.s32 %v674, 2
          %vm676 = vcmp.gt.s32.totalorder 0, %v675
          %v677 = vsel %vm676, 0, %v675
          %v678 = vsub.s32 32, %v677
          %v679 = vshll.u32 %v670, %v677
          %v680 = vshrl.u32 %v662, %v678
          %v681 = vor.u32 %v679, %v680
          %v682 = vsub.s32 4294967266, %v677
          %v683 = vadd.s32 %v682, 127
          %v684 = vshll.u32 %v683, 23
          %v685 = vor.u32 4788187, %v684
          %v686 = vand.u32 2147483647, %v685
          %v688 = vcvt.s32.f32 %v681
          %v689 = vmul.f32 %v688, %v686
          %v690 = vxor.u32 %v689, 2147483648
          %v691 = vsel %vm570, %v690, %v689
          %v692 = vsub.s32 4, %v668
          %v693 = vsel %vm570, %v692, %v668
          %v694 = vsel %vm569, %v256, %v691
          %v695 = vsel %vm569, 0, %v693
          %v696 = vmul.f32 %v694, %v694
          %v697 = vmul.f32 %v696, -0.001358992
          %v698 = vadd.f32 %v697, 0.041655596
          %v699 = vmul.f32 %v696, %v698
          %v700 = vadd.f32 %v699, -0.4999988
          %v701 = vmul.f32 %v696, %v700
          %v702 = vadd.f32 1.0, %v701
          %v703 = vmul.f32 %v694, %v694
          %v704 = vmul.f32 %v703, -0.00019511016
          %v705 = vadd.f32 %v704, 0.008332121
          %v706 = vmul.f32 %v703, %v705
          %v707 = vadd.f32 %v706, -0.16666654
          %v708 = vmul.f32 %v703, %v707
          %v709 = vadd.f32 %v708, 1.0
          %v710 = vmul.f32 %v709, %v694
          %vm711 = vweird.f32 %v256
          %v712 = vand.u32 %v695, 3
          %vm713 = vcmp.lt.s32.totalorder %v712, 2
          %vm714 = vcmp.eq.s32.totalorder %v712, 0
          %v715 = vxor.u32 %v710, 2147483648
          %v716 = vsel %vm714, %v702, %v715
          %vm717 = vcmp.eq.s32.totalorder %v712, 2
          %v718 = vxor.u32 %v702, 2147483648
          %v719 = vsel %vm717, %v718, %v710
          %v720 = vsel %vm713, %v716, %v719
          %v721 = vsel %vm711, nan, %v720
          %v722 = vand.u32 2147483647, %v257
          %vm723 = vcmp.le.f32.partialorder %v722, 0.7853982
          %vm724 = vcmp.lt.s32.totalorder %v257, 0
          %v725 = vand.u32 %v257, 2139095040
          %v726 = vshrl.u32 %v725, 23
          %v727 = vsub.s32 %v726, 127
          %v728 = vand.u32 2147483647, %v257
          %v729 = vand.u32 %v728, 8388607
          %v730 = vor.u32 %v729, 8388608
          %v731 = vsub.s32 0, %v730
          %v732 = vadd.s32 %v727, 1
          %vm733 = vcmp.gt.s32.totalorder %v732, 0
          %v734 = vsel %vm733, %v732, 0
          %v735 = vshrl.u32 %v734, 5
          %v736 = vand.u32 %v734, 31
          %v737 = vsub.s32 32, %v736
          %v738 = vshrl.u32 683565275, %v737
          %v739 = vshll.u32 683565275, %v736
          %v740 = vshrl.u32 2475754826, %v737
          %v741 = vor.u32 %v739, %v740
          %v742 = vshll.u32 2475754826, %v736
          %v743 = vshrl.u32 2131351028, %v737
          %v744 = vor.u32 %v742, %v743
          %v745 = vshll.u32 2131351028, %v736
          %v746 = vshrl.u32 2102212464, %v737
          %v747 = vor.u32 %v745, %v746
          %v748 = vshll.u32 2102212464, %v736
          %v749 = vshrl.u32 920167782, %v737
          %v750 = vor.u32 %v748, %v749
          %v751 = vshll.u32 920167782, %v736
          %v752 = vshrl.u32 1326507024, %v737
          %v753 = vor.u32 %v751, %v752
          %vm754 = vcmp.lt.s32.totalorder %v735, 1
          %vm755 = vcmp.lt.s32.totalorder %v735, 2
          %vm756 = vcmp.lt.s32.totalorder %v735, 3
          %vm757 = vcmp.lt.s32.totalorder %v735, 4
          %v758 = vsel %vm754, %v738, %v741
          %v759 = vsel %vm757, %v747, 2102212464
          %v760 = vsel %vm756, %v744, %v759
          %v761 = vsel %vm755, %v758, %v760
          %v762 = vsel %vm754, %v741, %v744
          %v763 = vsel %vm757, %v750, 920167782
          %v764 = vsel %vm756, %v747, %v763
          %v765 = vsel %vm755, %v762, %v764
          %v766 = vsel %vm754, %v744, %v747
          %v767 = vsel %vm757, %v753, 1326507024
          %v768 = vsel %vm756, %v750, %v767
          %v769 = vsel %vm755, %v766, %v768
          %v770 = vshll.u32 %v730, 8
          %v771 = vand.u32 %v770, 65535
          %v772 = vshrl.u32 %v770, 16
          %v773 = vand.u32 %v769, 65535
          %v774 = vshrl.u32 %v769, 16
          %v775 = vmul.u32 %v771, %v773
          %v776 = vmul.u32 %v771, %v774
          %v777 = vmul.u32 %v772, %v773
          %v778 = vmul.u32 %v772, %v774
          %v779 = vshll.u32 %v776, 16
          %v780 = vshrl.u32 %v776, 16
          %v781 = vshll.u32 %v777, 16
          %v782 = vshrl.u32 %v777, 16
          %vm783 = vc.u32 %v775, %v779
          %v784 = vsel %vm783, 1, 0
          %v785 = vadd.s32 %v775, %v779
          %v786 = vadd.s32 %v778, %v784
          %vm787 = vc.u32 %v785, %v781
          %v788 = vsel %vm787, 1, 0
          %v789 = vadd.s32 %v785, %v781
          %v790 = vadd.s32 %v786, %v788
          %v791 = vadd.s32 %v790, %v780
          %v792 = vadd.s32 %v791, %v782
          %v793 = vand.u32 %v770, 65535
          %v794 = vshrl.u32 %v770, 16
          %v795 = vand.u32 %v765, 65535
          %v796 = vshrl.u32 %v765, 16
          %v797 = vmul.u32 %v793, %v795
          %v798 = vmul.u32 %v793, %v796
          %v799 = vmul.u32 %v794, %v795
          %v800 = vmul.u32 %v794, %v796
          %v801 = vshll.u32 %v798, 16
          %v802 = vshrl.u32 %v798, 16
          %v803 = vshll.u32 %v799, 16
          %v804 = vshrl.u32 %v799, 16
          %vm805 = vc.u32 %v797, %v801
          %v806 = vsel %vm805, 1, 0
          %v807 = vadd.s32 %v797, %v801
          %v808 = vadd.s32 %v800, %v806
          %vm809 = vc.u32 %v807, %v803
          %v810 = vsel %vm809, 1, 0
          %v811 = vadd.s32 %v807, %v803
          %v812 = vadd.s32 %v808, %v810
          %v813 = vadd.s32 %v812, %v802
          %v814 = vadd.s32 %v813, %v804
          %v815 = vmul.u32 %v770, %v761
          %v816 = vadd.s32 %v792, %v811
          %vm817 = vc.u32 %v792, %v811
          %v818 = vadd.s32 %v814, 1
          %v819 = vsel %vm817, %v818, %v814
          %v820 = vadd.s32 %v815, %v819
          %v821 = vadd.s32 %v820, 536870912
          %v822 = vshrl.u32 %v821, 30
          %v823 = vshll.u32 %v822, 30
          %v824 = vsub.s32 %v820, %v823
          %vm825 = vcmp.lt.s32.totalorder %v824, 0
          %v826 = vsub.s32 0, %v824
          %v827 = vsel %vm825, %v826, %v824
          %v828 = vclz %v827
          %v829 = vsub.s32 %v828, 2
          %vm830 = vcmp.gt.s32.totalorder 0, %v829
          %v831 = vsel %vm830, 0, %v829
          %v832 = vsub.s32 32, %v831
          %v833 = vshll.u32 %v824, %v831
          %v834 = vshrl.u32 %v816, %v832
          %v835 = vor.u32 %v833, %v834
          %v836 = vsub.s32 4294967266, %v831
          %v837 = vadd.s32 %v836, 127
          %v838 = vshll.u32 %v837, 23
          %v839 = vor.u32 4788187, %v838
          %v840 = vand.u32 2147483647, %v839
          %v842 = vcvt.s32.f32 %v835
          %v843 = vmul.f32 %v842, %v840
          %v844 = vxor.u32 %v843, 2147483648
          %v845 = vsel %vm724, %v844, %v843
          %v846 = vsub.s32 4, %v822
          %v847 = vsel %vm724, %v846, %v822
          %v848 = vsel %vm723, %v257, %v845
          %v849 = vsel %vm723, 0, %v847
          %v850 = vmul.f32 %v848, %v848
          %v851 = vmul.f32 %v850, -0.001358992
          %v852 = vadd.f32 %v851, 0.041655596
          %v853 = vmul.f32 %v850, %v852
          %v854 = vadd.f32 %v853, -0.4999988
          %v855 = vmul.f32 %v850, %v854
          %v856 = vadd.f32 1.0, %v855
          %v857 = vmul.f32 %v848, %v848
          %v858 = vmul.f32 %v857, -0.00019511016
          %v859 = vadd.f32 %v858, 0.008332121
          %v860 = vmul.f32 %v857, %v859
          %v861 = vadd.f32 %v860, -0.16666654
          %v862 = vmul.f32 %v857, %v861
          %v863 = vadd.f32 %v862, 1.0
          %v864 = vmul.f32 %v863, %v848
          %vm865 = vweird.f32 %v257
          %v866 = vand.u32 %v849, 3
          %vm867 = vcmp.lt.s32.totalorder %v866, 2
          %vm868 = vcmp.eq.s32.totalorder %v866, 0
          %v869 = vxor.u32 %v864, 2147483648
          %v870 = vsel %vm868, %v856, %v869
          %vm871 = vcmp.eq.s32.totalorder %v866, 2
          %v872 = vxor.u32 %v856, 2147483648
          %v873 = vsel %vm871, %v872, %v864
          %v874 = vsel %vm867, %v870, %v873
          %v875 = vsel %vm865, nan, %v874
          %v876 = vrcp.pop %v721
          %v877 = vrcp.pop %v875
          %v878 = vmul.f32 %v721, %v876
          %v879 = vmul.f32 %v875, %v877
          %v880 = vsub.f32 2.0, %v878
          %v881 = vsub.f32 2.0, %v879
          %v882 = vmul.f32 %v876, %v880
          %v883 = vmul.f32 %v877, %v881
          %v884 = vmul.f32 %v412, %v882
          %v885 = vmul.f32 %v567, %v883
          %v886 = vstv %s195
          %v887 = vmul.f32 %v884, %v886
          %v888 = vmul.f32 %v885, %v886
        $region36: #{tpu_custom_call.1} parent=27 // pred_fallthru
          %v889 = vphi 0, %v887
          %v890 = vphi 0, %v888
        %p891 = pneg %p251
        // Predicated region
        $region37: #{tpu_custom_call.1} parent=27 // pred_check
          _
        $region38: #{tpu_custom_call.1} parent=27 // pred_check_branch
          %893 = sbr.rel (%p251) target = $region40
        $region39: #{tpu_custom_call.1} parent=27 // pred_region
          %v894 = vstv %s194
          %v895 = vmul.f32 %v249, %v894
          %v896 = vmul.f32 %v250, %v894
          %v897 = vmax.f32 %v895, -15.0
          %v898 = vmax.f32 %v896, -15.0
          %v899 = vmin.f32 %v897, 15.0
          %v900 = vmin.f32 %v898, 15.0
          %p901 = scmp.lt.f32.partialorder %s193, 0.0
          %v902 = vtanh.pop %v899
          %v903 = vtanh.pop %v900
          %v904 = vstv %s195
          %v905 = vmul.f32 %v902, %v904
          %v906 = vmul.f32 %v903, %v904
          %s907 = scalar_select %p901, 1, 0
          %v908 = vstv %s907
          %vm909 = vcmp.eq.s32.totalorder %v908, 1
          %v910 = vsel %vm909, %v905, %v249
          %v911 = vsel %vm909, %v906, %v250
        $region40: #{tpu_custom_call.1} parent=27 // pred_fallthru
          %v912 = vphi %v889, %v910
          %v913 = vphi %v890, %v911
        %v914 = vmul.f32 %v912, %v235
        %v915 = vmul.f32 %v913, %v245
        %v918 = vrot.slane %v915, 4
        %v919 = vsel %vm209, %v914, %v918
        %v921 = vmul.f32 %v200, %v919
        %923 = vset.pattern.permute.xlu0 0
        %924 = vperm.xlu0 %923, %v201
        %v925 = vpop.permute.xlu0 %924
        %928 = vst [vmem:[#allocation1] ss:$2 sm:$0xff] %v200
        %v929 = vld.sshfl [vmem:[#allocation1] sm:$0xff pattern:$0x75316420]
        %v930 = vld.sshfl [vmem:[#allocation1 + $0x8] sm:$0xff pattern:$0x75316420]
        %v933 = vmul.f32 %v925, %v929
        %v934 = vmul.f32 %v925, %v930
        %v935 = vsel %vm209, %v933, 0.0
        %v936 = vrot.slane %v935, 4
        %v937 = vadd.f32 %v935, %v936
        %v938 = vrot.slane %v937, 2
        %v939 = vadd.f32 %v937, %v938
        %v940 = vrot.slane %v939, 1
        %v941 = vadd.f32 %v939, %v940
        %v942 = vsel %vm209, %v934, 0.0
        %v943 = vrot.slane %v942, 4
        %v944 = vadd.f32 %v942, %v943
        %v945 = vrot.slane %v944, 2
        %v946 = vadd.f32 %v944, %v945
        %v947 = vrot.slane %v946, 1
        %v948 = vadd.f32 %v946, %v947
        %v949 = vmul.f32 %v941, %v914
        %v950 = vmul.f32 %v948, %v915
        %v951 = vmul.f32 %v914, %v914
        %v952 = vmul.f32 %v915, %v915
        %v953 = vmul.f32 %v216, %v951
        %v954 = vmul.f32 %v223, %v952
        %v955 = vstv %s199
        %v956 = vmul.f32 %v955, %v949
        %v957 = vmul.f32 %v955, %v950
        %v958 = vsub.f32 1.0, %v956
        %v959 = vsub.f32 1.0, %v957
        %v960 = vstv %s193
        %v961 = vmul.f32 %v960, %v953
        %v962 = vmul.f32 %v960, %v954
        %v963 = vsub.f32 %v958, %v961
        %v964 = vsub.f32 %v959, %v962
        %v965 = vmul.f32 %v963, %v925
        %v966 = vmul.f32 %v964, %v925
        %v967 = vstv %s197
        %v968 = vmul.f32 %v967, %v921
        %970 = vst [vmem:[#allocation1] ss:$2 sm:$0xff] %v968
        %v971 = vld.sshfl [vmem:[#allocation1] sm:$0xff pattern:$0x75316420]
        %v972 = vld.sshfl [vmem:[#allocation1 + $0x8] sm:$0xff pattern:$0x75316420]
        %v975 = vadd.f32 %v965, %v971
        %v976 = vadd.f32 %v966, %v972
        %v977 = vstv %s198
        %v978 = vmul.f32 %v977, %v953
        %v979 = vmul.f32 %v977, %v954
        %v980 = vadd.f32 %v958, %v978
        %v981 = vadd.f32 %v959, %v979
        %v982 = vmax.f32 %v980, 1e-15
        %v983 = vmax.f32 %v981, 1e-15
        %v984 = vrcp.pop %v982
        %v985 = vrcp.pop %v983
        %v986 = vmul.f32 %v982, %v984
        %v987 = vmul.f32 %v983, %v985
        %v988 = vsub.f32 2.0, %v986
        %v989 = vsub.f32 2.0, %v987
        %v990 = vmul.f32 %v984, %v988
        %v991 = vmul.f32 %v985, %v989
        %v992 = vmul.f32 %v975, %v990
        %v993 = vmul.f32 %v976, %v991
        %v996 = vrot.slane %v993, 4
        %v997 = vsel %vm209, %v992, %v996
        %999 = vst [vmem:[%s190] sm:$0xff] %v997
        %s1000 = sld [smem:[#allocation3 + $0x80]]
        %s1001 = sld [smem:[#allocation3 + $0x81]]
        %s1002 = sld [smem:[#allocation3 + $0x82]]
        %s1003 = sld [smem:[#allocation3 + $0x83]]
        %s1004 = sld [smem:[#allocation3 + $0x84]]
        %s1005 = sld [smem:[#allocation3 + $0x85]]
        %s1006 = sld [smem:[#allocation3 + $0x86]]
        %s1007 = scalar_lea.vmem %s169, 8 [#allocation4]
        %v1008 = vld [vmem:[%s1007] sm:$0xff]
        %s1009 = scalar_lea.vmem %s1, 4
        %v1010 = vld [vmem:[%s1009] sm:$0xf]
        %v1011 = vmul.f32 %v1008, %v1008
        %1013 = vst [vmem:[#allocation1] ss:$2 sm:$0xff] %v1011
        %v1014 = vld.sshfl [vmem:[#allocation1] sm:$0xff pattern:$0x75316420]
        %v1015 = vld.sshfl [vmem:[#allocation1 + $0x8] sm:$0xff pattern:$0x75316420]
        %v1018 = vsel %vm209, %v1014, 0.0
        %v1019 = vrot.slane %v1018, 4
        %v1020 = vadd.f32 %v1018, %v1019
        %v1021 = vrot.slane %v1020, 2
        %v1022 = vadd.f32 %v1020, %v1021
        %v1023 = vrot.slane %v1022, 1
        %v1024 = vadd.f32 %v1022, %v1023
        %v1025 = vsel %vm209, %v1015, 0.0
        %v1026 = vrot.slane %v1025, 4
        %v1027 = vadd.f32 %v1025, %v1026
        %v1028 = vrot.slane %v1027, 2
        %v1029 = vadd.f32 %v1027, %v1028
        %v1030 = vrot.slane %v1029, 1
        %v1031 = vadd.f32 %v1029, %v1030
        %v1032 = vmax.f32 %v1024, 1e-30
        %v1033 = vmax.f32 %v1031, 1e-30
        %v1034 = vrsqrt.pop %v1032
        %v1035 = vmul.f32 %v1034, %v1032
        %v1036 = vmul.f32 %v1035, %v1034
        %v1037 = vmul.f32 0.5, %v1036
        %v1038 = vsub.f32 1.5, %v1037
        %v1039 = vmul.f32 %v1034, %v1038
        %vm1040 = vweird.f32 %v1032
        %vm1041 = vweird.f32 %v1034
        %vm1042 = vmor %vm1040, %vm1041
        %v1043 = vsel %vm1042, %v1034, %v1039
        %v1044 = vrsqrt.pop %v1033
        %v1045 = vmul.f32 %v1044, %v1033
        %v1046 = vmul.f32 %v1045, %v1044
        %v1047 = vmul.f32 0.5, %v1046
        %v1048 = vsub.f32 1.5, %v1047
        %v1049 = vmul.f32 %v1044, %v1048
        %vm1050 = vweird.f32 %v1033
        %vm1051 = vweird.f32 %v1044
        %vm1052 = vmor %vm1050, %vm1051
        %v1053 = vsel %vm1052, %v1044, %v1049
        %v1054 = vmul.f32 %v1024, %v1043
        %v1055 = vmul.f32 %v1031, %v1053
        %v1056 = vstv %s1003
        %v1057 = vmul.f32 %v1056, %v1054
        %v1058 = vmul.f32 %v1056, %v1055
        %p1059 = scmp.gt.f32.partialorder %s1000, 0.0
        // Predicated region
        $region41: #{tpu_custom_call.1} parent=27 // pred_check
          %p1060 = pneg %p1059
        $region42: #{tpu_custom_call.1} parent=27 // pred_check_branch
          %1062 = sbr.rel (%p1060) target = $region44
        $region43: #{tpu_custom_call.1} parent=27 // pred_region
          %v1063 = vstv %s1001
          %v1064 = vmul.f32 %v1057, %v1063
          %v1065 = vmul.f32 %v1058, %v1063
          %v1066 = vand.u32 2147483647, %v1064
          %vm1067 = vcmp.le.f32.partialorder %v1066, 0.7853982
          %vm1068 = vcmp.lt.s32.totalorder %v1064, 0
          %v1069 = vand.u32 %v1064, 2139095040
          %v1070 = vshrl.u32 %v1069, 23
          %v1071 = vsub.s32 %v1070, 127
          %v1072 = vand.u32 2147483647, %v1064
          %v1073 = vand.u32 %v1072, 8388607
          %v1074 = vor.u32 %v1073, 8388608
          %v1075 = vsub.s32 0, %v1074
          %v1076 = vadd.s32 %v1071, 1
          %vm1077 = vcmp.gt.s32.totalorder %v1076, 0
          %v1078 = vsel %vm1077, %v1076, 0
          %v1079 = vshrl.u32 %v1078, 5
          %v1080 = vand.u32 %v1078, 31
          %v1081 = vsub.s32 32, %v1080
          %v1082 = vshrl.u32 683565275, %v1081
          %v1083 = vshll.u32 683565275, %v1080
          %v1084 = vshrl.u32 2475754826, %v1081
          %v1085 = vor.u32 %v1083, %v1084
          %v1086 = vshll.u32 2475754826, %v1080
          %v1087 = vshrl.u32 2131351028, %v1081
          %v1088 = vor.u32 %v1086, %v1087
          %v1089 = vshll.u32 2131351028, %v1080
          %v1090 = vshrl.u32 2102212464, %v1081
          %v1091 = vor.u32 %v1089, %v1090
          %v1092 = vshll.u32 2102212464, %v1080
          %v1093 = vshrl.u32 920167782, %v1081
          %v1094 = vor.u32 %v1092, %v1093
          %v1095 = vshll.u32 920167782, %v1080
          %v1096 = vshrl.u32 1326507024, %v1081
          %v1097 = vor.u32 %v1095, %v1096
          %vm1098 = vcmp.lt.s32.totalorder %v1079, 1
          %vm1099 = vcmp.lt.s32.totalorder %v1079, 2
          %vm1100 = vcmp.lt.s32.totalorder %v1079, 3
          %vm1101 = vcmp.lt.s32.totalorder %v1079, 4
          %v1102 = vsel %vm1098, %v1082, %v1085
          %v1103 = vsel %vm1101, %v1091, 2102212464
          %v1104 = vsel %vm1100, %v1088, %v1103
          %v1105 = vsel %vm1099, %v1102, %v1104
          %v1106 = vsel %vm1098, %v1085, %v1088
          %v1107 = vsel %vm1101, %v1094, 920167782
          %v1108 = vsel %vm1100, %v1091, %v1107
          %v1109 = vsel %vm1099, %v1106, %v1108
          %v1110 = vsel %vm1098, %v1088, %v1091
          %v1111 = vsel %vm1101, %v1097, 1326507024
          %v1112 = vsel %vm1100, %v1094, %v1111
          %v1113 = vsel %vm1099, %v1110, %v1112
          %v1114 = vshll.u32 %v1074, 8
          %v1115 = vand.u32 %v1114, 65535
          %v1116 = vshrl.u32 %v1114, 16
          %v1117 = vand.u32 %v1113, 65535
          %v1118 = vshrl.u32 %v1113, 16
          %v1119 = vmul.u32 %v1115, %v1117
          %v1120 = vmul.u32 %v1115, %v1118
          %v1121 = vmul.u32 %v1116, %v1117
          %v1122 = vmul.u32 %v1116, %v1118
          %v1123 = vshll.u32 %v1120, 16
          %v1124 = vshrl.u32 %v1120, 16
          %v1125 = vshll.u32 %v1121, 16
          %v1126 = vshrl.u32 %v1121, 16
          %vm1127 = vc.u32 %v1119, %v1123
          %v1128 = vsel %vm1127, 1, 0
          %v1129 = vadd.s32 %v1119, %v1123
          %v1130 = vadd.s32 %v1122, %v1128
          %vm1131 = vc.u32 %v1129, %v1125
          %v1132 = vsel %vm1131, 1, 0
          %v1133 = vadd.s32 %v1129, %v1125
          %v1134 = vadd.s32 %v1130, %v1132
          %v1135 = vadd.s32 %v1134, %v1124
          %v1136 = vadd.s32 %v1135, %v1126
          %v1137 = vand.u32 %v1114, 65535
          %v1138 = vshrl.u32 %v1114, 16
          %v1139 = vand.u32 %v1109, 65535
          %v1140 = vshrl.u32 %v1109, 16
          %v1141 = vmul.u32 %v1137, %v1139
          %v1142 = vmul.u32 %v1137, %v1140
          %v1143 = vmul.u32 %v1138, %v1139
          %v1144 = vmul.u32 %v1138, %v1140
          %v1145 = vshll.u32 %v1142, 16
          %v1146 = vshrl.u32 %v1142, 16
          %v1147 = vshll.u32 %v1143, 16
          %v1148 = vshrl.u32 %v1143, 16
          %vm1149 = vc.u32 %v1141, %v1145
          %v1150 = vsel %vm1149, 1, 0
          %v1151 = vadd.s32 %v1141, %v1145
          %v1152 = vadd.s32 %v1144, %v1150
          %vm1153 = vc.u32 %v1151, %v1147
          %v1154 = vsel %vm1153, 1, 0
          %v1155 = vadd.s32 %v1151, %v1147
          %v1156 = vadd.s32 %v1152, %v1154
          %v1157 = vadd.s32 %v1156, %v1146
          %v1158 = vadd.s32 %v1157, %v1148
          %v1159 = vmul.u32 %v1114, %v1105
          %v1160 = vadd.s32 %v1136, %v1155
          %vm1161 = vc.u32 %v1136, %v1155
          %v1162 = vadd.s32 %v1158, 1
          %v1163 = vsel %vm1161, %v1162, %v1158
          %v1164 = vadd.s32 %v1159, %v1163
          %v1165 = vadd.s32 %v1164, 536870912
          %v1166 = vshrl.u32 %v1165, 30
          %v1167 = vshll.u32 %v1166, 30
          %v1168 = vsub.s32 %v1164, %v1167
          %vm1169 = vcmp.lt.s32.totalorder %v1168, 0
          %v1170 = vsub.s32 0, %v1168
          %v1171 = vsel %vm1169, %v1170, %v1168
          %v1172 = vclz %v1171
          %v1173 = vsub.s32 %v1172, 2
          %vm1174 = vcmp.gt.s32.totalorder 0, %v1173
          %v1175 = vsel %vm1174, 0, %v1173
          %v1176 = vsub.s32 32, %v1175
          %v1177 = vshll.u32 %v1168, %v1175
          %v1178 = vshrl.u32 %v1160, %v1176
          %v1179 = vor.u32 %v1177, %v1178
          %v1180 = vsub.s32 4294967266, %v1175
          %v1181 = vadd.s32 %v1180, 127
          %v1182 = vshll.u32 %v1181, 23
          %v1183 = vor.u32 4788187, %v1182
          %v1184 = vand.u32 2147483647, %v1183
          %v1186 = vcvt.s32.f32 %v1179
          %v1187 = vmul.f32 %v1186, %v1184
          %v1188 = vxor.u32 %v1187, 2147483648
          %v1189 = vsel %vm1068, %v1188, %v1187
          %v1190 = vsub.s32 4, %v1166
          %v1191 = vsel %vm1068, %v1190, %v1166
          %v1192 = vsel %vm1067, %v1064, %v1189
          %v1193 = vsel %vm1067, 0, %v1191
          %v1194 = vmul.f32 %v1192, %v1192
          %v1195 = vmul.f32 %v1194, -0.001358992
          %v1196 = vadd.f32 %v1195, 0.041655596
          %v1197 = vmul.f32 %v1194, %v1196
          %v1198 = vadd.f32 %v1197, -0.4999988
          %v1199 = vmul.f32 %v1194, %v1198
          %v1200 = vadd.f32 1.0, %v1199
          %v1201 = vmul.f32 %v1192, %v1192
          %v1202 = vmul.f32 %v1201, -0.00019511016
          %v1203 = vadd.f32 %v1202, 0.008332121
          %v1204 = vmul.f32 %v1201, %v1203
          %v1205 = vadd.f32 %v1204, -0.16666654
          %v1206 = vmul.f32 %v1201, %v1205
          %v1207 = vadd.f32 %v1206, 1.0
          %v1208 = vmul.f32 %v1207, %v1192
          %vm1209 = vweird.f32 %v1064
          %v1210 = vadd.s32 %v1193, 3
          %v1211 = vand.u32 %v1210, 3
          %vm1212 = vcmp.lt.s32.totalorder %v1211, 2
          %vm1213 = vcmp.eq.s32.totalorder %v1211, 0
          %v1214 = vxor.u32 %v1208, 2147483648
          %v1215 = vsel %vm1213, %v1200, %v1214
          %vm1216 = vcmp.eq.s32.totalorder %v1211, 2
          %v1217 = vxor.u32 %v1200, 2147483648
          %v1218 = vsel %vm1216, %v1217, %v1208
          %v1219 = vsel %vm1212, %v1215, %v1218
          %v1220 = vsel %vm1209, nan, %v1219
          %v1221 = vand.u32 2147483647, %v1065
          %vm1222 = vcmp.le.f32.partialorder %v1221, 0.7853982
          %vm1223 = vcmp.lt.s32.totalorder %v1065, 0
          %v1224 = vand.u32 %v1065, 2139095040
          %v1225 = vshrl.u32 %v1224, 23
          %v1226 = vsub.s32 %v1225, 127
          %v1227 = vand.u32 2147483647, %v1065
          %v1228 = vand.u32 %v1227, 8388607
          %v1229 = vor.u32 %v1228, 8388608
          %v1230 = vsub.s32 0, %v1229
          %v1231 = vadd.s32 %v1226, 1
          %vm1232 = vcmp.gt.s32.totalorder %v1231, 0
          %v1233 = vsel %vm1232, %v1231, 0
          %v1234 = vshrl.u32 %v1233, 5
          %v1235 = vand.u32 %v1233, 31
          %v1236 = vsub.s32 32, %v1235
          %v1237 = vshrl.u32 683565275, %v1236
          %v1238 = vshll.u32 683565275, %v1235
          %v1239 = vshrl.u32 2475754826, %v1236
          %v1240 = vor.u32 %v1238, %v1239
          %v1241 = vshll.u32 2475754826, %v1235
          %v1242 = vshrl.u32 2131351028, %v1236
          %v1243 = vor.u32 %v1241, %v1242
          %v1244 = vshll.u32 2131351028, %v1235
          %v1245 = vshrl.u32 2102212464, %v1236
          %v1246 = vor.u32 %v1244, %v1245
          %v1247 = vshll.u32 2102212464, %v1235
          %v1248 = vshrl.u32 920167782, %v1236
          %v1249 = vor.u32 %v1247, %v1248
          %v1250 = vshll.u32 920167782, %v1235
          %v1251 = vshrl.u32 1326507024, %v1236
          %v1252 = vor.u32 %v1250, %v1251
          %vm1253 = vcmp.lt.s32.totalorder %v1234, 1
          %vm1254 = vcmp.lt.s32.totalorder %v1234, 2
          %vm1255 = vcmp.lt.s32.totalorder %v1234, 3
          %vm1256 = vcmp.lt.s32.totalorder %v1234, 4
          %v1257 = vsel %vm1253, %v1237, %v1240
          %v1258 = vsel %vm1256, %v1246, 2102212464
          %v1259 = vsel %vm1255, %v1243, %v1258
          %v1260 = vsel %vm1254, %v1257, %v1259
          %v1261 = vsel %vm1253, %v1240, %v1243
          %v1262 = vsel %vm1256, %v1249, 920167782
          %v1263 = vsel %vm1255, %v1246, %v1262
          %v1264 = vsel %vm1254, %v1261, %v1263
          %v1265 = vsel %vm1253, %v1243, %v1246
          %v1266 = vsel %vm1256, %v1252, 1326507024
          %v1267 = vsel %vm1255, %v1249, %v1266
          %v1268 = vsel %vm1254, %v1265, %v1267
          %v1269 = vshll.u32 %v1229, 8
          %v1270 = vand.u32 %v1269, 65535
          %v1271 = vshrl.u32 %v1269, 16
          %v1272 = vand.u32 %v1268, 65535
          %v1273 = vshrl.u32 %v1268, 16
          %v1274 = vmul.u32 %v1270, %v1272
          %v1275 = vmul.u32 %v1270, %v1273
          %v1276 = vmul.u32 %v1271, %v1272
          %v1277 = vmul.u32 %v1271, %v1273
          %v1278 = vshll.u32 %v1275, 16
          %v1279 = vshrl.u32 %v1275, 16
          %v1280 = vshll.u32 %v1276, 16
          %v1281 = vshrl.u32 %v1276, 16
          %vm1282 = vc.u32 %v1274, %v1278
          %v1283 = vsel %vm1282, 1, 0
          %v1284 = vadd.s32 %v1274, %v1278
          %v1285 = vadd.s32 %v1277, %v1283
          %vm1286 = vc.u32 %v1284, %v1280
          %v1287 = vsel %vm1286, 1, 0
          %v1288 = vadd.s32 %v1284, %v1280
          %v1289 = vadd.s32 %v1285, %v1287
          %v1290 = vadd.s32 %v1289, %v1279
          %v1291 = vadd.s32 %v1290, %v1281
          %v1292 = vand.u32 %v1269, 65535
          %v1293 = vshrl.u32 %v1269, 16
          %v1294 = vand.u32 %v1264, 65535
          %v1295 = vshrl.u32 %v1264, 16
          %v1296 = vmul.u32 %v1292, %v1294
          %v1297 = vmul.u32 %v1292, %v1295
          %v1298 = vmul.u32 %v1293, %v1294
          %v1299 = vmul.u32 %v1293, %v1295
          %v1300 = vshll.u32 %v1297, 16
          %v1301 = vshrl.u32 %v1297, 16
          %v1302 = vshll.u32 %v1298, 16
          %v1303 = vshrl.u32 %v1298, 16
          %vm1304 = vc.u32 %v1296, %v1300
          %v1305 = vsel %vm1304, 1, 0
          %v1306 = vadd.s32 %v1296, %v1300
          %v1307 = vadd.s32 %v1299, %v1305
          %vm1308 = vc.u32 %v1306, %v1302
          %v1309 = vsel %vm1308, 1, 0
          %v1310 = vadd.s32 %v1306, %v1302
          %v1311 = vadd.s32 %v1307, %v1309
          %v1312 = vadd.s32 %v1311, %v1301
          %v1313 = vadd.s32 %v1312, %v1303
          %v1314 = vmul.u32 %v1269, %v1260
          %v1315 = vadd.s32 %v1291, %v1310
          %vm1316 = vc.u32 %v1291, %v1310
          %v1317 = vadd.s32 %v1313, 1
          %v1318 = vsel %vm1316, %v1317, %v1313
          %v1319 = vadd.s32 %v1314, %v1318
          %v1320 = vadd.s32 %v1319, 536870912
          %v1321 = vshrl.u32 %v1320, 30
          %v1322 = vshll.u32 %v1321, 30
          %v1323 = vsub.s32 %v1319, %v1322
          %vm1324 = vcmp.lt.s32.totalorder %v1323, 0
          %v1325 = vsub.s32 0, %v1323
          %v1326 = vsel %vm1324, %v1325, %v1323
          %v1327 = vclz %v1326
          %v1328 = vsub.s32 %v1327, 2
          %vm1329 = vcmp.gt.s32.totalorder 0, %v1328
          %v1330 = vsel %vm1329, 0, %v1328
          %v1331 = vsub.s32 32, %v1330
          %v1332 = vshll.u32 %v1323, %v1330
          %v1333 = vshrl.u32 %v1315, %v1331
          %v1334 = vor.u32 %v1332, %v1333
          %v1335 = vsub.s32 4294967266, %v1330
          %v1336 = vadd.s32 %v1335, 127
          %v1337 = vshll.u32 %v1336, 23
          %v1338 = vor.u32 4788187, %v1337
          %v1339 = vand.u32 2147483647, %v1338
          %v1341 = vcvt.s32.f32 %v1334
          %v1342 = vmul.f32 %v1341, %v1339
          %v1343 = vxor.u32 %v1342, 2147483648
          %v1344 = vsel %vm1223, %v1343, %v1342
          %v1345 = vsub.s32 4, %v1321
          %v1346 = vsel %vm1223, %v1345, %v1321
          %v1347 = vsel %vm1222, %v1065, %v1344
          %v1348 = vsel %vm1222, 0, %v1346
          %v1349 = vmul.f32 %v1347, %v1347
          %v1350 = vmul.f32 %v1349, -0.001358992
          %v1351 = vadd.f32 %v1350, 0.041655596
          %v1352 = vmul.f32 %v1349, %v1351
          %v1353 = vadd.f32 %v1352, -0.4999988
          %v1354 = vmul.f32 %v1349, %v1353
          %v1355 = vadd.f32 1.0, %v1354
          %v1356 = vmul.f32 %v1347, %v1347
          %v1357 = vmul.f32 %v1356, -0.00019511016
          %v1358 = vadd.f32 %v1357, 0.008332121
          %v1359 = vmul.f32 %v1356, %v1358
          %v1360 = vadd.f32 %v1359, -0.16666654
          %v1361 = vmul.f32 %v1356, %v1360
          %v1362 = vadd.f32 %v1361, 1.0
          %v1363 = vmul.f32 %v1362, %v1347
          %vm1364 = vweird.f32 %v1065
          %v1365 = vadd.s32 %v1348, 3
          %v1366 = vand.u32 %v1365, 3
          %vm1367 = vcmp.lt.s32.totalorder %v1366, 2
          %vm1368 = vcmp.eq.s32.totalorder %v1366, 0
          %v1369 = vxor.u32 %v1363, 2147483648
          %v1370 = vsel %vm1368, %v1355, %v1369
          %vm1371 = vcmp.eq.s32.totalorder %v1366, 2
          %v1372 = vxor.u32 %v1355, 2147483648
          %v1373 = vsel %vm1371, %v1372, %v1363
          %v1374 = vsel %vm1367, %v1370, %v1373
          %v1375 = vsel %vm1364, nan, %v1374
          %v1376 = vand.u32 2147483647, %v1064
          %vm1377 = vcmp.le.f32.partialorder %v1376, 0.7853982
          %vm1378 = vcmp.lt.s32.totalorder %v1064, 0
          %v1379 = vand.u32 %v1064, 2139095040
          %v1380 = vshrl.u32 %v1379, 23
          %v1381 = vsub.s32 %v1380, 127
          %v1382 = vand.u32 2147483647, %v1064
          %v1383 = vand.u32 %v1382, 8388607
          %v1384 = vor.u32 %v1383, 8388608
          %v1385 = vsub.s32 0, %v1384
          %v1386 = vadd.s32 %v1381, 1
          %vm1387 = vcmp.gt.s32.totalorder %v1386, 0
          %v1388 = vsel %vm1387, %v1386, 0
          %v1389 = vshrl.u32 %v1388, 5
          %v1390 = vand.u32 %v1388, 31
          %v1391 = vsub.s32 32, %v1390
          %v1392 = vshrl.u32 683565275, %v1391
          %v1393 = vshll.u32 683565275, %v1390
          %v1394 = vshrl.u32 2475754826, %v1391
          %v1395 = vor.u32 %v1393, %v1394
          %v1396 = vshll.u32 2475754826, %v1390
          %v1397 = vshrl.u32 2131351028, %v1391
          %v1398 = vor.u32 %v1396, %v1397
          %v1399 = vshll.u32 2131351028, %v1390
          %v1400 = vshrl.u32 2102212464, %v1391
          %v1401 = vor.u32 %v1399, %v1400
          %v1402 = vshll.u32 2102212464, %v1390
          %v1403 = vshrl.u32 920167782, %v1391
          %v1404 = vor.u32 %v1402, %v1403
          %v1405 = vshll.u32 920167782, %v1390
          %v1406 = vshrl.u32 1326507024, %v1391
          %v1407 = vor.u32 %v1405, %v1406
          %vm1408 = vcmp.lt.s32.totalorder %v1389, 1
          %vm1409 = vcmp.lt.s32.totalorder %v1389, 2
          %vm1410 = vcmp.lt.s32.totalorder %v1389, 3
          %vm1411 = vcmp.lt.s32.totalorder %v1389, 4
          %v1412 = vsel %vm1408, %v1392, %v1395
          %v1413 = vsel %vm1411, %v1401, 2102212464
          %v1414 = vsel %vm1410, %v1398, %v1413
          %v1415 = vsel %vm1409, %v1412, %v1414
          %v1416 = vsel %vm1408, %v1395, %v1398
          %v1417 = vsel %vm1411, %v1404, 920167782
          %v1418 = vsel %vm1410, %v1401, %v1417
          %v1419 = vsel %vm1409, %v1416, %v1418
          %v1420 = vsel %vm1408, %v1398, %v1401
          %v1421 = vsel %vm1411, %v1407, 1326507024
          %v1422 = vsel %vm1410, %v1404, %v1421
          %v1423 = vsel %vm1409, %v1420, %v1422
          %v1424 = vshll.u32 %v1384, 8
          %v1425 = vand.u32 %v1424, 65535
          %v1426 = vshrl.u32 %v1424, 16
          %v1427 = vand.u32 %v1423, 65535
          %v1428 = vshrl.u32 %v1423, 16
          %v1429 = vmul.u32 %v1425, %v1427
          %v1430 = vmul.u32 %v1425, %v1428
          %v1431 = vmul.u32 %v1426, %v1427
          %v1432 = vmul.u32 %v1426, %v1428
          %v1433 = vshll.u32 %v1430, 16
          %v1434 = vshrl.u32 %v1430, 16
          %v1435 = vshll.u32 %v1431, 16
          %v1436 = vshrl.u32 %v1431, 16
          %vm1437 = vc.u32 %v1429, %v1433
          %v1438 = vsel %vm1437, 1, 0
          %v1439 = vadd.s32 %v1429, %v1433
          %v1440 = vadd.s32 %v1432, %v1438
          %vm1441 = vc.u32 %v1439, %v1435
          %v1442 = vsel %vm1441, 1, 0
          %v1443 = vadd.s32 %v1439, %v1435
          %v1444 = vadd.s32 %v1440, %v1442
          %v1445 = vadd.s32 %v1444, %v1434
          %v1446 = vadd.s32 %v1445, %v1436
          %v1447 = vand.u32 %v1424, 65535
          %v1448 = vshrl.u32 %v1424, 16
          %v1449 = vand.u32 %v1419, 65535
          %v1450 = vshrl.u32 %v1419, 16
          %v1451 = vmul.u32 %v1447, %v1449
          %v1452 = vmul.u32 %v1447, %v1450
          %v1453 = vmul.u32 %v1448, %v1449
          %v1454 = vmul.u32 %v1448, %v1450
          %v1455 = vshll.u32 %v1452, 16
          %v1456 = vshrl.u32 %v1452, 16
          %v1457 = vshll.u32 %v1453, 16
          %v1458 = vshrl.u32 %v1453, 16
          %vm1459 = vc.u32 %v1451, %v1455
          %v1460 = vsel %vm1459, 1, 0
          %v1461 = vadd.s32 %v1451, %v1455
          %v1462 = vadd.s32 %v1454, %v1460
          %vm1463 = vc.u32 %v1461, %v1457
          %v1464 = vsel %vm1463, 1, 0
          %v1465 = vadd.s32 %v1461, %v1457
          %v1466 = vadd.s32 %v1462, %v1464
          %v1467 = vadd.s32 %v1466, %v1456
          %v1468 = vadd.s32 %v1467, %v1458
          %v1469 = vmul.u32 %v1424, %v1415
          %v1470 = vadd.s32 %v1446, %v1465
          %vm1471 = vc.u32 %v1446, %v1465
          %v1472 = vadd.s32 %v1468, 1
          %v1473 = vsel %vm1471, %v1472, %v1468
          %v1474 = vadd.s32 %v1469, %v1473
          %v1475 = vadd.s32 %v1474, 536870912
          %v1476 = vshrl.u32 %v1475, 30
          %v1477 = vshll.u32 %v1476, 30
          %v1478 = vsub.s32 %v1474, %v1477
          %vm1479 = vcmp.lt.s32.totalorder %v1478, 0
          %v1480 = vsub.s32 0, %v1478
          %v1481 = vsel %vm1479, %v1480, %v1478
          %v1482 = vclz %v1481
          %v1483 = vsub.s32 %v1482, 2
          %vm1484 = vcmp.gt.s32.totalorder 0, %v1483
          %v1485 = vsel %vm1484, 0, %v1483
          %v1486 = vsub.s32 32, %v1485
          %v1487 = vshll.u32 %v1478, %v1485
          %v1488 = vshrl.u32 %v1470, %v1486
          %v1489 = vor.u32 %v1487, %v1488
          %v1490 = vsub.s32 4294967266, %v1485
          %v1491 = vadd.s32 %v1490, 127
          %v1492 = vshll.u32 %v1491, 23
          %v1493 = vor.u32 4788187, %v1492
          %v1494 = vand.u32 2147483647, %v1493
          %v1496 = vcvt.s32.f32 %v1489
          %v1497 = vmul.f32 %v1496, %v1494
          %v1498 = vxor.u32 %v1497, 2147483648
          %v1499 = vsel %vm1378, %v1498, %v1497
          %v1500 = vsub.s32 4, %v1476
          %v1501 = vsel %vm1378, %v1500, %v1476
          %v1502 = vsel %vm1377, %v1064, %v1499
          %v1503 = vsel %vm1377, 0, %v1501
          %v1504 = vmul.f32 %v1502, %v1502
          %v1505 = vmul.f32 %v1504, -0.001358992
          %v1506 = vadd.f32 %v1505, 0.041655596
          %v1507 = vmul.f32 %v1504, %v1506
          %v1508 = vadd.f32 %v1507, -0.4999988
          %v1509 = vmul.f32 %v1504, %v1508
          %v1510 = vadd.f32 1.0, %v1509
          %v1511 = vmul.f32 %v1502, %v1502
          %v1512 = vmul.f32 %v1511, -0.00019511016
          %v1513 = vadd.f32 %v1512, 0.008332121
          %v1514 = vmul.f32 %v1511, %v1513
          %v1515 = vadd.f32 %v1514, -0.16666654
          %v1516 = vmul.f32 %v1511, %v1515
          %v1517 = vadd.f32 %v1516, 1.0
          %v1518 = vmul.f32 %v1517, %v1502
          %vm1519 = vweird.f32 %v1064
          %v1520 = vand.u32 %v1503, 3
          %vm1521 = vcmp.lt.s32.totalorder %v1520, 2
          %vm1522 = vcmp.eq.s32.totalorder %v1520, 0
          %v1523 = vxor.u32 %v1518, 2147483648
          %v1524 = vsel %vm1522, %v1510, %v1523
          %vm1525 = vcmp.eq.s32.totalorder %v1520, 2
          %v1526 = vxor.u32 %v1510, 2147483648
          %v1527 = vsel %vm1525, %v1526, %v1518
          %v1528 = vsel %vm1521, %v1524, %v1527
          %v1529 = vsel %vm1519, nan, %v1528
          %v1530 = vand.u32 2147483647, %v1065
          %vm1531 = vcmp.le.f32.partialorder %v1530, 0.7853982
          %vm1532 = vcmp.lt.s32.totalorder %v1065, 0
          %v1533 = vand.u32 %v1065, 2139095040
          %v1534 = vshrl.u32 %v1533, 23
          %v1535 = vsub.s32 %v1534, 127
          %v1536 = vand.u32 2147483647, %v1065
          %v1537 = vand.u32 %v1536, 8388607
          %v1538 = vor.u32 %v1537, 8388608
          %v1539 = vsub.s32 0, %v1538
          %v1540 = vadd.s32 %v1535, 1
          %vm1541 = vcmp.gt.s32.totalorder %v1540, 0
          %v1542 = vsel %vm1541, %v1540, 0
          %v1543 = vshrl.u32 %v1542, 5
          %v1544 = vand.u32 %v1542, 31
          %v1545 = vsub.s32 32, %v1544
          %v1546 = vshrl.u32 683565275, %v1545
          %v1547 = vshll.u32 683565275, %v1544
          %v1548 = vshrl.u32 2475754826, %v1545
          %v1549 = vor.u32 %v1547, %v1548
          %v1550 = vshll.u32 2475754826, %v1544
          %v1551 = vshrl.u32 2131351028, %v1545
          %v1552 = vor.u32 %v1550, %v1551
          %v1553 = vshll.u32 2131351028, %v1544
          %v1554 = vshrl.u32 2102212464, %v1545
          %v1555 = vor.u32 %v1553, %v1554
          %v1556 = vshll.u32 2102212464, %v1544
          %v1557 = vshrl.u32 920167782, %v1545
          %v1558 = vor.u32 %v1556, %v1557
          %v1559 = vshll.u32 920167782, %v1544
          %v1560 = vshrl.u32 1326507024, %v1545
          %v1561 = vor.u32 %v1559, %v1560
          %vm1562 = vcmp.lt.s32.totalorder %v1543, 1
          %vm1563 = vcmp.lt.s32.totalorder %v1543, 2
          %vm1564 = vcmp.lt.s32.totalorder %v1543, 3
          %vm1565 = vcmp.lt.s32.totalorder %v1543, 4
          %v1566 = vsel %vm1562, %v1546, %v1549
          %v1567 = vsel %vm1565, %v1555, 2102212464
          %v1568 = vsel %vm1564, %v1552, %v1567
          %v1569 = vsel %vm1563, %v1566, %v1568
          %v1570 = vsel %vm1562, %v1549, %v1552
          %v1571 = vsel %vm1565, %v1558, 920167782
          %v1572 = vsel %vm1564, %v1555, %v1571
          %v1573 = vsel %vm1563, %v1570, %v1572
          %v1574 = vsel %vm1562, %v1552, %v1555
          %v1575 = vsel %vm1565, %v1561, 1326507024
          %v1576 = vsel %vm1564, %v1558, %v1575
          %v1577 = vsel %vm1563, %v1574, %v1576
          %v1578 = vshll.u32 %v1538, 8
          %v1579 = vand.u32 %v1578, 65535
          %v1580 = vshrl.u32 %v1578, 16
          %v1581 = vand.u32 %v1577, 65535
          %v1582 = vshrl.u32 %v1577, 16
          %v1583 = vmul.u32 %v1579, %v1581
          %v1584 = vmul.u32 %v1579, %v1582
          %v1585 = vmul.u32 %v1580, %v1581
          %v1586 = vmul.u32 %v1580, %v1582
          %v1587 = vshll.u32 %v1584, 16
          %v1588 = vshrl.u32 %v1584, 16
          %v1589 = vshll.u32 %v1585, 16
          %v1590 = vshrl.u32 %v1585, 16
          %vm1591 = vc.u32 %v1583, %v1587
          %v1592 = vsel %vm1591, 1, 0
          %v1593 = vadd.s32 %v1583, %v1587
          %v1594 = vadd.s32 %v1586, %v1592
          %vm1595 = vc.u32 %v1593, %v1589
          %v1596 = vsel %vm1595, 1, 0
          %v1597 = vadd.s32 %v1593, %v1589
          %v1598 = vadd.s32 %v1594, %v1596
          %v1599 = vadd.s32 %v1598, %v1588
          %v1600 = vadd.s32 %v1599, %v1590
          %v1601 = vand.u32 %v1578, 65535
          %v1602 = vshrl.u32 %v1578, 16
          %v1603 = vand.u32 %v1573, 65535
          %v1604 = vshrl.u32 %v1573, 16
          %v1605 = vmul.u32 %v1601, %v1603
          %v1606 = vmul.u32 %v1601, %v1604
          %v1607 = vmul.u32 %v1602, %v1603
          %v1608 = vmul.u32 %v1602, %v1604
          %v1609 = vshll.u32 %v1606, 16
          %v1610 = vshrl.u32 %v1606, 16
          %v1611 = vshll.u32 %v1607, 16
          %v1612 = vshrl.u32 %v1607, 16
          %vm1613 = vc.u32 %v1605, %v1609
          %v1614 = vsel %vm1613, 1, 0
          %v1615 = vadd.s32 %v1605, %v1609
          %v1616 = vadd.s32 %v1608, %v1614
          %vm1617 = vc.u32 %v1615, %v1611
          %v1618 = vsel %vm1617, 1, 0
          %v1619 = vadd.s32 %v1615, %v1611
          %v1620 = vadd.s32 %v1616, %v1618
          %v1621 = vadd.s32 %v1620, %v1610
          %v1622 = vadd.s32 %v1621, %v1612
          %v1623 = vmul.u32 %v1578, %v1569
          %v1624 = vadd.s32 %v1600, %v1619
          %vm1625 = vc.u32 %v1600, %v1619
          %v1626 = vadd.s32 %v1622, 1
          %v1627 = vsel %vm1625, %v1626, %v1622
          %v1628 = vadd.s32 %v1623, %v1627
          %v1629 = vadd.s32 %v1628, 536870912
          %v1630 = vshrl.u32 %v1629, 30
          %v1631 = vshll.u32 %v1630, 30
          %v1632 = vsub.s32 %v1628, %v1631
          %vm1633 = vcmp.lt.s32.totalorder %v1632, 0
          %v1634 = vsub.s32 0, %v1632
          %v1635 = vsel %vm1633, %v1634, %v1632
          %v1636 = vclz %v1635
          %v1637 = vsub.s32 %v1636, 2
          %vm1638 = vcmp.gt.s32.totalorder 0, %v1637
          %v1639 = vsel %vm1638, 0, %v1637
          %v1640 = vsub.s32 32, %v1639
          %v1641 = vshll.u32 %v1632, %v1639
          %v1642 = vshrl.u32 %v1624, %v1640
          %v1643 = vor.u32 %v1641, %v1642
          %v1644 = vsub.s32 4294967266, %v1639
          %v1645 = vadd.s32 %v1644, 127
          %v1646 = vshll.u32 %v1645, 23
          %v1647 = vor.u32 4788187, %v1646
          %v1648 = vand.u32 2147483647, %v1647
          %v1650 = vcvt.s32.f32 %v1643
          %v1651 = vmul.f32 %v1650, %v1648
          %v1652 = vxor.u32 %v1651, 2147483648
          %v1653 = vsel %vm1532, %v1652, %v1651
          %v1654 = vsub.s32 4, %v1630
          %v1655 = vsel %vm1532, %v1654, %v1630
          %v1656 = vsel %vm1531, %v1065, %v1653
          %v1657 = vsel %vm1531, 0, %v1655
          %v1658 = vmul.f32 %v1656, %v1656
          %v1659 = vmul.f32 %v1658, -0.001358992
          %v1660 = vadd.f32 %v1659, 0.041655596
          %v1661 = vmul.f32 %v1658, %v1660
          %v1662 = vadd.f32 %v1661, -0.4999988
          %v1663 = vmul.f32 %v1658, %v1662
          %v1664 = vadd.f32 1.0, %v1663
          %v1665 = vmul.f32 %v1656, %v1656
          %v1666 = vmul.f32 %v1665, -0.00019511016
          %v1667 = vadd.f32 %v1666, 0.008332121
          %v1668 = vmul.f32 %v1665, %v1667
          %v1669 = vadd.f32 %v1668, -0.16666654
          %v1670 = vmul.f32 %v1665, %v1669
          %v1671 = vadd.f32 %v1670, 1.0
          %v1672 = vmul.f32 %v1671, %v1656
          %vm1673 = vweird.f32 %v1065
          %v1674 = vand.u32 %v1657, 3
          %vm1675 = vcmp.lt.s32.totalorder %v1674, 2
          %vm1676 = vcmp.eq.s32.totalorder %v1674, 0
          %v1677 = vxor.u32 %v1672, 2147483648
          %v1678 = vsel %vm1676, %v1664, %v1677
          %vm1679 = vcmp.eq.s32.totalorder %v1674, 2
          %v1680 = vxor.u32 %v1664, 2147483648
          %v1681 = vsel %vm1679, %v1680, %v1672
          %v1682 = vsel %vm1675, %v1678, %v1681
          %v1683 = vsel %vm1673, nan, %v1682
          %v1684 = vrcp.pop %v1529
          %v1685 = vrcp.pop %v1683
          %v1686 = vmul.f32 %v1529, %v1684
          %v1687 = vmul.f32 %v1683, %v1685
          %v1688 = vsub.f32 2.0, %v1686
          %v1689 = vsub.f32 2.0, %v1687
          %v1690 = vmul.f32 %v1684, %v1688
          %v1691 = vmul.f32 %v1685, %v1689
          %v1692 = vmul.f32 %v1220, %v1690
          %v1693 = vmul.f32 %v1375, %v1691
          %v1694 = vstv %s1002
          %v1695 = vmul.f32 %v1692, %v1694
          %v1696 = vmul.f32 %v1693, %v1694
        $region44: #{tpu_custom_call.1} parent=27 // pred_fallthru
          %v1697 = vphi 0, %v1695
          %v1698 = vphi 0, %v1696
        %p1699 = pneg %p1059
        // Predicated region
        $region45: #{tpu_custom_call.1} parent=27 // pred_check
          _
        $region46: #{tpu_custom_call.1} parent=27 // pred_check_branch
          %1701 = sbr.rel (%p1059) target = $region48
        $region47: #{tpu_custom_call.1} parent=27 // pred_region
          %v1702 = vstv %s1001
          %v1703 = vmul.f32 %v1057, %v1702
          %v1704 = vmul.f32 %v1058, %v1702
          %v1705 = vmax.f32 %v1703, -15.0
          %v1706 = vmax.f32 %v1704, -15.0
          %v1707 = vmin.f32 %v1705, 15.0
          %v1708 = vmin.f32 %v1706, 15.0
          %p1709 = scmp.lt.f32.partialorder %s1000, 0.0
          %v1710 = vtanh.pop %v1707
          %v1711 = vtanh.pop %v1708
          %v1712 = vstv %s1002
          %v1713 = vmul.f32 %v1710, %v1712
          %v1714 = vmul.f32 %v1711, %v1712
          %s1715 = scalar_select %p1709, 1, 0
          %v1716 = vstv %s1715
          %vm1717 = vcmp.eq.s32.totalorder %v1716, 1
          %v1718 = vsel %vm1717, %v1713, %v1057
          %v1719 = vsel %vm1717, %v1714, %v1058
        $region48: #{tpu_custom_call.1} parent=27 // pred_fallthru
          %v1720 = vphi %v1697, %v1718
          %v1721 = vphi %v1698, %v1719
        %v1722 = vmul.f32 %v1720, %v1043
        %v1723 = vmul.f32 %v1721, %v1053
        %v1726 = vrot.slane %v1723, 4
        %v1727 = vsel %vm209, %v1722, %v1726
        %v1729 = vmul.f32 %v1008, %v1727
        %1731 = vset.pattern.permute.xlu0 0
        %1732 = vperm.xlu0 %1731, %v1010
        %v1733 = vpop.permute.xlu0 %1732
        %1736 = vst [vmem:[#allocation1] ss:$2 sm:$0xff] %v1008
        %v1737 = vld.sshfl [vmem:[#allocation1] sm:$0xff pattern:$0x75316420]
        %v1738 = vld.sshfl [vmem:[#allocation1 + $0x8] sm:$0xff pattern:$0x75316420]
        %v1741 = vmul.f32 %v1733, %v1737
        %v1742 = vmul.f32 %v1733, %v1738
        %v1743 = vsel %vm209, %v1741, 0.0
        %v1744 = vrot.slane %v1743, 4
        %v1745 = vadd.f32 %v1743, %v1744
        %v1746 = vrot.slane %v1745, 2
        %v1747 = vadd.f32 %v1745, %v1746
        %v1748 = vrot.slane %v1747, 1
        %v1749 = vadd.f32 %v1747, %v1748
        %v1750 = vsel %vm209, %v1742, 0.0
        %v1751 = vrot.slane %v1750, 4
        %v1752 = vadd.f32 %v1750, %v1751
        %v1753 = vrot.slane %v1752, 2
        %v1754 = vadd.f32 %v1752, %v1753
        %v1755 = vrot.slane %v1754, 1
        %v1756 = vadd.f32 %v1754, %v1755
        %v1757 = vmul.f32 %v1749, %v1722
        %v1758 = vmul.f32 %v1756, %v1723
        %v1759 = vmul.f32 %v1722, %v1722
        %v1760 = vmul.f32 %v1723, %v1723
        %v1761 = vmul.f32 %v1024, %v1759
        %v1762 = vmul.f32 %v1031, %v1760
        %v1763 = vstv %s1006
        %v1764 = vmul.f32 %v1763, %v1757
        %v1765 = vmul.f32 %v1763, %v1758
        %v1766 = vsub.f32 1.0, %v1764
        %v1767 = vsub.f32 1.0, %v1765
        %v1768 = vstv %s1000
        %v1769 = vmul.f32 %v1768, %v1761
        %v1770 = vmul.f32 %v1768, %v1762
        %v1771 = vsub.f32 %v1766, %v1769
        %v1772 = vsub.f32 %v1767, %v1770
        %v1773 = vmul.f32 %v1771, %v1733
        %v1774 = vmul.f32 %v1772, %v1733
        %v1775 = vstv %s1004
        %v1776 = vmul.f32 %v1775, %v1729
        %1778 = vst [vmem:[#allocation1] ss:$2 sm:$0xff] %v1776
        %v1779 = vld.sshfl [vmem:[#allocation1] sm:$0xff pattern:$0x75316420]
        %v1780 = vld.sshfl [vmem:[#allocation1 + $0x8] sm:$0xff pattern:$0x75316420]
        %v1783 = vadd.f32 %v1773, %v1779
        %v1784 = vadd.f32 %v1774, %v1780
        %v1785 = vstv %s1005
        %v1786 = vmul.f32 %v1785, %v1761
        %v1787 = vmul.f32 %v1785, %v1762
        %v1788 = vadd.f32 %v1766, %v1786
        %v1789 = vadd.f32 %v1767, %v1787
        %v1790 = vmax.f32 %v1788, 1e-15
        %v1791 = vmax.f32 %v1789, 1e-15
        %v1792 = vrcp.pop %v1790
        %v1793 = vrcp.pop %v1791
        %v1794 = vmul.f32 %v1790, %v1792
        %v1795 = vmul.f32 %v1791, %v1793
        %v1796 = vsub.f32 2.0, %v1794
        %v1797 = vsub.f32 2.0, %v1795
        %v1798 = vmul.f32 %v1792, %v1796
        %v1799 = vmul.f32 %v1793, %v1797
        %v1800 = vmul.f32 %v1783, %v1798
        %v1801 = vmul.f32 %v1784, %v1799
        %v1804 = vrot.slane %v1801, 4
        %v1805 = vsel %vm209, %v1800, %v1804
        %s1807 = scalar_lea.vmem %s190, 8 [#allocation7]
        %1808 = vst [vmem:[%s1807] sm:$0xff] %v1805
        %s1809 = sld [smem:[#allocation3 + $0x100]]
        %s1810 = sld [smem:[#allocation3 + $0x101]]
        %s1811 = sld [smem:[#allocation3 + $0x102]]
        %s1812 = sld [smem:[#allocation3 + $0x103]]
        %s1813 = sld [smem:[#allocation3 + $0x104]]
        %s1814 = sld [smem:[#allocation3 + $0x105]]
        %s1815 = sld [smem:[#allocation3 + $0x106]]
        %s1816 = scalar_lea.vmem %s169, 16 [#allocation4]
        %v1817 = vld [vmem:[%s1816] sm:$0xff]
        %s1818 = scalar_lea.vmem %s1, 8
        %v1819 = vld [vmem:[%s1818] sm:$0xf]
        %v1820 = vmul.f32 %v1817, %v1817
        %1822 = vst [vmem:[#allocation1] ss:$2 sm:$0xff] %v1820
        %v1823 = vld.sshfl [vmem:[#allocation1] sm:$0xff pattern:$0x75316420]
        %v1824 = vld.sshfl [vmem:[#allocation1 + $0x8] sm:$0xff pattern:$0x75316420]
        %v1827 = vsel %vm209, %v1823, 0.0
        %v1828 = vrot.slane %v1827, 4
        %v1829 = vadd.f32 %v1827, %v1828
        %v1830 = vrot.slane %v1829, 2
        %v1831 = vadd.f32 %v1829, %v1830
        %v1832 = vrot.slane %v1831, 1
        %v1833 = vadd.f32 %v1831, %v1832
        %v1834 = vsel %vm209, %v1824, 0.0
        %v1835 = vrot.slane %v1834, 4
        %v1836 = vadd.f32 %v1834, %v1835
        %v1837 = vrot.slane %v1836, 2
        %v1838 = vadd.f32 %v1836, %v1837
        %v1839 = vrot.slane %v1838, 1
        %v1840 = vadd.f32 %v1838, %v1839
        %v1841 = vmax.f32 %v1833, 1e-30
        %v1842 = vmax.f32 %v1840, 1e-30
        %v1843 = vrsqrt.pop %v1841
        %v1844 = vmul.f32 %v1843, %v1841
        %v1845 = vmul.f32 %v1844, %v1843
        %v1846 = vmul.f32 0.5, %v1845
        %v1847 = vsub.f32 1.5, %v1846
        %v1848 = vmul.f32 %v1843, %v1847
        %vm1849 = vweird.f32 %v1841
        %vm1850 = vweird.f32 %v1843
        %vm1851 = vmor %vm1849, %vm1850
        %v1852 = vsel %vm1851, %v1843, %v1848
        %v1853 = vrsqrt.pop %v1842
        %v1854 = vmul.f32 %v1853, %v1842
        %v1855 = vmul.f32 %v1854, %v1853
        %v1856 = vmul.f32 0.5, %v1855
        %v1857 = vsub.f32 1.5, %v1856
        %v1858 = vmul.f32 %v1853, %v1857
        %vm1859 = vweird.f32 %v1842
        %vm1860 = vweird.f32 %v1853
        %vm1861 = vmor %vm1859, %vm1860
        %v1862 = vsel %vm1861, %v1853, %v1858
        %v1863 = vmul.f32 %v1833, %v1852
        %v1864 = vmul.f32 %v1840, %v1862
        %v1865 = vstv %s1812
        %v1866 = vmul.f32 %v1865, %v1863
        %v1867 = vmul.f32 %v1865, %v1864
        %p1868 = scmp.gt.f32.partialorder %s1809, 0.0
        // Predicated region
        $region49: #{tpu_custom_call.1} parent=27 // pred_check
          %p1869 = pneg %p1868
        $region50: #{tpu_custom_call.1} parent=27 // pred_check_branch
          %1871 = sbr.rel (%p1869) target = $region52
        $region51: #{tpu_custom_call.1} parent=27 // pred_region
          %v1872 = vstv %s1810
          %v1873 = vmul.f32 %v1866, %v1872
          %v1874 = vmul.f32 %v1867, %v1872
          %v1875 = vand.u32 2147483647, %v1873
          %vm1876 = vcmp.le.f32.partialorder %v1875, 0.7853982
          %vm1877 = vcmp.lt.s32.totalorder %v1873, 0
          %v1878 = vand.u32 %v1873, 2139095040
          %v1879 = vshrl.u32 %v1878, 23
          %v1880 = vsub.s32 %v1879, 127
          %v1881 = vand.u32 2147483647, %v1873
          %v1882 = vand.u32 %v1881, 8388607
          %v1883 = vor.u32 %v1882, 8388608
          %v1884 = vsub.s32 0, %v1883
          %v1885 = vadd.s32 %v1880, 1
          %vm1886 = vcmp.gt.s32.totalorder %v1885, 0
          %v1887 = vsel %vm1886, %v1885, 0
          %v1888 = vshrl.u32 %v1887, 5
          %v1889 = vand.u32 %v1887, 31
          %v1890 = vsub.s32 32, %v1889
          %v1891 = vshrl.u32 683565275, %v1890
          %v1892 = vshll.u32 683565275, %v1889
          %v1893 = vshrl.u32 2475754826, %v1890
          %v1894 = vor.u32 %v1892, %v1893
          %v1895 = vshll.u32 2475754826, %v1889
          %v1896 = vshrl.u32 2131351028, %v1890
          %v1897 = vor.u32 %v1895, %v1896
          %v1898 = vshll.u32 2131351028, %v1889
          %v1899 = vshrl.u32 2102212464, %v1890
          %v1900 = vor.u32 %v1898, %v1899
          %v1901 = vshll.u32 2102212464, %v1889
          %v1902 = vshrl.u32 920167782, %v1890
          %v1903 = vor.u32 %v1901, %v1902
          %v1904 = vshll.u32 920167782, %v1889
          %v1905 = vshrl.u32 1326507024, %v1890
          %v1906 = vor.u32 %v1904, %v1905
          %vm1907 = vcmp.lt.s32.totalorder %v1888, 1
          %vm1908 = vcmp.lt.s32.totalorder %v1888, 2
          %vm1909 = vcmp.lt.s32.totalorder %v1888, 3
          %vm1910 = vcmp.lt.s32.totalorder %v1888, 4
          %v1911 = vsel %vm1907, %v1891, %v1894
          %v1912 = vsel %vm1910, %v1900, 2102212464
          %v1913 = vsel %vm1909, %v1897, %v1912
          %v1914 = vsel %vm1908, %v1911, %v1913
          %v1915 = vsel %vm1907, %v1894, %v1897
          %v1916 = vsel %vm1910, %v1903, 920167782
          %v1917 = vsel %vm1909, %v1900, %v1916
          %v1918 = vsel %vm1908, %v1915, %v1917
          %v1919 = vsel %vm1907, %v1897, %v1900
          %v1920 = vsel %vm1910, %v1906, 1326507024
          %v1921 = vsel %vm1909, %v1903, %v1920
          %v1922 = vsel %vm1908, %v1919, %v1921
          %v1923 = vshll.u32 %v1883, 8
          %v1924 = vand.u32 %v1923, 65535
          %v1925 = vshrl.u32 %v1923, 16
          %v1926 = vand.u32 %v1922, 65535
          %v1927 = vshrl.u32 %v1922, 16
          %v1928 = vmul.u32 %v1924, %v1926
          %v1929 = vmul.u32 %v1924, %v1927
          %v1930 = vmul.u32 %v1925, %v1926
          %v1931 = vmul.u32 %v1925, %v1927
          %v1932 = vshll.u32 %v1929, 16
          %v1933 = vshrl.u32 %v1929, 16
          %v1934 = vshll.u32 %v1930, 16
          %v1935 = vshrl.u32 %v1930, 16
          %vm1936 = vc.u32 %v1928, %v1932
          %v1937 = vsel %vm1936, 1, 0
          %v1938 = vadd.s32 %v1928, %v1932
          %v1939 = vadd.s32 %v1931, %v1937
          %vm1940 = vc.u32 %v1938, %v1934
          %v1941 = vsel %vm1940, 1, 0
          %v1942 = vadd.s32 %v1938, %v1934
          %v1943 = vadd.s32 %v1939, %v1941
          %v1944 = vadd.s32 %v1943, %v1933
          %v1945 = vadd.s32 %v1944, %v1935
          %v1946 = vand.u32 %v1923, 65535
          %v1947 = vshrl.u32 %v1923, 16
          %v1948 = vand.u32 %v1918, 65535
          %v1949 = vshrl.u32 %v1918, 16
          %v1950 = vmul.u32 %v1946, %v1948
          %v1951 = vmul.u32 %v1946, %v1949
          %v1952 = vmul.u32 %v1947, %v1948
          %v1953 = vmul.u32 %v1947, %v1949
          %v1954 = vshll.u32 %v1951, 16
          %v1955 = vshrl.u32 %v1951, 16
          %v1956 = vshll.u32 %v1952, 16
          %v1957 = vshrl.u32 %v1952, 16
          %vm1958 = vc.u32 %v1950, %v1954
          %v1959 = vsel %vm1958, 1, 0
          %v1960 = vadd.s32 %v1950, %v1954
          %v1961 = vadd.s32 %v1953, %v1959
          %vm1962 = vc.u32 %v1960, %v1956
          %v1963 = vsel %vm1962, 1, 0
          %v1964 = vadd.s32 %v1960, %v1956
          %v1965 = vadd.s32 %v1961, %v1963
          %v1966 = vadd.s32 %v1965, %v1955
          %v1967 = vadd.s32 %v1966, %v1957
          %v1968 = vmul.u32 %v1923, %v1914
          %v1969 = vadd.s32 %v1945, %v1964
          %vm1970 = vc.u32 %v1945, %v1964
          %v1971 = vadd.s32 %v1967, 1
          %v1972 = vsel %vm1970, %v1971, %v1967
          %v1973 = vadd.s32 %v1968, %v1972
          %v1974 = vadd.s32 %v1973, 536870912
          %v1975 = vshrl.u32 %v1974, 30
          %v1976 = vshll.u32 %v1975, 30
          %v1977 = vsub.s32 %v1973, %v1976
          %vm1978 = vcmp.lt.s32.totalorder %v1977, 0
          %v1979 = vsub.s32 0, %v1977
          %v1980 = vsel %vm1978, %v1979, %v1977
          %v1981 = vclz %v1980
          %v1982 = vsub.s32 %v1981, 2
          %vm1983 = vcmp.gt.s32.totalorder 0, %v1982
          %v1984 = vsel %vm1983, 0, %v1982
          %v1985 = vsub.s32 32, %v1984
          %v1986 = vshll.u32 %v1977, %v1984
          %v1987 = vshrl.u32 %v1969, %v1985
          %v1988 = vor.u32 %v1986, %v1987
          %v1989 = vsub.s32 4294967266, %v1984
          %v1990 = vadd.s32 %v1989, 127
          %v1991 = vshll.u32 %v1990, 23
          %v1992 = vor.u32 4788187, %v1991
          %v1993 = vand.u32 2147483647, %v1992
          %v1995 = vcvt.s32.f32 %v1988
          %v1996 = vmul.f32 %v1995, %v1993
          %v1997 = vxor.u32 %v1996, 2147483648
          %v1998 = vsel %vm1877, %v1997, %v1996
          %v1999 = vsub.s32 4, %v1975
          %v2000 = vsel %vm1877, %v1999, %v1975
          %v2001 = vsel %vm1876, %v1873, %v1998
          %v2002 = vsel %vm1876, 0, %v2000
          %v2003 = vmul.f32 %v2001, %v2001
          %v2004 = vmul.f32 %v2003, -0.001358992
          %v2005 = vadd.f32 %v2004, 0.041655596
          %v2006 = vmul.f32 %v2003, %v2005
          %v2007 = vadd.f32 %v2006, -0.4999988
          %v2008 = vmul.f32 %v2003, %v2007
          %v2009 = vadd.f32 1.0, %v2008
          %v2010 = vmul.f32 %v2001, %v2001
          %v2011 = vmul.f32 %v2010, -0.00019511016
          %v2012 = vadd.f32 %v2011, 0.008332121
          %v2013 = vmul.f32 %v2010, %v2012
          %v2014 = vadd.f32 %v2013, -0.16666654
          %v2015 = vmul.f32 %v2010, %v2014
          %v2016 = vadd.f32 %v2015, 1.0
          %v2017 = vmul.f32 %v2016, %v2001
          %vm2018 = vweird.f32 %v1873
          %v2019 = vadd.s32 %v2002, 3
          %v2020 = vand.u32 %v2019, 3
          %vm2021 = vcmp.lt.s32.totalorder %v2020, 2
          %vm2022 = vcmp.eq.s32.totalorder %v2020, 0
          %v2023 = vxor.u32 %v2017, 2147483648
          %v2024 = vsel %vm2022, %v2009, %v2023
          %vm2025 = vcmp.eq.s32.totalorder %v2020, 2
          %v2026 = vxor.u32 %v2009, 2147483648
          %v2027 = vsel %vm2025, %v2026, %v2017
          %v2028 = vsel %vm2021, %v2024, %v2027
          %v2029 = vsel %vm2018, nan, %v2028
          %v2030 = vand.u32 2147483647, %v1874
          %vm2031 = vcmp.le.f32.partialorder %v2030, 0.7853982
          %vm2032 = vcmp.lt.s32.totalorder %v1874, 0
          %v2033 = vand.u32 %v1874, 2139095040
          %v2034 = vshrl.u32 %v2033, 23
          %v2035 = vsub.s32 %v2034, 127
          %v2036 = vand.u32 2147483647, %v1874
          %v2037 = vand.u32 %v2036, 8388607
          %v2038 = vor.u32 %v2037, 8388608
          %v2039 = vsub.s32 0, %v2038
          %v2040 = vadd.s32 %v2035, 1
          %vm2041 = vcmp.gt.s32.totalorder %v2040, 0
          %v2042 = vsel %vm2041, %v2040, 0
          %v2043 = vshrl.u32 %v2042, 5
          %v2044 = vand.u32 %v2042, 31
          %v2045 = vsub.s32 32, %v2044
          %v2046 = vshrl.u32 683565275, %v2045
          %v2047 = vshll.u32 683565275, %v2044
          %v2048 = vshrl.u32 2475754826, %v2045
          %v2049 = vor.u32 %v2047, %v2048
          %v2050 = vshll.u32 2475754826, %v2044
          %v2051 = vshrl.u32 2131351028, %v2045
          %v2052 = vor.u32 %v2050, %v2051
          %v2053 = vshll.u32 2131351028, %v2044
          %v2054 = vshrl.u32 2102212464, %v2045
          %v2055 = vor.u32 %v2053, %v2054
          %v2056 = vshll.u32 2102212464, %v2044
          %v2057 = vshrl.u32 920167782, %v2045
          %v2058 = vor.u32 %v2056, %v2057
          %v2059 = vshll.u32 920167782, %v2044
          %v2060 = vshrl.u32 1326507024, %v2045
          %v2061 = vor.u32 %v2059, %v2060
          %vm2062 = vcmp.lt.s32.totalorder %v2043, 1
          %vm2063 = vcmp.lt.s32.totalorder %v2043, 2
          %vm2064 = vcmp.lt.s32.totalorder %v2043, 3
          %vm2065 = vcmp.lt.s32.totalorder %v2043, 4
          %v2066 = vsel %vm2062, %v2046, %v2049
          %v2067 = vsel %vm2065, %v2055, 2102212464
          %v2068 = vsel %vm2064, %v2052, %v2067
          %v2069 = vsel %vm2063, %v2066, %v2068
          %v2070 = vsel %vm2062, %v2049, %v2052
          %v2071 = vsel %vm2065, %v2058, 920167782
          %v2072 = vsel %vm2064, %v2055, %v2071
          %v2073 = vsel %vm2063, %v2070, %v2072
          %v2074 = vsel %vm2062, %v2052, %v2055
          %v2075 = vsel %vm2065, %v2061, 1326507024
          %v2076 = vsel %vm2064, %v2058, %v2075
          %v2077 = vsel %vm2063, %v2074, %v2076
          %v2078 = vshll.u32 %v2038, 8
          %v2079 = vand.u32 %v2078, 65535
          %v2080 = vshrl.u32 %v2078, 16
          %v2081 = vand.u32 %v2077, 65535
          %v2082 = vshrl.u32 %v2077, 16
          %v2083 = vmul.u32 %v2079, %v2081
          %v2084 = vmul.u32 %v2079, %v2082
          %v2085 = vmul.u32 %v2080, %v2081
          %v2086 = vmul.u32 %v2080, %v2082
          %v2087 = vshll.u32 %v2084, 16
          %v2088 = vshrl.u32 %v2084, 16
          %v2089 = vshll.u32 %v2085, 16
          %v2090 = vshrl.u32 %v2085, 16
          %vm2091 = vc.u32 %v2083, %v2087
          %v2092 = vsel %vm2091, 1, 0
          %v2093 = vadd.s32 %v2083, %v2087
          %v2094 = vadd.s32 %v2086, %v2092
          %vm2095 = vc.u32 %v2093, %v2089
          %v2096 = vsel %vm2095, 1, 0
          %v2097 = vadd.s32 %v2093, %v2089
          %v2098 = vadd.s32 %v2094, %v2096
          %v2099 = vadd.s32 %v2098, %v2088
          %v2100 = vadd.s32 %v2099, %v2090
          %v2101 = vand.u32 %v2078, 65535
          %v2102 = vshrl.u32 %v2078, 16
          %v2103 = vand.u32 %v2073, 65535
          %v2104 = vshrl.u32 %v2073, 16
          %v2105 = vmul.u32 %v2101, %v2103
          %v2106 = vmul.u32 %v2101, %v2104
          %v2107 = vmul.u32 %v2102, %v2103
          %v2108 = vmul.u32 %v2102, %v2104
          %v2109 = vshll.u32 %v2106, 16
          %v2110 = vshrl.u32 %v2106, 16
          %v2111 = vshll.u32 %v2107, 16
          %v2112 = vshrl.u32 %v2107, 16
          %vm2113 = vc.u32 %v2105, %v2109
          %v2114 = vsel %vm2113, 1, 0
          %v2115 = vadd.s32 %v2105, %v2109
          %v2116 = vadd.s32 %v2108, %v2114
          %vm2117 = vc.u32 %v2115, %v2111
          %v2118 = vsel %vm2117, 1, 0
          %v2119 = vadd.s32 %v2115, %v2111
          %v2120 = vadd.s32 %v2116, %v2118
          %v2121 = vadd.s32 %v2120, %v2110
          %v2122 = vadd.s32 %v2121, %v2112
          %v2123 = vmul.u32 %v2078, %v2069
          %v2124 = vadd.s32 %v2100, %v2119
          %vm2125 = vc.u32 %v2100, %v2119
          %v2126 = vadd.s32 %v2122, 1
          %v2127 = vsel %vm2125, %v2126, %v2122
          %v2128 = vadd.s32 %v2123, %v2127
          %v2129 = vadd.s32 %v2128, 536870912
          %v2130 = vshrl.u32 %v2129, 30
          %v2131 = vshll.u32 %v2130, 30
          %v2132 = vsub.s32 %v2128, %v2131
          %vm2133 = vcmp.lt.s32.totalorder %v2132, 0
          %v2134 = vsub.s32 0, %v2132
          %v2135 = vsel %vm2133, %v2134, %v2132
          %v2136 = vclz %v2135
          %v2137 = vsub.s32 %v2136, 2
          %vm2138 = vcmp.gt.s32.totalorder 0, %v2137
          %v2139 = vsel %vm2138, 0, %v2137
          %v2140 = vsub.s32 32, %v2139
          %v2141 = vshll.u32 %v2132, %v2139
          %v2142 = vshrl.u32 %v2124, %v2140
          %v2143 = vor.u32 %v2141, %v2142
          %v2144 = vsub.s32 4294967266, %v2139
          %v2145 = vadd.s32 %v2144, 127
          %v2146 = vshll.u32 %v2145, 23
          %v2147 = vor.u32 4788187, %v2146
          %v2148 = vand.u32 2147483647, %v2147
          %v2150 = vcvt.s32.f32 %v2143
          %v2151 = vmul.f32 %v2150, %v2148
          %v2152 = vxor.u32 %v2151, 2147483648
          %v2153 = vsel %vm2032, %v2152, %v2151
          %v2154 = vsub.s32 4, %v2130
          %v2155 = vsel %vm2032, %v2154, %v2130
          %v2156 = vsel %vm2031, %v1874, %v2153
          %v2157 = vsel %vm2031, 0, %v2155
          %v2158 = vmul.f32 %v2156, %v2156
          %v2159 = vmul.f32 %v2158, -0.001358992
          %v2160 = vadd.f32 %v2159, 0.041655596
          %v2161 = vmul.f32 %v2158, %v2160
          %v2162 = vadd.f32 %v2161, -0.4999988
          %v2163 = vmul.f32 %v2158, %v2162
          %v2164 = vadd.f32 1.0, %v2163
          %v2165 = vmul.f32 %v2156, %v2156
          %v2166 = vmul.f32 %v2165, -0.00019511016
          %v2167 = vadd.f32 %v2166, 0.008332121
          %v2168 = vmul.f32 %v2165, %v2167
          %v2169 = vadd.f32 %v2168, -0.16666654
          %v2170 = vmul.f32 %v2165, %v2169
          %v2171 = vadd.f32 %v2170, 1.0
          %v2172 = vmul.f32 %v2171, %v2156
          %vm2173 = vweird.f32 %v1874
          %v2174 = vadd.s32 %v2157, 3
          %v2175 = vand.u32 %v2174, 3
          %vm2176 = vcmp.lt.s32.totalorder %v2175, 2
          %vm2177 = vcmp.eq.s32.totalorder %v2175, 0
          %v2178 = vxor.u32 %v2172, 2147483648
          %v2179 = vsel %vm2177, %v2164, %v2178
          %vm2180 = vcmp.eq.s32.totalorder %v2175, 2
          %v2181 = vxor.u32 %v2164, 2147483648
          %v2182 = vsel %vm2180, %v2181, %v2172
          %v2183 = vsel %vm2176, %v2179, %v2182
          %v2184 = vsel %vm2173, nan, %v2183
          %v2185 = vand.u32 2147483647, %v1873
          %vm2186 = vcmp.le.f32.partialorder %v2185, 0.7853982
          %vm2187 = vcmp.lt.s32.totalorder %v1873, 0
          %v2188 = vand.u32 %v1873, 2139095040
          %v2189 = vshrl.u32 %v2188, 23
          %v2190 = vsub.s32 %v2189, 127
          %v2191 = vand.u32 2147483647, %v1873
          %v2192 = vand.u32 %v2191, 8388607
          %v2193 = vor.u32 %v2192, 8388608
          %v2194 = vsub.s32 0, %v2193
          %v2195 = vadd.s32 %v2190, 1
          %vm2196 = vcmp.gt.s32.totalorder %v2195, 0
          %v2197 = vsel %vm2196, %v2195, 0
          %v2198 = vshrl.u32 %v2197, 5
          %v2199 = vand.u32 %v2197, 31
          %v2200 = vsub.s32 32, %v2199
          %v2201 = vshrl.u32 683565275, %v2200
          %v2202 = vshll.u32 683565275, %v2199
          %v2203 = vshrl.u32 2475754826, %v2200
          %v2204 = vor.u32 %v2202, %v2203
          %v2205 = vshll.u32 2475754826, %v2199
          %v2206 = vshrl.u32 2131351028, %v2200
          %v2207 = vor.u32 %v2205, %v2206
          %v2208 = vshll.u32 2131351028, %v2199
          %v2209 = vshrl.u32 2102212464, %v2200
          %v2210 = vor.u32 %v2208, %v2209
          %v2211 = vshll.u32 2102212464, %v2199
          %v2212 = vshrl.u32 920167782, %v2200
          %v2213 = vor.u32 %v2211, %v2212
          %v2214 = vshll.u32 920167782, %v2199
          %v2215 = vshrl.u32 1326507024, %v2200
          %v2216 = vor.u32 %v2214, %v2215
          %vm2217 = vcmp.lt.s32.totalorder %v2198, 1
          %vm2218 = vcmp.lt.s32.totalorder %v2198, 2
          %vm2219 = vcmp.lt.s32.totalorder %v2198, 3
          %vm2220 = vcmp.lt.s32.totalorder %v2198, 4
          %v2221 = vsel %vm2217, %v2201, %v2204
          %v2222 = vsel %vm2220, %v2210, 2102212464
          %v2223 = vsel %vm2219, %v2207, %v2222
          %v2224 = vsel %vm2218, %v2221, %v2223
          %v2225 = vsel %vm2217, %v2204, %v2207
          %v2226 = vsel %vm2220, %v2213, 920167782
          %v2227 = vsel %vm2219, %v2210, %v2226
          %v2228 = vsel %vm2218, %v2225, %v2227
          %v2229 = vsel %vm2217, %v2207, %v2210
          %v2230 = vsel %vm2220, %v2216, 1326507024
          %v2231 = vsel %vm2219, %v2213, %v2230
          %v2232 = vsel %vm2218, %v2229, %v2231
          %v2233 = vshll.u32 %v2193, 8
          %v2234 = vand.u32 %v2233, 65535
          %v2235 = vshrl.u32 %v2233, 16
          %v2236 = vand.u32 %v2232, 65535
          %v2237 = vshrl.u32 %v2232, 16
          %v2238 = vmul.u32 %v2234, %v2236
          %v2239 = vmul.u32 %v2234, %v2237
          %v2240 = vmul.u32 %v2235, %v2236
          %v2241 = vmul.u32 %v2235, %v2237
          %v2242 = vshll.u32 %v2239, 16
          %v2243 = vshrl.u32 %v2239, 16
          %v2244 = vshll.u32 %v2240, 16
          %v2245 = vshrl.u32 %v2240, 16
          %vm2246 = vc.u32 %v2238, %v2242
          %v2247 = vsel %vm2246, 1, 0
          %v2248 = vadd.s32 %v2238, %v2242
          %v2249 = vadd.s32 %v2241, %v2247
          %vm2250 = vc.u32 %v2248, %v2244
          %v2251 = vsel %vm2250, 1, 0
          %v2252 = vadd.s32 %v2248, %v2244
          %v2253 = vadd.s32 %v2249, %v2251
          %v2254 = vadd.s32 %v2253, %v2243
          %v2255 = vadd.s32 %v2254, %v2245
          %v2256 = vand.u32 %v2233, 65535
          %v2257 = vshrl.u32 %v2233, 16
          %v2258 = vand.u32 %v2228, 65535
          %v2259 = vshrl.u32 %v2228, 16
          %v2260 = vmul.u32 %v2256, %v2258
          %v2261 = vmul.u32 %v2256, %v2259
          %v2262 = vmul.u32 %v2257, %v2258
          %v2263 = vmul.u32 %v2257, %v2259
          %v2264 = vshll.u32 %v2261, 16
          %v2265 = vshrl.u32 %v2261, 16
          %v2266 = vshll.u32 %v2262, 16
          %v2267 = vshrl.u32 %v2262, 16
          %vm2268 = vc.u32 %v2260, %v2264
          %v2269 = vsel %vm2268, 1, 0
          %v2270 = vadd.s32 %v2260, %v2264
          %v2271 = vadd.s32 %v2263, %v2269
          %vm2272 = vc.u32 %v2270, %v2266
          %v2273 = vsel %vm2272, 1, 0
          %v2274 = vadd.s32 %v2270, %v2266
          %v2275 = vadd.s32 %v2271, %v2273
          %v2276 = vadd.s32 %v2275, %v2265
          %v2277 = vadd.s32 %v2276, %v2267
          %v2278 = vmul.u32 %v2233, %v2224
          %v2279 = vadd.s32 %v2255, %v2274
          %vm2280 = vc.u32 %v2255, %v2274
          %v2281 = vadd.s32 %v2277, 1
          %v2282 = vsel %vm2280, %v2281, %v2277
          %v2283 = vadd.s32 %v2278, %v2282
          %v2284 = vadd.s32 %v2283, 536870912
          %v2285 = vshrl.u32 %v2284, 30
          %v2286 = vshll.u32 %v2285, 30
          %v2287 = vsub.s32 %v2283, %v2286
          %vm2288 = vcmp.lt.s32.totalorder %v2287, 0
          %v2289 = vsub.s32 0, %v2287
          %v2290 = vsel %vm2288, %v2289, %v2287
          %v2291 = vclz %v2290
          %v2292 = vsub.s32 %v2291, 2
          %vm2293 = vcmp.gt.s32.totalorder 0, %v2292
          %v2294 = vsel %vm2293, 0, %v2292
          %v2295 = vsub.s32 32, %v2294
          %v2296 = vshll.u32 %v2287, %v2294
          %v2297 = vshrl.u32 %v2279, %v2295
          %v2298 = vor.u32 %v2296, %v2297
          %v2299 = vsub.s32 4294967266, %v2294
          %v2300 = vadd.s32 %v2299, 127
          %v2301 = vshll.u32 %v2300, 23
          %v2302 = vor.u32 4788187, %v2301
          %v2303 = vand.u32 2147483647, %v2302
          %v2305 = vcvt.s32.f32 %v2298
          %v2306 = vmul.f32 %v2305, %v2303
          %v2307 = vxor.u32 %v2306, 2147483648
          %v2308 = vsel %vm2187, %v2307, %v2306
          %v2309 = vsub.s32 4, %v2285
          %v2310 = vsel %vm2187, %v2309, %v2285
          %v2311 = vsel %vm2186, %v1873, %v2308
          %v2312 = vsel %vm2186, 0, %v2310
          %v2313 = vmul.f32 %v2311, %v2311
          %v2314 = vmul.f32 %v2313, -0.001358992
          %v2315 = vadd.f32 %v2314, 0.041655596
          %v2316 = vmul.f32 %v2313, %v2315
          %v2317 = vadd.f32 %v2316, -0.4999988
          %v2318 = vmul.f32 %v2313, %v2317
          %v2319 = vadd.f32 1.0, %v2318
          %v2320 = vmul.f32 %v2311, %v2311
          %v2321 = vmul.f32 %v2320, -0.00019511016
          %v2322 = vadd.f32 %v2321, 0.008332121
          %v2323 = vmul.f32 %v2320, %v2322
          %v2324 = vadd.f32 %v2323, -0.16666654
          %v2325 = vmul.f32 %v2320, %v2324
          %v2326 = vadd.f32 %v2325, 1.0
          %v2327 = vmul.f32 %v2326, %v2311
          %vm2328 = vweird.f32 %v1873
          %v2329 = vand.u32 %v2312, 3
          %vm2330 = vcmp.lt.s32.totalorder %v2329, 2
          %vm2331 = vcmp.eq.s32.totalorder %v2329, 0
          %v2332 = vxor.u32 %v2327, 2147483648
          %v2333 = vsel %vm2331, %v2319, %v2332
          %vm2334 = vcmp.eq.s32.totalorder %v2329, 2
          %v2335 = vxor.u32 %v2319, 2147483648
          %v2336 = vsel %vm2334, %v2335, %v2327
          %v2337 = vsel %vm2330, %v2333, %v2336
          %v2338 = vsel %vm2328, nan, %v2337
          %v2339 = vand.u32 2147483647, %v1874
          %vm2340 = vcmp.le.f32.partialorder %v2339, 0.7853982
          %vm2341 = vcmp.lt.s32.totalorder %v1874, 0
          %v2342 = vand.u32 %v1874, 2139095040
          %v2343 = vshrl.u32 %v2342, 23
          %v2344 = vsub.s32 %v2343, 127
          %v2345 = vand.u32 2147483647, %v1874
          %v2346 = vand.u32 %v2345, 8388607
          %v2347 = vor.u32 %v2346, 8388608
          %v2348 = vsub.s32 0, %v2347
          %v2349 = vadd.s32 %v2344, 1
          %vm2350 = vcmp.gt.s32.totalorder %v2349, 0
          %v2351 = vsel %vm2350, %v2349, 0
          %v2352 = vshrl.u32 %v2351, 5
          %v2353 = vand.u32 %v2351, 31
          %v2354 = vsub.s32 32, %v2353
          %v2355 = vshrl.u32 683565275, %v2354
          %v2356 = vshll.u32 683565275, %v2353
          %v2357 = vshrl.u32 2475754826, %v2354
          %v2358 = vor.u32 %v2356, %v2357
          %v2359 = vshll.u32 2475754826, %v2353
          %v2360 = vshrl.u32 2131351028, %v2354
          %v2361 = vor.u32 %v2359, %v2360
          %v2362 = vshll.u32 2131351028, %v2353
          %v2363 = vshrl.u32 2102212464, %v2354
          %v2364 = vor.u32 %v2362, %v2363
          %v2365 = vshll.u32 2102212464, %v2353
          %v2366 = vshrl.u32 920167782, %v2354
          %v2367 = vor.u32 %v2365, %v2366
          %v2368 = vshll.u32 920167782, %v2353
          %v2369 = vshrl.u32 1326507024, %v2354
          %v2370 = vor.u32 %v2368, %v2369
          %vm2371 = vcmp.lt.s32.totalorder %v2352, 1
          %vm2372 = vcmp.lt.s32.totalorder %v2352, 2
          %vm2373 = vcmp.lt.s32.totalorder %v2352, 3
          %vm2374 = vcmp.lt.s32.totalorder %v2352, 4
          %v2375 = vsel %vm2371, %v2355, %v2358
          %v2376 = vsel %vm2374, %v2364, 2102212464
          %v2377 = vsel %vm2373, %v2361, %v2376
          %v2378 = vsel %vm2372, %v2375, %v2377
          %v2379 = vsel %vm2371, %v2358, %v2361
          %v2380 = vsel %vm2374, %v2367, 920167782
          %v2381 = vsel %vm2373, %v2364, %v2380
          %v2382 = vsel %vm2372, %v2379, %v2381
          %v2383 = vsel %vm2371, %v2361, %v2364
          %v2384 = vsel %vm2374, %v2370, 1326507024
          %v2385 = vsel %vm2373, %v2367, %v2384
          %v2386 = vsel %vm2372, %v2383, %v2385
          %v2387 = vshll.u32 %v2347, 8
          %v2388 = vand.u32 %v2387, 65535
          %v2389 = vshrl.u32 %v2387, 16
          %v2390 = vand.u32 %v2386, 65535
          %v2391 = vshrl.u32 %v2386, 16
          %v2392 = vmul.u32 %v2388, %v2390
          %v2393 = vmul.u32 %v2388, %v2391
          %v2394 = vmul.u32 %v2389, %v2390
          %v2395 = vmul.u32 %v2389, %v2391
          %v2396 = vshll.u32 %v2393, 16
          %v2397 = vshrl.u32 %v2393, 16
          %v2398 = vshll.u32 %v2394, 16
          %v2399 = vshrl.u32 %v2394, 16
          %vm2400 = vc.u32 %v2392, %v2396
          %v2401 = vsel %vm2400, 1, 0
          %v2402 = vadd.s32 %v2392, %v2396
          %v2403 = vadd.s32 %v2395, %v2401
          %vm2404 = vc.u32 %v2402, %v2398
          %v2405 = vsel %vm2404, 1, 0
          %v2406 = vadd.s32 %v2402, %v2398
          %v2407 = vadd.s32 %v2403, %v2405
          %v2408 = vadd.s32 %v2407, %v2397
          %v2409 = vadd.s32 %v2408, %v2399
          %v2410 = vand.u32 %v2387, 65535
          %v2411 = vshrl.u32 %v2387, 16
          %v2412 = vand.u32 %v2382, 65535
          %v2413 = vshrl.u32 %v2382, 16
          %v2414 = vmul.u32 %v2410, %v2412
          %v2415 = vmul.u32 %v2410, %v2413
          %v2416 = vmul.u32 %v2411, %v2412
          %v2417 = vmul.u32 %v2411, %v2413
          %v2418 = vshll.u32 %v2415, 16
          %v2419 = vshrl.u32 %v2415, 16
          %v2420 = vshll.u32 %v2416, 16
          %v2421 = vshrl.u32 %v2416, 16
          %vm2422 = vc.u32 %v2414, %v2418
          %v2423 = vsel %vm2422, 1, 0
          %v2424 = vadd.s32 %v2414, %v2418
          %v2425 = vadd.s32 %v2417, %v2423
          %vm2426 = vc.u32 %v2424, %v2420
          %v2427 = vsel %vm2426, 1, 0
          %v2428 = vadd.s32 %v2424, %v2420
          %v2429 = vadd.s32 %v2425, %v2427
          %v2430 = vadd.s32 %v2429, %v2419
          %v2431 = vadd.s32 %v2430, %v2421
          %v2432 = vmul.u32 %v2387, %v2378
          %v2433 = vadd.s32 %v2409, %v2428
          %vm2434 = vc.u32 %v2409, %v2428
          %v2435 = vadd.s32 %v2431, 1
          %v2436 = vsel %vm2434, %v2435, %v2431
          %v2437 = vadd.s32 %v2432, %v2436
          %v2438 = vadd.s32 %v2437, 536870912
          %v2439 = vshrl.u32 %v2438, 30
          %v2440 = vshll.u32 %v2439, 30
          %v2441 = vsub.s32 %v2437, %v2440
          %vm2442 = vcmp.lt.s32.totalorder %v2441, 0
          %v2443 = vsub.s32 0, %v2441
          %v2444 = vsel %vm2442, %v2443, %v2441
          %v2445 = vclz %v2444
          %v2446 = vsub.s32 %v2445, 2
          %vm2447 = vcmp.gt.s32.totalorder 0, %v2446
          %v2448 = vsel %vm2447, 0, %v2446
          %v2449 = vsub.s32 32, %v2448
          %v2450 = vshll.u32 %v2441, %v2448
          %v2451 = vshrl.u32 %v2433, %v2449
          %v2452 = vor.u32 %v2450, %v2451
          %v2453 = vsub.s32 4294967266, %v2448
          %v2454 = vadd.s32 %v2453, 127
          %v2455 = vshll.u32 %v2454, 23
          %v2456 = vor.u32 4788187, %v2455
          %v2457 = vand.u32 2147483647, %v2456
          %v2459 = vcvt.s32.f32 %v2452
          %v2460 = vmul.f32 %v2459, %v2457
          %v2461 = vxor.u32 %v2460, 2147483648
          %v2462 = vsel %vm2341, %v2461, %v2460
          %v2463 = vsub.s32 4, %v2439
          %v2464 = vsel %vm2341, %v2463, %v2439
          %v2465 = vsel %vm2340, %v1874, %v2462
          %v2466 = vsel %vm2340, 0, %v2464
          %v2467 = vmul.f32 %v2465, %v2465
          %v2468 = vmul.f32 %v2467, -0.001358992
          %v2469 = vadd.f32 %v2468, 0.041655596
          %v2470 = vmul.f32 %v2467, %v2469
          %v2471 = vadd.f32 %v2470, -0.4999988
          %v2472 = vmul.f32 %v2467, %v2471
          %v2473 = vadd.f32 1.0, %v2472
          %v2474 = vmul.f32 %v2465, %v2465
          %v2475 = vmul.f32 %v2474, -0.00019511016
          %v2476 = vadd.f32 %v2475, 0.008332121
          %v2477 = vmul.f32 %v2474, %v2476
          %v2478 = vadd.f32 %v2477, -0.16666654
          %v2479 = vmul.f32 %v2474, %v2478
          %v2480 = vadd.f32 %v2479, 1.0
          %v2481 = vmul.f32 %v2480, %v2465
          %vm2482 = vweird.f32 %v1874
          %v2483 = vand.u32 %v2466, 3
          %vm2484 = vcmp.lt.s32.totalorder %v2483, 2
          %vm2485 = vcmp.eq.s32.totalorder %v2483, 0
          %v2486 = vxor.u32 %v2481, 2147483648
          %v2487 = vsel %vm2485, %v2473, %v2486
          %vm2488 = vcmp.eq.s32.totalorder %v2483, 2
          %v2489 = vxor.u32 %v2473, 2147483648
          %v2490 = vsel %vm2488, %v2489, %v2481
          %v2491 = vsel %vm2484, %v2487, %v2490
          %v2492 = vsel %vm2482, nan, %v2491
          %v2493 = vrcp.pop %v2338
          %v2494 = vrcp.pop %v2492
          %v2495 = vmul.f32 %v2338, %v2493
          %v2496 = vmul.f32 %v2492, %v2494
          %v2497 = vsub.f32 2.0, %v2495
          %v2498 = vsub.f32 2.0, %v2496
          %v2499 = vmul.f32 %v2493, %v2497
          %v2500 = vmul.f32 %v2494, %v2498
          %v2501 = vmul.f32 %v2029, %v2499
          %v2502 = vmul.f32 %v2184, %v2500
          %v2503 = vstv %s1811
          %v2504 = vmul.f32 %v2501, %v2503
          %v2505 = vmul.f32 %v2502, %v2503
        $region52: #{tpu_custom_call.1} parent=27 // pred_fallthru
          %v2506 = vphi 0, %v2504
          %v2507 = vphi 0, %v2505
        %p2508 = pneg %p1868
        // Predicated region
        $region53: #{tpu_custom_call.1} parent=27 // pred_check
          _
        $region54: #{tpu_custom_call.1} parent=27 // pred_check_branch
          %2510 = sbr.rel (%p1868) target = $region56
        $region55: #{tpu_custom_call.1} parent=27 // pred_region
          %v2511 = vstv %s1810
          %v2512 = vmul.f32 %v1866, %v2511
          %v2513 = vmul.f32 %v1867, %v2511
          %v2514 = vmax.f32 %v2512, -15.0
          %v2515 = vmax.f32 %v2513, -15.0
          %v2516 = vmin.f32 %v2514, 15.0
          %v2517 = vmin.f32 %v2515, 15.0
          %p2518 = scmp.lt.f32.partialorder %s1809, 0.0
          %v2519 = vtanh.pop %v2516
          %v2520 = vtanh.pop %v2517
          %v2521 = vstv %s1811
          %v2522 = vmul.f32 %v2519, %v2521
          %v2523 = vmul.f32 %v2520, %v2521
          %s2524 = scalar_select %p2518, 1, 0
          %v2525 = vstv %s2524
          %vm2526 = vcmp.eq.s32.totalorder %v2525, 1
          %v2527 = vsel %vm2526, %v2522, %v1866
          %v2528 = vsel %vm2526, %v2523, %v1867
        $region56: #{tpu_custom_call.1} parent=27 // pred_fallthru
          %v2529 = vphi %v2506, %v2527
          %v2530 = vphi %v2507, %v2528
        %v2531 = vmul.f32 %v2529, %v1852
        %v2532 = vmul.f32 %v2530, %v1862
        %v2535 = vrot.slane %v2532, 4
        %v2536 = vsel %vm209, %v2531, %v2535
        %v2538 = vmul.f32 %v1817, %v2536
        %2540 = vset.pattern.permute.xlu0 0
        %2541 = vperm.xlu0 %2540, %v1819
        %v2542 = vpop.permute.xlu0 %2541
        %2545 = vst [vmem:[#allocation1] ss:$2 sm:$0xff] %v1817
        %v2546 = vld.sshfl [vmem:[#allocation1] sm:$0xff pattern:$0x75316420]
        %v2547 = vld.sshfl [vmem:[#allocation1 + $0x8] sm:$0xff pattern:$0x75316420]
        %v2550 = vmul.f32 %v2542, %v2546
        %v2551 = vmul.f32 %v2542, %v2547
        %v2552 = vsel %vm209, %v2550, 0.0
        %v2553 = vrot.slane %v2552, 4
        %v2554 = vadd.f32 %v2552, %v2553
        %v2555 = vrot.slane %v2554, 2
        %v2556 = vadd.f32 %v2554, %v2555
        %v2557 = vrot.slane %v2556, 1
        %v2558 = vadd.f32 %v2556, %v2557
        %v2559 = vsel %vm209, %v2551, 0.0
        %v2560 = vrot.slane %v2559, 4
        %v2561 = vadd.f32 %v2559, %v2560
        %v2562 = vrot.slane %v2561, 2
        %v2563 = vadd.f32 %v2561, %v2562
        %v2564 = vrot.slane %v2563, 1
        %v2565 = vadd.f32 %v2563, %v2564
        %v2566 = vmul.f32 %v2558, %v2531
        %v2567 = vmul.f32 %v2565, %v2532
        %v2568 = vmul.f32 %v2531, %v2531
        %v2569 = vmul.f32 %v2532, %v2532
        %v2570 = vmul.f32 %v1833, %v2568
        %v2571 = vmul.f32 %v1840, %v2569
        %v2572 = vstv %s1815
        %v2573 = vmul.f32 %v2572, %v2566
        %v2574 = vmul.f32 %v2572, %v2567
        %v2575 = vsub.f32 1.0, %v2573
        %v2576 = vsub.f32 1.0, %v2574
        %v2577 = vstv %s1809
        %v2578 = vmul.f32 %v2577, %v2570
        %v2579 = vmul.f32 %v2577, %v2571
        %v2580 = vsub.f32 %v2575, %v2578
        %v2581 = vsub.f32 %v2576, %v2579
        %v2582 = vmul.f32 %v2580, %v2542
        %v2583 = vmul.f32 %v2581, %v2542
        %v2584 = vstv %s1813
        %v2585 = vmul.f32 %v2584, %v2538
        %2587 = vst [vmem:[#allocation1] ss:$2 sm:$0xff] %v2585
        %v2588 = vld.sshfl [vmem:[#allocation1] sm:$0xff pattern:$0x75316420]
        %v2589 = vld.sshfl [vmem:[#allocation1 + $0x8] sm:$0xff pattern:$0x75316420]
        %v2592 = vadd.f32 %v2582, %v2588
        %v2593 = vadd.f32 %v2583, %v2589
        %v2594 = vstv %s1814
        %v2595 = vmul.f32 %v2594, %v2570
        %v2596 = vmul.f32 %v2594, %v2571
        %v2597 = vadd.f32 %v2575, %v2595
        %v2598 = vadd.f32 %v2576, %v2596
        %v2599 = vmax.f32 %v2597, 1e-15
        %v2600 = vmax.f32 %v2598, 1e-15
        %v2601 = vrcp.pop %v2599
        %v2602 = vrcp.pop %v2600
        %v2603 = vmul.f32 %v2599, %v2601
        %v2604 = vmul.f32 %v2600, %v2602
        %v2605 = vsub.f32 2.0, %v2603
        %v2606 = vsub.f32 2.0, %v2604
        %v2607 = vmul.f32 %v2601, %v2605
        %v2608 = vmul.f32 %v2602, %v2606
        %v2609 = vmul.f32 %v2592, %v2607
        %v2610 = vmul.f32 %v2593, %v2608
        %v2613 = vrot.slane %v2610, 4
        %v2614 = vsel %vm209, %v2609, %v2613
        %s2616 = scalar_lea.vmem %s190, 16 [#allocation7]
        %2617 = vst [vmem:[%s2616] sm:$0xff] %v2614
        %s2618 = sld [smem:[#allocation3 + $0x180]]
        %s2619 = sld [smem:[#allocation3 + $0x181]]
        %s2620 = sld [smem:[#allocation3 + $0x182]]
        %s2621 = sld [smem:[#allocation3 + $0x183]]
        %s2622 = sld [smem:[#allocation3 + $0x184]]
        %s2623 = sld [smem:[#allocation3 + $0x185]]
        %s2624 = sld [smem:[#allocation3 + $0x186]]
        %s2625 = scalar_lea.vmem %s169, 24 [#allocation4]
        %v2626 = vld [vmem:[%s2625] sm:$0xff]
        %s2627 = scalar_lea.vmem %s1, 12
        %v2628 = vld [vmem:[%s2627] sm:$0xf]
        %v2629 = vmul.f32 %v2626, %v2626
        %2631 = vst [vmem:[#allocation1] ss:$2 sm:$0xff] %v2629
        %v2632 = vld.sshfl [vmem:[#allocation1] sm:$0xff pattern:$0x75316420]
        %v2633 = vld.sshfl [vmem:[#allocation1 + $0x8] sm:$0xff pattern:$0x75316420]
        %v2636 = vsel %vm209, %v2632, 0.0
        %v2637 = vrot.slane %v2636, 4
        %v2638 = vadd.f32 %v2636, %v2637
        %v2639 = vrot.slane %v2638, 2
        %v2640 = vadd.f32 %v2638, %v2639
        %v2641 = vrot.slane %v2640, 1
        %v2642 = vadd.f32 %v2640, %v2641
        %v2643 = vsel %vm209, %v2633, 0.0
        %v2644 = vrot.slane %v2643, 4
        %v2645 = vadd.f32 %v2643, %v2644
        %v2646 = vrot.slane %v2645, 2
        %v2647 = vadd.f32 %v2645, %v2646
        %v2648 = vrot.slane %v2647, 1
        %v2649 = vadd.f32 %v2647, %v2648
        %v2650 = vmax.f32 %v2642, 1e-30
        %v2651 = vmax.f32 %v2649, 1e-30
        %v2652 = vrsqrt.pop %v2650
        %v2653 = vmul.f32 %v2652, %v2650
        %v2654 = vmul.f32 %v2653, %v2652
        %v2655 = vmul.f32 0.5, %v2654
        %v2656 = vsub.f32 1.5, %v2655
        %v2657 = vmul.f32 %v2652, %v2656
        %vm2658 = vweird.f32 %v2650
        %vm2659 = vweird.f32 %v2652
        %vm2660 = vmor %vm2658, %vm2659
        %v2661 = vsel %vm2660, %v2652, %v2657
        %v2662 = vrsqrt.pop %v2651
        %v2663 = vmul.f32 %v2662, %v2651
        %v2664 = vmul.f32 %v2663, %v2662
        %v2665 = vmul.f32 0.5, %v2664
        %v2666 = vsub.f32 1.5, %v2665
        %v2667 = vmul.f32 %v2662, %v2666
        %vm2668 = vweird.f32 %v2651
        %vm2669 = vweird.f32 %v2662
        %vm2670 = vmor %vm2668, %vm2669
        %v2671 = vsel %vm2670, %v2662, %v2667
        %v2672 = vmul.f32 %v2642, %v2661
        %v2673 = vmul.f32 %v2649, %v2671
        %v2674 = vstv %s2621
        %v2675 = vmul.f32 %v2674, %v2672
        %v2676 = vmul.f32 %v2674, %v2673
        %p2677 = scmp.gt.f32.partialorder %s2618, 0.0
        // Predicated region
        $region57: #{tpu_custom_call.1} parent=27 // pred_check
          %p2678 = pneg %p2677
        $region58: #{tpu_custom_call.1} parent=27 // pred_check_branch
          %2680 = sbr.rel (%p2678) target = $region60
        $region59: #{tpu_custom_call.1} parent=27 // pred_region
          %v2681 = vstv %s2619
          %v2682 = vmul.f32 %v2675, %v2681
          %v2683 = vmul.f32 %v2676, %v2681
          %v2684 = vand.u32 2147483647, %v2682
          %vm2685 = vcmp.le.f32.partialorder %v2684, 0.7853982
          %vm2686 = vcmp.lt.s32.totalorder %v2682, 0
          %v2687 = vand.u32 %v2682, 2139095040
          %v2688 = vshrl.u32 %v2687, 23
          %v2689 = vsub.s32 %v2688, 127
          %v2690 = vand.u32 2147483647, %v2682
          %v2691 = vand.u32 %v2690, 8388607
          %v2692 = vor.u32 %v2691, 8388608
          %v2693 = vsub.s32 0, %v2692
          %v2694 = vadd.s32 %v2689, 1
          %vm2695 = vcmp.gt.s32.totalorder %v2694, 0
          %v2696 = vsel %vm2695, %v2694, 0
          %v2697 = vshrl.u32 %v2696, 5
          %v2698 = vand.u32 %v2696, 31
          %v2699 = vsub.s32 32, %v2698
          %v2700 = vshrl.u32 683565275, %v2699
          %v2701 = vshll.u32 683565275, %v2698
          %v2702 = vshrl.u32 2475754826, %v2699
          %v2703 = vor.u32 %v2701, %v2702
          %v2704 = vshll.u32 2475754826, %v2698
          %v2705 = vshrl.u32 2131351028, %v2699
          %v2706 = vor.u32 %v2704, %v2705
          %v2707 = vshll.u32 2131351028, %v2698
          %v2708 = vshrl.u32 2102212464, %v2699
          %v2709 = vor.u32 %v2707, %v2708
          %v2710 = vshll.u32 2102212464, %v2698
          %v2711 = vshrl.u32 920167782, %v2699
          %v2712 = vor.u32 %v2710, %v2711
          %v2713 = vshll.u32 920167782, %v2698
          %v2714 = vshrl.u32 1326507024, %v2699
          %v2715 = vor.u32 %v2713, %v2714
          %vm2716 = vcmp.lt.s32.totalorder %v2697, 1
          %vm2717 = vcmp.lt.s32.totalorder %v2697, 2
          %vm2718 = vcmp.lt.s32.totalorder %v2697, 3
          %vm2719 = vcmp.lt.s32.totalorder %v2697, 4
          %v2720 = vsel %vm2716, %v2700, %v2703
          %v2721 = vsel %vm2719, %v2709, 2102212464
          %v2722 = vsel %vm2718, %v2706, %v2721
          %v2723 = vsel %vm2717, %v2720, %v2722
          %v2724 = vsel %vm2716, %v2703, %v2706
          %v2725 = vsel %vm2719, %v2712, 920167782
          %v2726 = vsel %vm2718, %v2709, %v2725
          %v2727 = vsel %vm2717, %v2724, %v2726
          %v2728 = vsel %vm2716, %v2706, %v2709
          %v2729 = vsel %vm2719, %v2715, 1326507024
          %v2730 = vsel %vm2718, %v2712, %v2729
          %v2731 = vsel %vm2717, %v2728, %v2730
          %v2732 = vshll.u32 %v2692, 8
          %v2733 = vand.u32 %v2732, 65535
          %v2734 = vshrl.u32 %v2732, 16
          %v2735 = vand.u32 %v2731, 65535
          %v2736 = vshrl.u32 %v2731, 16
          %v2737 = vmul.u32 %v2733, %v2735
          %v2738 = vmul.u32 %v2733, %v2736
          %v2739 = vmul.u32 %v2734, %v2735
          %v2740 = vmul.u32 %v2734, %v2736
          %v2741 = vshll.u32 %v2738, 16
          %v2742 = vshrl.u32 %v2738, 16
          %v2743 = vshll.u32 %v2739, 16
          %v2744 = vshrl.u32 %v2739, 16
          %vm2745 = vc.u32 %v2737, %v2741
          %v2746 = vsel %vm2745, 1, 0
          %v2747 = vadd.s32 %v2737, %v2741
          %v2748 = vadd.s32 %v2740, %v2746
          %vm2749 = vc.u32 %v2747, %v2743
          %v2750 = vsel %vm2749, 1, 0
          %v2751 = vadd.s32 %v2747, %v2743
          %v2752 = vadd.s32 %v2748, %v2750
          %v2753 = vadd.s32 %v2752, %v2742
          %v2754 = vadd.s32 %v2753, %v2744
          %v2755 = vand.u32 %v2732, 65535
          %v2756 = vshrl.u32 %v2732, 16
          %v2757 = vand.u32 %v2727, 65535
          %v2758 = vshrl.u32 %v2727, 16
          %v2759 = vmul.u32 %v2755, %v2757
          %v2760 = vmul.u32 %v2755, %v2758
          %v2761 = vmul.u32 %v2756, %v2757
          %v2762 = vmul.u32 %v2756, %v2758
          %v2763 = vshll.u32 %v2760, 16
          %v2764 = vshrl.u32 %v2760, 16
          %v2765 = vshll.u32 %v2761, 16
          %v2766 = vshrl.u32 %v2761, 16
          %vm2767 = vc.u32 %v2759, %v2763
          %v2768 = vsel %vm2767, 1, 0
          %v2769 = vadd.s32 %v2759, %v2763
          %v2770 = vadd.s32 %v2762, %v2768
          %vm2771 = vc.u32 %v2769, %v2765
          %v2772 = vsel %vm2771, 1, 0
          %v2773 = vadd.s32 %v2769, %v2765
          %v2774 = vadd.s32 %v2770, %v2772
          %v2775 = vadd.s32 %v2774, %v2764
          %v2776 = vadd.s32 %v2775, %v2766
          %v2777 = vmul.u32 %v2732, %v2723
          %v2778 = vadd.s32 %v2754, %v2773
          %vm2779 = vc.u32 %v2754, %v2773
          %v2780 = vadd.s32 %v2776, 1
          %v2781 = vsel %vm2779, %v2780, %v2776
          %v2782 = vadd.s32 %v2777, %v2781
          %v2783 = vadd.s32 %v2782, 536870912
          %v2784 = vshrl.u32 %v2783, 30
          %v2785 = vshll.u32 %v2784, 30
          %v2786 = vsub.s32 %v2782, %v2785
          %vm2787 = vcmp.lt.s32.totalorder %v2786, 0
          %v2788 = vsub.s32 0, %v2786
          %v2789 = vsel %vm2787, %v2788, %v2786
          %v2790 = vclz %v2789
          %v2791 = vsub.s32 %v2790, 2
          %vm2792 = vcmp.gt.s32.totalorder 0, %v2791
          %v2793 = vsel %vm2792, 0, %v2791
          %v2794 = vsub.s32 32, %v2793
          %v2795 = vshll.u32 %v2786, %v2793
          %v2796 = vshrl.u32 %v2778, %v2794
          %v2797 = vor.u32 %v2795, %v2796
          %v2798 = vsub.s32 4294967266, %v2793
          %v2799 = vadd.s32 %v2798, 127
          %v2800 = vshll.u32 %v2799, 23
          %v2801 = vor.u32 4788187, %v2800
          %v2802 = vand.u32 2147483647, %v2801
          %v2804 = vcvt.s32.f32 %v2797
          %v2805 = vmul.f32 %v2804, %v2802
          %v2806 = vxor.u32 %v2805, 2147483648
          %v2807 = vsel %vm2686, %v2806, %v2805
          %v2808 = vsub.s32 4, %v2784
          %v2809 = vsel %vm2686, %v2808, %v2784
          %v2810 = vsel %vm2685, %v2682, %v2807
          %v2811 = vsel %vm2685, 0, %v2809
          %v2812 = vmul.f32 %v2810, %v2810
          %v2813 = vmul.f32 %v2812, -0.001358992
          %v2814 = vadd.f32 %v2813, 0.041655596
          %v2815 = vmul.f32 %v2812, %v2814
          %v2816 = vadd.f32 %v2815, -0.4999988
          %v2817 = vmul.f32 %v2812, %v2816
          %v2818 = vadd.f32 1.0, %v2817
          %v2819 = vmul.f32 %v2810, %v2810
          %v2820 = vmul.f32 %v2819, -0.00019511016
          %v2821 = vadd.f32 %v2820, 0.008332121
          %v2822 = vmul.f32 %v2819, %v2821
          %v2823 = vadd.f32 %v2822, -0.16666654
          %v2824 = vmul.f32 %v2819, %v2823
          %v2825 = vadd.f32 %v2824, 1.0
          %v2826 = vmul.f32 %v2825, %v2810
          %vm2827 = vweird.f32 %v2682
          %v2828 = vadd.s32 %v2811, 3
          %v2829 = vand.u32 %v2828, 3
          %vm2830 = vcmp.lt.s32.totalorder %v2829, 2
          %vm2831 = vcmp.eq.s32.totalorder %v2829, 0
          %v2832 = vxor.u32 %v2826, 2147483648
          %v2833 = vsel %vm2831, %v2818, %v2832
          %vm2834 = vcmp.eq.s32.totalorder %v2829, 2
          %v2835 = vxor.u32 %v2818, 2147483648
          %v2836 = vsel %vm2834, %v2835, %v2826
          %v2837 = vsel %vm2830, %v2833, %v2836
          %v2838 = vsel %vm2827, nan, %v2837
          %v2839 = vand.u32 2147483647, %v2683
          %vm2840 = vcmp.le.f32.partialorder %v2839, 0.7853982
          %vm2841 = vcmp.lt.s32.totalorder %v2683, 0
          %v2842 = vand.u32 %v2683, 2139095040
          %v2843 = vshrl.u32 %v2842, 23
          %v2844 = vsub.s32 %v2843, 127
          %v2845 = vand.u32 2147483647, %v2683
          %v2846 = vand.u32 %v2845, 8388607
          %v2847 = vor.u32 %v2846, 8388608
          %v2848 = vsub.s32 0, %v2847
          %v2849 = vadd.s32 %v2844, 1
          %vm2850 = vcmp.gt.s32.totalorder %v2849, 0
          %v2851 = vsel %vm2850, %v2849, 0
          %v2852 = vshrl.u32 %v2851, 5
          %v2853 = vand.u32 %v2851, 31
          %v2854 = vsub.s32 32, %v2853
          %v2855 = vshrl.u32 683565275, %v2854
          %v2856 = vshll.u32 683565275, %v2853
          %v2857 = vshrl.u32 2475754826, %v2854
          %v2858 = vor.u32 %v2856, %v2857
          %v2859 = vshll.u32 2475754826, %v2853
          %v2860 = vshrl.u32 2131351028, %v2854
          %v2861 = vor.u32 %v2859, %v2860
          %v2862 = vshll.u32 2131351028, %v2853
          %v2863 = vshrl.u32 2102212464, %v2854
          %v2864 = vor.u32 %v2862, %v2863
          %v2865 = vshll.u32 2102212464, %v2853
          %v2866 = vshrl.u32 920167782, %v2854
          %v2867 = vor.u32 %v2865, %v2866
          %v2868 = vshll.u32 920167782, %v2853
          %v2869 = vshrl.u32 1326507024, %v2854
          %v2870 = vor.u32 %v2868, %v2869
          %vm2871 = vcmp.lt.s32.totalorder %v2852, 1
          %vm2872 = vcmp.lt.s32.totalorder %v2852, 2
          %vm2873 = vcmp.lt.s32.totalorder %v2852, 3
          %vm2874 = vcmp.lt.s32.totalorder %v2852, 4
          %v2875 = vsel %vm2871, %v2855, %v2858
          %v2876 = vsel %vm2874, %v2864, 2102212464
          %v2877 = vsel %vm2873, %v2861, %v2876
          %v2878 = vsel %vm2872, %v2875, %v2877
          %v2879 = vsel %vm2871, %v2858, %v2861
          %v2880 = vsel %vm2874, %v2867, 920167782
          %v2881 = vsel %vm2873, %v2864, %v2880
          %v2882 = vsel %vm2872, %v2879, %v2881
          %v2883 = vsel %vm2871, %v2861, %v2864
          %v2884 = vsel %vm2874, %v2870, 1326507024
          %v2885 = vsel %vm2873, %v2867, %v2884
          %v2886 = vsel %vm2872, %v2883, %v2885
          %v2887 = vshll.u32 %v2847, 8
          %v2888 = vand.u32 %v2887, 65535
          %v2889 = vshrl.u32 %v2887, 16
          %v2890 = vand.u32 %v2886, 65535
          %v2891 = vshrl.u32 %v2886, 16
          %v2892 = vmul.u32 %v2888, %v2890
          %v2893 = vmul.u32 %v2888, %v2891
          %v2894 = vmul.u32 %v2889, %v2890
          %v2895 = vmul.u32 %v2889, %v2891
          %v2896 = vshll.u32 %v2893, 16
          %v2897 = vshrl.u32 %v2893, 16
          %v2898 = vshll.u32 %v2894, 16
          %v2899 = vshrl.u32 %v2894, 16
          %vm2900 = vc.u32 %v2892, %v2896
          %v2901 = vsel %vm2900, 1, 0
          %v2902 = vadd.s32 %v2892, %v2896
          %v2903 = vadd.s32 %v2895, %v2901
          %vm2904 = vc.u32 %v2902, %v2898
          %v2905 = vsel %vm2904, 1, 0
          %v2906 = vadd.s32 %v2902, %v2898
          %v2907 = vadd.s32 %v2903, %v2905
          %v2908 = vadd.s32 %v2907, %v2897
          %v2909 = vadd.s32 %v2908, %v2899
          %v2910 = vand.u32 %v2887, 65535
          %v2911 = vshrl.u32 %v2887, 16
          %v2912 = vand.u32 %v2882, 65535
          %v2913 = vshrl.u32 %v2882, 16
          %v2914 = vmul.u32 %v2910, %v2912
          %v2915 = vmul.u32 %v2910, %v2913
          %v2916 = vmul.u32 %v2911, %v2912
          %v2917 = vmul.u32 %v2911, %v2913
          %v2918 = vshll.u32 %v2915, 16
          %v2919 = vshrl.u32 %v2915, 16
          %v2920 = vshll.u32 %v2916, 16
          %v2921 = vshrl.u32 %v2916, 16
          %vm2922 = vc.u32 %v2914, %v2918
          %v2923 = vsel %vm2922, 1, 0
          %v2924 = vadd.s32 %v2914, %v2918
          %v2925 = vadd.s32 %v2917, %v2923
          %vm2926 = vc.u32 %v2924, %v2920
          %v2927 = vsel %vm2926, 1, 0
          %v2928 = vadd.s32 %v2924, %v2920
          %v2929 = vadd.s32 %v2925, %v2927
          %v2930 = vadd.s32 %v2929, %v2919
          %v2931 = vadd.s32 %v2930, %v2921
          %v2932 = vmul.u32 %v2887, %v2878
          %v2933 = vadd.s32 %v2909, %v2928
          %vm2934 = vc.u32 %v2909, %v2928
          %v2935 = vadd.s32 %v2931, 1
          %v2936 = vsel %vm2934, %v2935, %v2931
          %v2937 = vadd.s32 %v2932, %v2936
          %v2938 = vadd.s32 %v2937, 536870912
          %v2939 = vshrl.u32 %v2938, 30
          %v2940 = vshll.u32 %v2939, 30
          %v2941 = vsub.s32 %v2937, %v2940
          %vm2942 = vcmp.lt.s32.totalorder %v2941, 0
          %v2943 = vsub.s32 0, %v2941
          %v2944 = vsel %vm2942, %v2943, %v2941
          %v2945 = vclz %v2944
          %v2946 = vsub.s32 %v2945, 2
          %vm2947 = vcmp.gt.s32.totalorder 0, %v2946
          %v2948 = vsel %vm2947, 0, %v2946
          %v2949 = vsub.s32 32, %v2948
          %v2950 = vshll.u32 %v2941, %v2948
          %v2951 = vshrl.u32 %v2933, %v2949
          %v2952 = vor.u32 %v2950, %v2951
          %v2953 = vsub.s32 4294967266, %v2948
          %v2954 = vadd.s32 %v2953, 127
          %v2955 = vshll.u32 %v2954, 23
          %v2956 = vor.u32 4788187, %v2955
          %v2957 = vand.u32 2147483647, %v2956
          %v2959 = vcvt.s32.f32 %v2952
          %v2960 = vmul.f32 %v2959, %v2957
          %v2961 = vxor.u32 %v2960, 2147483648
          %v2962 = vsel %vm2841, %v2961, %v2960
          %v2963 = vsub.s32 4, %v2939
          %v2964 = vsel %vm2841, %v2963, %v2939
          %v2965 = vsel %vm2840, %v2683, %v2962
          %v2966 = vsel %vm2840, 0, %v2964
          %v2967 = vmul.f32 %v2965, %v2965
          %v2968 = vmul.f32 %v2967, -0.001358992
          %v2969 = vadd.f32 %v2968, 0.041655596
          %v2970 = vmul.f32 %v2967, %v2969
          %v2971 = vadd.f32 %v2970, -0.4999988
          %v2972 = vmul.f32 %v2967, %v2971
          %v2973 = vadd.f32 1.0, %v2972
          %v2974 = vmul.f32 %v2965, %v2965
          %v2975 = vmul.f32 %v2974, -0.00019511016
          %v2976 = vadd.f32 %v2975, 0.008332121
          %v2977 = vmul.f32 %v2974, %v2976
          %v2978 = vadd.f32 %v2977, -0.16666654
          %v2979 = vmul.f32 %v2974, %v2978
          %v2980 = vadd.f32 %v2979, 1.0
          %v2981 = vmul.f32 %v2980, %v2965
          %vm2982 = vweird.f32 %v2683
          %v2983 = vadd.s32 %v2966, 3
          %v2984 = vand.u32 %v2983, 3
          %vm2985 = vcmp.lt.s32.totalorder %v2984, 2
          %vm2986 = vcmp.eq.s32.totalorder %v2984, 0
          %v2987 = vxor.u32 %v2981, 2147483648
          %v2988 = vsel %vm2986, %v2973, %v2987
          %vm2989 = vcmp.eq.s32.totalorder %v2984, 2
          %v2990 = vxor.u32 %v2973, 2147483648
          %v2991 = vsel %vm2989, %v2990, %v2981
          %v2992 = vsel %vm2985, %v2988, %v2991
          %v2993 = vsel %vm2982, nan, %v2992
          %v2994 = vand.u32 2147483647, %v2682
          %vm2995 = vcmp.le.f32.partialorder %v2994, 0.7853982
          %vm2996 = vcmp.lt.s32.totalorder %v2682, 0
          %v2997 = vand.u32 %v2682, 2139095040
          %v2998 = vshrl.u32 %v2997, 23
          %v2999 = vsub.s32 %v2998, 127
          %v3000 = vand.u32 2147483647, %v2682
          %v3001 = vand.u32 %v3000, 8388607
          %v3002 = vor.u32 %v3001, 8388608
          %v3003 = vsub.s32 0, %v3002
          %v3004 = vadd.s32 %v2999, 1
          %vm3005 = vcmp.gt.s32.totalorder %v3004, 0
          %v3006 = vsel %vm3005, %v3004, 0
          %v3007 = vshrl.u32 %v3006, 5
          %v3008 = vand.u32 %v3006, 31
          %v3009 = vsub.s32 32, %v3008
          %v3010 = vshrl.u32 683565275, %v3009
          %v3011 = vshll.u32 683565275, %v3008
          %v3012 = vshrl.u32 2475754826, %v3009
          %v3013 = vor.u32 %v3011, %v3012
          %v3014 = vshll.u32 2475754826, %v3008
          %v3015 = vshrl.u32 2131351028, %v3009
          %v3016 = vor.u32 %v3014, %v3015
          %v3017 = vshll.u32 2131351028, %v3008
          %v3018 = vshrl.u32 2102212464, %v3009
          %v3019 = vor.u32 %v3017, %v3018
          %v3020 = vshll.u32 2102212464, %v3008
          %v3021 = vshrl.u32 920167782, %v3009
          %v3022 = vor.u32 %v3020, %v3021
          %v3023 = vshll.u32 920167782, %v3008
          %v3024 = vshrl.u32 1326507024, %v3009
          %v3025 = vor.u32 %v3023, %v3024
          %vm3026 = vcmp.lt.s32.totalorder %v3007, 1
          %vm3027 = vcmp.lt.s32.totalorder %v3007, 2
          %vm3028 = vcmp.lt.s32.totalorder %v3007, 3
          %vm3029 = vcmp.lt.s32.totalorder %v3007, 4
          %v3030 = vsel %vm3026, %v3010, %v3013
          %v3031 = vsel %vm3029, %v3019, 2102212464
          %v3032 = vsel %vm3028, %v3016, %v3031
          %v3033 = vsel %vm3027, %v3030, %v3032
          %v3034 = vsel %vm3026, %v3013, %v3016
          %v3035 = vsel %vm3029, %v3022, 920167782
          %v3036 = vsel %vm3028, %v3019, %v3035
          %v3037 = vsel %vm3027, %v3034, %v3036
          %v3038 = vsel %vm3026, %v3016, %v3019
          %v3039 = vsel %vm3029, %v3025, 1326507024
          %v3040 = vsel %vm3028, %v3022, %v3039
          %v3041 = vsel %vm3027, %v3038, %v3040
          %v3042 = vshll.u32 %v3002, 8
          %v3043 = vand.u32 %v3042, 65535
          %v3044 = vshrl.u32 %v3042, 16
          %v3045 = vand.u32 %v3041, 65535
          %v3046 = vshrl.u32 %v3041, 16
          %v3047 = vmul.u32 %v3043, %v3045
          %v3048 = vmul.u32 %v3043, %v3046
          %v3049 = vmul.u32 %v3044, %v3045
          %v3050 = vmul.u32 %v3044, %v3046
          %v3051 = vshll.u32 %v3048, 16
          %v3052 = vshrl.u32 %v3048, 16
          %v3053 = vshll.u32 %v3049, 16
          %v3054 = vshrl.u32 %v3049, 16
          %vm3055 = vc.u32 %v3047, %v3051
          %v3056 = vsel %vm3055, 1, 0
          %v3057 = vadd.s32 %v3047, %v3051
          %v3058 = vadd.s32 %v3050, %v3056
          %vm3059 = vc.u32 %v3057, %v3053
          %v3060 = vsel %vm3059, 1, 0
          %v3061 = vadd.s32 %v3057, %v3053
          %v3062 = vadd.s32 %v3058, %v3060
          %v3063 = vadd.s32 %v3062, %v3052
          %v3064 = vadd.s32 %v3063, %v3054
          %v3065 = vand.u32 %v3042, 65535
          %v3066 = vshrl.u32 %v3042, 16
          %v3067 = vand.u32 %v3037, 65535
          %v3068 = vshrl.u32 %v3037, 16
          %v3069 = vmul.u32 %v3065, %v3067
          %v3070 = vmul.u32 %v3065, %v3068
          %v3071 = vmul.u32 %v3066, %v3067
          %v3072 = vmul.u32 %v3066, %v3068
          %v3073 = vshll.u32 %v3070, 16
          %v3074 = vshrl.u32 %v3070, 16
          %v3075 = vshll.u32 %v3071, 16
          %v3076 = vshrl.u32 %v3071, 16
          %vm3077 = vc.u32 %v3069, %v3073
          %v3078 = vsel %vm3077, 1, 0
          %v3079 = vadd.s32 %v3069, %v3073
          %v3080 = vadd.s32 %v3072, %v3078
          %vm3081 = vc.u32 %v3079, %v3075
          %v3082 = vsel %vm3081, 1, 0
          %v3083 = vadd.s32 %v3079, %v3075
          %v3084 = vadd.s32 %v3080, %v3082
          %v3085 = vadd.s32 %v3084, %v3074
          %v3086 = vadd.s32 %v3085, %v3076
          %v3087 = vmul.u32 %v3042, %v3033
          %v3088 = vadd.s32 %v3064, %v3083
          %vm3089 = vc.u32 %v3064, %v3083
          %v3090 = vadd.s32 %v3086, 1
          %v3091 = vsel %vm3089, %v3090, %v3086
          %v3092 = vadd.s32 %v3087, %v3091
          %v3093 = vadd.s32 %v3092, 536870912
          %v3094 = vshrl.u32 %v3093, 30
          %v3095 = vshll.u32 %v3094, 30
          %v3096 = vsub.s32 %v3092, %v3095
          %vm3097 = vcmp.lt.s32.totalorder %v3096, 0
          %v3098 = vsub.s32 0, %v3096
          %v3099 = vsel %vm3097, %v3098, %v3096
          %v3100 = vclz %v3099
          %v3101 = vsub.s32 %v3100, 2
          %vm3102 = vcmp.gt.s32.totalorder 0, %v3101
          %v3103 = vsel %vm3102, 0, %v3101
          %v3104 = vsub.s32 32, %v3103
          %v3105 = vshll.u32 %v3096, %v3103
          %v3106 = vshrl.u32 %v3088, %v3104
          %v3107 = vor.u32 %v3105, %v3106
          %v3108 = vsub.s32 4294967266, %v3103
          %v3109 = vadd.s32 %v3108, 127
          %v3110 = vshll.u32 %v3109, 23
          %v3111 = vor.u32 4788187, %v3110
          %v3112 = vand.u32 2147483647, %v3111
          %v3114 = vcvt.s32.f32 %v3107
          %v3115 = vmul.f32 %v3114, %v3112
          %v3116 = vxor.u32 %v3115, 2147483648
          %v3117 = vsel %vm2996, %v3116, %v3115
          %v3118 = vsub.s32 4, %v3094
          %v3119 = vsel %vm2996, %v3118, %v3094
          %v3120 = vsel %vm2995, %v2682, %v3117
          %v3121 = vsel %vm2995, 0, %v3119
          %v3122 = vmul.f32 %v3120, %v3120
          %v3123 = vmul.f32 %v3122, -0.001358992
          %v3124 = vadd.f32 %v3123, 0.041655596
          %v3125 = vmul.f32 %v3122, %v3124
          %v3126 = vadd.f32 %v3125, -0.4999988
          %v3127 = vmul.f32 %v3122, %v3126
          %v3128 = vadd.f32 1.0, %v3127
          %v3129 = vmul.f32 %v3120, %v3120
          %v3130 = vmul.f32 %v3129, -0.00019511016
          %v3131 = vadd.f32 %v3130, 0.008332121
          %v3132 = vmul.f32 %v3129, %v3131
          %v3133 = vadd.f32 %v3132, -0.16666654
          %v3134 = vmul.f32 %v3129, %v3133
          %v3135 = vadd.f32 %v3134, 1.0
          %v3136 = vmul.f32 %v3135, %v3120
          %vm3137 = vweird.f32 %v2682
          %v3138 = vand.u32 %v3121, 3
          %vm3139 = vcmp.lt.s32.totalorder %v3138, 2
          %vm3140 = vcmp.eq.s32.totalorder %v3138, 0
          %v3141 = vxor.u32 %v3136, 2147483648
          %v3142 = vsel %vm3140, %v3128, %v3141
          %vm3143 = vcmp.eq.s32.totalorder %v3138, 2
          %v3144 = vxor.u32 %v3128, 2147483648
          %v3145 = vsel %vm3143, %v3144, %v3136
          %v3146 = vsel %vm3139, %v3142, %v3145
          %v3147 = vsel %vm3137, nan, %v3146
          %v3148 = vand.u32 2147483647, %v2683
          %vm3149 = vcmp.le.f32.partialorder %v3148, 0.7853982
          %vm3150 = vcmp.lt.s32.totalorder %v2683, 0
          %v3151 = vand.u32 %v2683, 2139095040
          %v3152 = vshrl.u32 %v3151, 23
          %v3153 = vsub.s32 %v3152, 127
          %v3154 = vand.u32 2147483647, %v2683
          %v3155 = vand.u32 %v3154, 8388607
          %v3156 = vor.u32 %v3155, 8388608
          %v3157 = vsub.s32 0, %v3156
          %v3158 = vadd.s32 %v3153, 1
          %vm3159 = vcmp.gt.s32.totalorder %v3158, 0
          %v3160 = vsel %vm3159, %v3158, 0
          %v3161 = vshrl.u32 %v3160, 5
          %v3162 = vand.u32 %v3160, 31
          %v3163 = vsub.s32 32, %v3162
          %v3164 = vshrl.u32 683565275, %v3163
          %v3165 = vshll.u32 683565275, %v3162
          %v3166 = vshrl.u32 2475754826, %v3163
          %v3167 = vor.u32 %v3165, %v3166
          %v3168 = vshll.u32 2475754826, %v3162
          %v3169 = vshrl.u32 2131351028, %v3163
          %v3170 = vor.u32 %v3168, %v3169
          %v3171 = vshll.u32 2131351028, %v3162
          %v3172 = vshrl.u32 2102212464, %v3163
          %v3173 = vor.u32 %v3171, %v3172
          %v3174 = vshll.u32 2102212464, %v3162
          %v3175 = vshrl.u32 920167782, %v3163
          %v3176 = vor.u32 %v3174, %v3175
          %v3177 = vshll.u32 920167782, %v3162
          %v3178 = vshrl.u32 1326507024, %v3163
          %v3179 = vor.u32 %v3177, %v3178
          %vm3180 = vcmp.lt.s32.totalorder %v3161, 1
          %vm3181 = vcmp.lt.s32.totalorder %v3161, 2
          %vm3182 = vcmp.lt.s32.totalorder %v3161, 3
          %vm3183 = vcmp.lt.s32.totalorder %v3161, 4
          %v3184 = vsel %vm3180, %v3164, %v3167
          %v3185 = vsel %vm3183, %v3173, 2102212464
          %v3186 = vsel %vm3182, %v3170, %v3185
          %v3187 = vsel %vm3181, %v3184, %v3186
          %v3188 = vsel %vm3180, %v3167, %v3170
          %v3189 = vsel %vm3183, %v3176, 920167782
          %v3190 = vsel %vm3182, %v3173, %v3189
          %v3191 = vsel %vm3181, %v3188, %v3190
          %v3192 = vsel %vm3180, %v3170, %v3173
          %v3193 = vsel %vm3183, %v3179, 1326507024
          %v3194 = vsel %vm3182, %v3176, %v3193
          %v3195 = vsel %vm3181, %v3192, %v3194
          %v3196 = vshll.u32 %v3156, 8
          %v3197 = vand.u32 %v3196, 65535
          %v3198 = vshrl.u32 %v3196, 16
          %v3199 = vand.u32 %v3195, 65535
          %v3200 = vshrl.u32 %v3195, 16
          %v3201 = vmul.u32 %v3197, %v3199
          %v3202 = vmul.u32 %v3197, %v3200
          %v3203 = vmul.u32 %v3198, %v3199
          %v3204 = vmul.u32 %v3198, %v3200
          %v3205 = vshll.u32 %v3202, 16
          %v3206 = vshrl.u32 %v3202, 16
          %v3207 = vshll.u32 %v3203, 16
          %v3208 = vshrl.u32 %v3203, 16
          %vm3209 = vc.u32 %v3201, %v3205
          %v3210 = vsel %vm3209, 1, 0
          %v3211 = vadd.s32 %v3201, %v3205
          %v3212 = vadd.s32 %v3204, %v3210
          %vm3213 = vc.u32 %v3211, %v3207
          %v3214 = vsel %vm3213, 1, 0
          %v3215 = vadd.s32 %v3211, %v3207
          %v3216 = vadd.s32 %v3212, %v3214
          %v3217 = vadd.s32 %v3216, %v3206
          %v3218 = vadd.s32 %v3217, %v3208
          %v3219 = vand.u32 %v3196, 65535
          %v3220 = vshrl.u32 %v3196, 16
          %v3221 = vand.u32 %v3191, 65535
          %v3222 = vshrl.u32 %v3191, 16
          %v3223 = vmul.u32 %v3219, %v3221
          %v3224 = vmul.u32 %v3219, %v3222
          %v3225 = vmul.u32 %v3220, %v3221
          %v3226 = vmul.u32 %v3220, %v3222
          %v3227 = vshll.u32 %v3224, 16
          %v3228 = vshrl.u32 %v3224, 16
          %v3229 = vshll.u32 %v3225, 16
          %v3230 = vshrl.u32 %v3225, 16
          %vm3231 = vc.u32 %v3223, %v3227
          %v3232 = vsel %vm3231, 1, 0
          %v3233 = vadd.s32 %v3223, %v3227
          %v3234 = vadd.s32 %v3226, %v3232
          %vm3235 = vc.u32 %v3233, %v3229
          %v3236 = vsel %vm3235, 1, 0
          %v3237 = vadd.s32 %v3233, %v3229
          %v3238 = vadd.s32 %v3234, %v3236
          %v3239 = vadd.s32 %v3238, %v3228
          %v3240 = vadd.s32 %v3239, %v3230
          %v3241 = vmul.u32 %v3196, %v3187
          %v3242 = vadd.s32 %v3218, %v3237
          %vm3243 = vc.u32 %v3218, %v3237
          %v3244 = vadd.s32 %v3240, 1
          %v3245 = vsel %vm3243, %v3244, %v3240
          %v3246 = vadd.s32 %v3241, %v3245
          %v3247 = vadd.s32 %v3246, 536870912
          %v3248 = vshrl.u32 %v3247, 30
          %v3249 = vshll.u32 %v3248, 30
          %v3250 = vsub.s32 %v3246, %v3249
          %vm3251 = vcmp.lt.s32.totalorder %v3250, 0
          %v3252 = vsub.s32 0, %v3250
          %v3253 = vsel %vm3251, %v3252, %v3250
          %v3254 = vclz %v3253
          %v3255 = vsub.s32 %v3254, 2
          %vm3256 = vcmp.gt.s32.totalorder 0, %v3255
          %v3257 = vsel %vm3256, 0, %v3255
          %v3258 = vsub.s32 32, %v3257
          %v3259 = vshll.u32 %v3250, %v3257
          %v3260 = vshrl.u32 %v3242, %v3258
          %v3261 = vor.u32 %v3259, %v3260
          %v3262 = vsub.s32 4294967266, %v3257
          %v3263 = vadd.s32 %v3262, 127
          %v3264 = vshll.u32 %v3263, 23
          %v3265 = vor.u32 4788187, %v3264
          %v3266 = vand.u32 2147483647, %v3265
          %v3268 = vcvt.s32.f32 %v3261
          %v3269 = vmul.f32 %v3268, %v3266
          %v3270 = vxor.u32 %v3269, 2147483648
          %v3271 = vsel %vm3150, %v3270, %v3269
          %v3272 = vsub.s32 4, %v3248
          %v3273 = vsel %vm3150, %v3272, %v3248
          %v3274 = vsel %vm3149, %v2683, %v3271
          %v3275 = vsel %vm3149, 0, %v3273
          %v3276 = vmul.f32 %v3274, %v3274
          %v3277 = vmul.f32 %v3276, -0.001358992
          %v3278 = vadd.f32 %v3277, 0.041655596
          %v3279 = vmul.f32 %v3276, %v3278
          %v3280 = vadd.f32 %v3279, -0.4999988
          %v3281 = vmul.f32 %v3276, %v3280
          %v3282 = vadd.f32 1.0, %v3281
          %v3283 = vmul.f32 %v3274, %v3274
          %v3284 = vmul.f32 %v3283, -0.00019511016
          %v3285 = vadd.f32 %v3284, 0.008332121
          %v3286 = vmul.f32 %v3283, %v3285
          %v3287 = vadd.f32 %v3286, -0.16666654
          %v3288 = vmul.f32 %v3283, %v3287
          %v3289 = vadd.f32 %v3288, 1.0
          %v3290 = vmul.f32 %v3289, %v3274
          %vm3291 = vweird.f32 %v2683
          %v3292 = vand.u32 %v3275, 3
          %vm3293 = vcmp.lt.s32.totalorder %v3292, 2
          %vm3294 = vcmp.eq.s32.totalorder %v3292, 0
          %v3295 = vxor.u32 %v3290, 2147483648
          %v3296 = vsel %vm3294, %v3282, %v3295
          %vm3297 = vcmp.eq.s32.totalorder %v3292, 2
          %v3298 = vxor.u32 %v3282, 2147483648
          %v3299 = vsel %vm3297, %v3298, %v3290
          %v3300 = vsel %vm3293, %v3296, %v3299
          %v3301 = vsel %vm3291, nan, %v3300
          %v3302 = vrcp.pop %v3147
          %v3303 = vrcp.pop %v3301
          %v3304 = vmul.f32 %v3147, %v3302
          %v3305 = vmul.f32 %v3301, %v3303
          %v3306 = vsub.f32 2.0, %v3304
          %v3307 = vsub.f32 2.0, %v3305
          %v3308 = vmul.f32 %v3302, %v3306
          %v3309 = vmul.f32 %v3303, %v3307
          %v3310 = vmul.f32 %v2838, %v3308
          %v3311 = vmul.f32 %v2993, %v3309
          %v3312 = vstv %s2620
          %v3313 = vmul.f32 %v3310, %v3312
          %v3314 = vmul.f32 %v3311, %v3312
        $region60: #{tpu_custom_call.1} parent=27 // pred_fallthru
          %v3315 = vphi 0, %v3313
          %v3316 = vphi 0, %v3314
        %p3317 = pneg %p2677
        // Predicated region
        $region61: #{tpu_custom_call.1} parent=27 // pred_check
          _
        $region62: #{tpu_custom_call.1} parent=27 // pred_check_branch
          %3319 = sbr.rel (%p2677) target = $region64
        $region63: #{tpu_custom_call.1} parent=27 // pred_region
          %v3320 = vstv %s2619
          %v3321 = vmul.f32 %v2675, %v3320
          %v3322 = vmul.f32 %v2676, %v3320
          %v3323 = vmax.f32 %v3321, -15.0
          %v3324 = vmax.f32 %v3322, -15.0
          %v3325 = vmin.f32 %v3323, 15.0
          %v3326 = vmin.f32 %v3324, 15.0
          %p3327 = scmp.lt.f32.partialorder %s2618, 0.0
          %v3328 = vtanh.pop %v3325
          %v3329 = vtanh.pop %v3326
          %v3330 = vstv %s2620
          %v3331 = vmul.f32 %v3328, %v3330
          %v3332 = vmul.f32 %v3329, %v3330
          %s3333 = scalar_select %p3327, 1, 0
          %v3334 = vstv %s3333
          %vm3335 = vcmp.eq.s32.totalorder %v3334, 1
          %v3336 = vsel %vm3335, %v3331, %v2675
          %v3337 = vsel %vm3335, %v3332, %v2676
        $region64: #{tpu_custom_call.1} parent=27 // pred_fallthru
          %v3338 = vphi %v3315, %v3336
          %v3339 = vphi %v3316, %v3337
        %v3340 = vmul.f32 %v3338, %v2661
        %v3341 = vmul.f32 %v3339, %v2671
        %v3344 = vrot.slane %v3341, 4
        %v3345 = vsel %vm209, %v3340, %v3344
        %v3347 = vmul.f32 %v2626, %v3345
        %3349 = vset.pattern.permute.xlu0 0
        %3350 = vperm.xlu0 %3349, %v2628
        %v3351 = vpop.permute.xlu0 %3350
        %3354 = vst [vmem:[#allocation1] ss:$2 sm:$0xff] %v2626
        %v3355 = vld.sshfl [vmem:[#allocation1] sm:$0xff pattern:$0x75316420]
        %v3356 = vld.sshfl [vmem:[#allocation1 + $0x8] sm:$0xff pattern:$0x75316420]
        %v3359 = vmul.f32 %v3351, %v3355
        %v3360 = vmul.f32 %v3351, %v3356
        %v3361 = vsel %vm209, %v3359, 0.0
        %v3362 = vrot.slane %v3361, 4
        %v3363 = vadd.f32 %v3361, %v3362
        %v3364 = vrot.slane %v3363, 2
        %v3365 = vadd.f32 %v3363, %v3364
        %v3366 = vrot.slane %v3365, 1
        %v3367 = vadd.f32 %v3365, %v3366
        %v3368 = vsel %vm209, %v3360, 0.0
        %v3369 = vrot.slane %v3368, 4
        %v3370 = vadd.f32 %v3368, %v3369
        %v3371 = vrot.slane %v3370, 2
        %v3372 = vadd.f32 %v3370, %v3371
        %v3373 = vrot.slane %v3372, 1
        %v3374 = vadd.f32 %v3372, %v3373
        %v3375 = vmul.f32 %v3367, %v3340
        %v3376 = vmul.f32 %v3374, %v3341
        %v3377 = vmul.f32 %v3340, %v3340
        %v3378 = vmul.f32 %v3341, %v3341
        %v3379 = vmul.f32 %v2642, %v3377
        %v3380 = vmul.f32 %v2649, %v3378
        %v3381 = vstv %s2624
        %v3382 = vmul.f32 %v3381, %v3375
        %v3383 = vmul.f32 %v3381, %v3376
        %v3384 = vsub.f32 1.0, %v3382
        %v3385 = vsub.f32 1.0, %v3383
        %v3386 = vstv %s2618
        %v3387 = vmul.f32 %v3386, %v3379
        %v3388 = vmul.f32 %v3386, %v3380
        %v3389 = vsub.f32 %v3384, %v3387
        %v3390 = vsub.f32 %v3385, %v3388
        %v3391 = vmul.f32 %v3389, %v3351
        %v3392 = vmul.f32 %v3390, %v3351
        %v3393 = vstv %s2622
        %v3394 = vmul.f32 %v3393, %v3347
        %3396 = vst [vmem:[#allocation1] ss:$2 sm:$0xff] %v3394
        %v3397 = vld.sshfl [vmem:[#allocation1] sm:$0xff pattern:$0x75316420]
        %v3398 = vld.sshfl [vmem:[#allocation1 + $0x8] sm:$0xff pattern:$0x75316420]
        %v3401 = vadd.f32 %v3391, %v3397
        %v3402 = vadd.f32 %v3392, %v3398
        %v3403 = vstv %s2623
        %v3404 = vmul.f32 %v3403, %v3379
        %v3405 = vmul.f32 %v3403, %v3380
        %v3406 = vadd.f32 %v3384, %v3404
        %v3407 = vadd.f32 %v3385, %v3405
        %v3408 = vmax.f32 %v3406, 1e-15
        %v3409 = vmax.f32 %v3407, 1e-15
        %v3410 = vrcp.pop %v3408
        %v3411 = vrcp.pop %v3409
        %v3412 = vmul.f32 %v3408, %v3410
        %v3413 = vmul.f32 %v3409, %v3411
        %v3414 = vsub.f32 2.0, %v3412
        %v3415 = vsub.f32 2.0, %v3413
        %v3416 = vmul.f32 %v3410, %v3414
        %v3417 = vmul.f32 %v3411, %v3415
        %v3418 = vmul.f32 %v3401, %v3416
        %v3419 = vmul.f32 %v3402, %v3417
        %v3422 = vrot.slane %v3419, 4
        %v3423 = vsel %vm209, %v3418, %v3422
        %s3425 = scalar_lea.vmem %s190, 24 [#allocation7]
        %3426 = vst [vmem:[%s3425] sm:$0xff] %v3423
        %s3427 = sand.u32 %s99, 1
        %s3428 = scalar_lea.sflag [#allocation6], %s3427
        %s3429 = sand.u32 %s99, 1
        %s3430 = smul.addr %s3429, 32
        %s3431 = scalar_lea.vmem [#allocation7], %s3430
        // Predicated region
        $region65: #{tpu_custom_call.1} parent=27 // pred_check
          %p3432 = pneg %p109
        $region66: #{tpu_custom_call.1} parent=27 // pred_check_branch
          %3434 = sbr.rel (%p3432) target = $region68
        $region67: #{tpu_custom_call.1} parent=27 // pred_region
          %s3435 = smul.u32 2, %s33
          %3437 = vsyncadd %s3428, 0
          %s3438 = smul.addr %s32, 8
          %s3439 = sadd.s32 %s3435, %s3438
          %s3440 = smul.addr %s3439, 4
          %s3441 = scalar_lea.hbm %s3, %s3440
          %s3442 = sshll.u32 %s3431, 4
          %s3443 = int_to_ptr.vmem [resolvable:$true] %s3442
          %s3444 = sshll.u32 %s3441, 4
          %s3445 = int_to_ptr.hbm [resolvable:$true] %s3444
          %3450 = dma.vmem_to_hbm [thread:$0]  %s3443, 512, %s3445, %s3428, 128, 128, 8
        $region68: #{tpu_custom_call.1} parent=27 // pred_fallthru
          _
      $region28: #{tpu_custom_call.1} parent=5 // pred_fallthru
        _
      %p3451 = scmp.le.s32.totalorder 2, %s23
      // Predicated region
      $region69: #{tpu_custom_call.1} parent=5 // pred_check
        %p3452 = pneg %p3451
      $region70: #{tpu_custom_call.1} parent=5 // pred_check_branch
        %3454 = sbr.rel (%p3452) target = $region72
      $region71: #{tpu_custom_call.1} parent=5 // pred_region
        %s3455 = ssub.s32 %s23, 2
        // Predicated region
        $region73: #{tpu_custom_call.1} parent=71 // pred_check
          %p3456 = pneg %p115
        $region74: #{tpu_custom_call.1} parent=71 // pred_check_branch
          %3458 = sbr.rel (%p3456) target = $region76
        $region75: #{tpu_custom_call.1} parent=71 // pred_region
          %s3459 = sand.u32 %s100, 1
          %s3460 = scalar_lea.sflag [#allocation6], %s3459
          %s3461 = sand.u32 %s100, 1
          %s3462 = smul.addr %s3461, 32
          %s3463 = scalar_lea.vmem [#allocation7], %s3462
          %3465 = dma.done %s3460, 512
        $region76: #{tpu_custom_call.1} parent=71 // pred_fallthru
          _
      $region72: #{tpu_custom_call.1} parent=5 // pred_fallthru
        _
    $region6: #{tpu_custom_call.1} parent=1 // loop_footer
      %s27 = sadd.s32 1, %s23
    $region7: #{tpu_custom_call.1} parent=1 // loop_footer_branch
      %22 = sbr.rel target = $region3
    $region8: #{tpu_custom_call.1} parent=1 // loop_exit
      _
    %3466 = vsyncpa [#allocation5], 1
    %s3467 = scalar_lea.sflag [#allocation5], 1
    %3468 = vsyncpa %s3467, 1
    %3469 = vsyncpa [#allocation6], 1
    %s3470 = scalar_lea.sflag [#allocation6], 1
    %3471 = vsyncpa %s3470, 1

</llo_original>
